<compile_context>
chip_gen: v7x
topology: tpu7x:2x2x1
jax: 0.10.0
libtpu: 0.0.40
codegen_flags: <defaults>
</compile_context>

<pallas_src>
import jax
import jax.numpy as jnp
from jax import lax
from jax.experimental import pallas as pl
from jax.experimental.pallas import tpu as pltpu


# ---------------------------------------------------------------------------
# Helpers
# ---------------------------------------------------------------------------
def _vmem_budget(block_bytes, scratch_bytes):
    """Explicit VMEM budget: double-buffered blocks + scratch + headroom.

    Floored at the 32 MiB scoped default (demo shapes behave exactly like the
    default) and capped at 56 MiB so the plan still fits v7x's 64 MiB
    physical VMEM at production sizes.
    """
    need = 2 * block_bytes + scratch_bytes + (4 << 20)
    return int(min(max(need, 32 << 20), 56 << 20))


def _wspec(shape, index_map, single_buffer):
    """BlockSpec for a grid-constant operand (same block every grid step).

    single_buffer=True requests one pipeline buffer (pl.Buffered(1)):
    double-buffering a constant operand buys nothing and wastes VMEM.
    """
    if single_buffer:
        return pl.BlockSpec(shape, index_map, pipeline_mode=pl.Buffered(1))
    return pl.BlockSpec(shape, index_map)


# ---------------------------------------------------------------------------
# Fused CNN stack kernel:
#   depth x [Conv1d (weight-normed, pre-normalized) + LayerNorm(C) +
#            LeakyReLU(0.2) + masked_fill(m, 0)]
# One grid step = one batch row; activation stays in VMEM across all blocks.
# ---------------------------------------------------------------------------
def conv_stack_kernel(x_ref, w_ref, b_ref, g_ref, beta_ref, m_ref, o_ref,
                      xp_s):
    # x_ref : (T, C) f32      input row (already masked)
    # w_ref : (depth*K, C_in, C_out) bf16  effective conv weights
    # b_ref, g_ref, beta_ref: (depth, 1, C) f32
    # m_ref : (T, 1) f32      mask (1.0 where padded)
    # o_ref : (T, C) bf16
    # xp_s  : (T + 2*pad, C) bf16  VMEM halo scratch
    T, C = o_ref.shape
    depth = b_ref.shape[0]
    K = w_ref.shape[0] // depth
    pad = (K - 1) // 2

    # Zero the halo rows once; the middle is rewritten every block.
    if pad > 0:
        xp_s[0:pad, :] = jnp.zeros((pad, C), jnp.bfloat16)
        xp_s[pad + T:pad + T + pad, :] = jnp.zeros((pad, C), jnp.bfloat16)

    keep = 1.0 - m_ref[...]                       # (T, 1)
    cur = x_ref[...]                              # (T, C) f32

    for d in range(depth):                        # static unroll over blocks
        # Single f32->bf16 cast per block (taps slice bf16 directly below).
        xp_s[pad:pad + T, :] = cur.astype(jnp.bfloat16)
        xpv = xp_s[...]                           # (T + 2*pad, C) bf16

        acc = jnp.zeros((T, C), jnp.float32)
        for k in range(K):                        # static unroll over taps
            acc = acc + jnp.dot(xpv[k:k + T, :], w_ref[d * K + k],
                                preferred_element_type=jnp.float32)
        acc = acc + b_ref[d]                      # conv bias (NOT redundant:
                                                  # LN normalizes over C)

        # LayerNorm over channels (biased variance, eps=1e-5) + affine
        mean = jnp.mean(acc, axis=-1, keepdims=True)
        var = jnp.mean(jnp.square(acc - mean), axis=-1, keepdims=True)
        y = (acc - mean) * lax.rsqrt(var + 1e-5)
        y = y * g_ref[d] + beta_ref[d]

        # LeakyReLU(0.2)
        y = jnp.where(y > 0, y, 0.2 * y)

        # masked_fill(m, 0)
        cur = y * keep

    o_ref[...] = cur.astype(o_ref.dtype)          # bf16 out (feeds bf16 MXU)


def conv_stack(x, w_all, b_all, gamma_all, beta_all, mask_f):
    # x: (B, T, C) f32; w_all: (depth*K, C, C) bf16; *_all: (depth, 1, C) f32
    # returns (B, T, C) bf16
    B, T, C = x.shape
    depth = b_all.shape[0]
    K = w_all.shape[0] // depth
    pad = (K - 1) // 2

    block_bytes = (T * C * 4                 # x row (f32)
                   + depth * K * C * C * 2   # weights (bf16)
                   + 3 * depth * C * 4       # bias / gamma / beta
                   + T * 4                   # mask
                   + T * C * 2)              # out row (bf16)
    scratch_bytes = (T + 2 * pad) * C * 2
    vmem = _vmem_budget(block_bytes, scratch_bytes)

    def run(single_buffer):
        return pl.pallas_call(
            conv_stack_kernel,
            out_shape=jax.ShapeDtypeStruct((B, T, C), jnp.bfloat16),
            grid=(B,),
            in_specs=[
                pl.BlockSpec((None, T, C), lambda i: (i, 0, 0)),
                _wspec((depth * K, C, C), lambda i: (0, 0, 0), single_buffer),
                _wspec((depth, 1, C), lambda i: (0, 0, 0), single_buffer),
                _wspec((depth, 1, C), lambda i: (0, 0, 0), single_buffer),
                _wspec((depth, 1, C), lambda i: (0, 0, 0), single_buffer),
                pl.BlockSpec((None, T, 1), lambda i: (i, 0, 0)),
            ],
            out_specs=pl.BlockSpec((None, T, C), lambda i: (i, 0, 0)),
            scratch_shapes=[pltpu.VMEM((T + 2 * pad, C), jnp.bfloat16)],
            compiler_params=pltpu.CompilerParams(
                dimension_semantics=("parallel",),
                vmem_limit_bytes=vmem),
        )(x, w_all, b_all, gamma_all, beta_all, mask_f)

    try:
        return run(True)
    except Exception:
        # pipeline_mode=pl.Buffered(1) not supported on this build; fall back
        # to default double-buffering (correctness identical).
        return run(False)


# ---------------------------------------------------------------------------
# Bidirectional LSTM kernel (pack_padded_sequence semantics):
#   * fused bf16 input projection for both directions (one big MXU matmul)
#   * ONE block-diagonal recurrent matmul per timestep (fwd + bwd fused)
#   * per-step masked stores straight into o_ref (no hidden-state scratch)
#   * forward/backward state only updates where t < len; output is zero at
#     t >= len (== pad_packed + masked_fill for the length-derived mask).
# ---------------------------------------------------------------------------
def lstm_kernel(len_ref, x_ref, wih_ref, whh_ref, b_ref, o_ref, xg_s):
    # len_ref : (B_blk, 1) int32
    # x_ref   : (T, B_blk, C) bf16       time-major input block
    # wih_ref : (C, 8H) bf16             [fwd gates | bwd gates]
    # whh_ref : (2H, 8H) bf16            block-diag [[Whh_f, 0], [0, Whh_b]]
    # b_ref   : (1, 8H) f32              combined (b_ih + b_hh) both dirs
    # o_ref   : (T, B_blk, 2H) f32
    # xg_s    : (T*B_blk, 8H) bf16       precomputed input projections
    T, B_blk, C = x_ref.shape
    H = whh_ref.shape[0] // 2
    G = 4 * H

    # Fused input projection for both directions: one big MXU matmul.
    xv = x_ref[...].reshape(T * B_blk, C)            # bf16 already
    xg_s[...] = (jnp.dot(xv, wih_ref[...],
                         preferred_element_type=jnp.float32)
                 + b_ref[...]).astype(jnp.bfloat16)

    lens = len_ref[...]                              # (B_blk, 1) int32

    def gates_to_hc(g, c_prev):
        i = jax.nn.sigmoid(g[:, 0:H])
        f = jax.nn.sigmoid(g[:, H:2 * H])
        gg = jnp.tanh(g[:, 2 * H:3 * H])
        o = jax.nn.sigmoid(g[:, 3 * H:4 * H])
        c_new = f * c_prev + i * gg
        return o * jnp.tanh(c_new), c_new

    def step(t, carry):
        hf, cf, hb, cb = carry                       # each (B_blk, H) f32
        tb = T - 1 - t
        rf = pl.multiple_of(t * B_blk, 8)            # B_blk is a multiple of 8
        rb = pl.multiple_of(tb * B_blk, 8)

        # One MXU push per step: block-diagonal fwd+bwd recurrent matmul.
        lhs = jnp.concatenate([hf, hb], axis=-1).astype(jnp.bfloat16)
        rec = jnp.dot(lhs, whh_ref[...],
                      preferred_element_type=jnp.float32)   # (B_blk, 8H)

        gf = xg_s[pl.ds(rf, B_blk), 0:G].astype(jnp.float32) + rec[:, 0:G]
        gb = xg_s[pl.ds(rb, B_blk), G:2 * G].astype(jnp.float32) + rec[:, G:2 * G]

        hf_n, cf_n = gates_to_hc(gf, cf)
        hb_n, cb_n = gates_to_hc(gb, cb)

        vf = t < lens                                # (B_blk, 1) bool
        vb = tb < lens

        # Store masked hidden states straight into the output block.
        o_ref[t, :, 0:H] = jnp.where(vf, hf_n, 0.0)
        o_ref[tb, :, H:2 * H] = jnp.where(vb, hb_n, 0.0)

        return (jnp.where(vf, hf_n, hf), jnp.where(vf, cf_n, cf),
                jnp.where(vb, hb_n, hb), jnp.where(vb, cb_n, cb))

    z = jnp.zeros((B_blk, H), jnp.float32)
    lax.fori_loop(0, T, step, (z, z, z, z), unroll=2)


def bilstm(x, lengths, lstm_params):
    # x: (B, T, C) bf16; lengths: (B,) int32
    # returns (T, B, 2H) f32 (time-major)
    B, T, C = x.shape
    H = C // 2
    wih_cat, whh_blk, b_cat = lstm_params

    # Batch block: multiple of 8 (sublane-aligned dynamic offsets), capped at
    # 16 so e.g. B=32 gives grid=2 to fill both v7x TensorCores.
    B_blk = min(16, ((B + 7) // 8) * 8)
    Bp = ((B + B_blk - 1) // B_blk) * B_blk
    if Bp != B:
        padn = Bp - B
        x = jnp.pad(x, ((0, padn), (0, 0), (0, 0)))
        lengths = jnp.pad(lengths, (0, padn))        # padded rows: len 0

    xt = jnp.transpose(x, (1, 0, 2))                 # (T, Bp, C) time-major
    lens2 = lengths.astype(jnp.int32).reshape(Bp, 1)

    block_bytes = (B_blk * 4                         # lengths
                   + T * B_blk * C * 2               # x block (bf16)
                   + C * 8 * H * 2                   # wih (bf16)
                   + 2 * H * 8 * H * 2               # whh block-diag (bf16)
                   + 8 * H * 4                       # bias
                   + T * B_blk * 2 * H * 4)          # out block (f32)
    scratch_bytes = T * B_blk * 8 * H * 2            # xg_s (bf16)
    vmem = _vmem_budget(block_bytes, scratch_bytes)

    def run(single_buffer):
        return pl.pallas_call(
            lstm_kernel,
            out_shape=jax.ShapeDtypeStruct((T, Bp, 2 * H), jnp.float32),
            grid=(Bp // B_blk,),
            in_specs=[
                pl.BlockSpec((B_blk, 1), lambda i: (i, 0)),
                pl.BlockSpec((T, B_blk, C), lambda i: (0, i, 0)),
                _wspec((C, 8 * H), lambda i: (0, 0), single_buffer),
                _wspec((2 * H, 8 * H), lambda i: (0, 0), single_buffer),
                _wspec((1, 8 * H), lambda i: (0, 0), single_buffer),
            ],
            out_specs=pl.BlockSpec((T, B_blk, 2 * H), lambda i: (0, i, 0)),
            scratch_shapes=[pltpu.VMEM((T * B_blk, 8 * H), jnp.bfloat16)],
            compiler_params=pltpu.CompilerParams(
                dimension_semantics=("parallel",),
                vmem_limit_bytes=vmem),
        )(lens2, xt, wih_cat, whh_blk, b_cat)

    try:
        out = run(True)
    except Exception:
        out = run(False)
    return out[:, :B, :]


# ---------------------------------------------------------------------------
# Parameter setup (deterministic, synthetic)
# ---------------------------------------------------------------------------
def make_params(key, n_symbols, channels, kernel_size, depth):
    C, K, H = channels, kernel_size, channels // 2
    keys = jax.random.split(key, 3 + depth)

    embedding = jax.random.normal(keys[0], (n_symbols, C), jnp.float32)

    w_list, b_list, g_list, beta_list = [], [], [], []
    for d in range(depth):
        k1, k2, k3 = jax.random.split(keys[1 + d], 3)
        v = jax.random.normal(k1, (C, C, K), jnp.float32) * 0.1   # [out,in,k]
        g = jax.random.uniform(k2, (C,), jnp.float32, 0.5, 1.5)
        norm = jnp.sqrt(jnp.sum(v * v, axis=(1, 2), keepdims=True))
        w = g[:, None, None] * v / norm                 # weight_norm (dim=0)
        b = jax.random.normal(k3, (C,), jnp.float32) * 0.1
        w_list.append(jnp.transpose(w, (2, 1, 0)))      # (K, C_in, C_out)
        b_list.append(b.reshape(1, C))
        g_list.append(jnp.ones((1, C), jnp.float32))    # LayerNorm init
        beta_list.append(jnp.zeros((1, C), jnp.float32))

    conv = {
        "w": jnp.concatenate(w_list, axis=0).astype(jnp.bfloat16),  # (depth*K,C,C)
        "b": jnp.stack(b_list),                                     # (depth,1,C)
        "gamma": jnp.stack(g_list),
        "beta": jnp.stack(beta_list),
    }

    def lstm_dir(k):
        k1, k2, k3, k4 = jax.random.split(k, 4)
        wih = jax.random.normal(k1, (4 * H, C), jnp.float32) * 0.1
        whh = jax.random.normal(k2, (4 * H, H), jnp.float32) * 0.1
        bih = jax.random.normal(k3, (4 * H,), jnp.float32) * 0.1
        bhh = jax.random.normal(k4, (4 * H,), jnp.float32) * 0.1
        return wih.T, whh.T, (bih + bhh).reshape(1, 4 * H)

    wihf, whhf, bf_ = lstm_dir(keys[1 + depth])
    wihb, whhb, bb_ = lstm_dir(keys[2 + depth])

    # Block-diagonal recurrent weight: one MXU matmul serves both directions.
    whh_blk = jnp.zeros((2 * H, 8 * H), jnp.float32)
    whh_blk = whh_blk.at[0:H, 0:4 * H].set(whhf)
    whh_blk = whh_blk.at[H:2 * H, 4 * H:8 * H].set(whhb)

    lstm = {
        "wih": jnp.concatenate([wihf, wihb], axis=1).astype(jnp.bfloat16),  # (C,8H)
        "whh": whh_blk.astype(jnp.bfloat16),                                # (2H,8H)
        "b": jnp.concatenate([bf_, bb_], axis=1),                           # (1,8H)
    }
    return {"embedding": embedding, "conv": conv, "lstm": lstm}


# ---------------------------------------------------------------------------
# Full forward
# ---------------------------------------------------------------------------
def text_encoder_forward(tokens, input_lengths, m, params):
    # tokens: (B, T) int32, input_lengths: (B,) int32, m: (B, T) bool
    # returns: (B, C, T) float32   (matches PyTorch output layout)
    mask_f = m.astype(jnp.float32)[..., None]            # (B, T, 1)

    x = params["embedding"][tokens]                      # (B, T, C)
    x = x * (1.0 - mask_f)                               # masked_fill(m, 0)

    cp = params["conv"]
    x = conv_stack(x, cp["w"], cp["b"], cp["gamma"], cp["beta"], mask_f)

    lp = params["lstm"]
    out_tm = bilstm(x, input_lengths.astype(jnp.int32),
                    (lp["wih"], lp["whh"], lp["b"]))
    # (T, B, 2H) -> (B, 2H, T) == (B, C, T)
    return jnp.transpose(out_tm, (1, 2, 0))


if __name__ == "__main__":
    B, T = 2, 16
    channels, kernel_size, depth, n_symbols = 32, 5, 3, 10

    key = jax.random.PRNGKey(0)
    k_tok, k_par = jax.random.split(key)

    tokens = jax.random.randint(k_tok, (B, T), 0, n_symbols, jnp.int32)
    input_lengths = jnp.array([16, 11], jnp.int32)
    # length_to_mask semantics: True where position index >= length
    m = jnp.arange(T)[None, :] >= input_lengths[:, None]

    params = make_params(k_par, n_symbols, channels, kernel_size, depth)

    out = text_encoder_forward(tokens, input_lengths, m, params)
    out = jax.block_until_ready(out)
    assert out.shape == (B, channels, T)
    print("KERNEL_OK")
</pallas_src>

<mosaic_0001>
module attributes {stable_mosaic.version = 11 : i64} {
  func.func @conv_stack_kernel(%arg0: i32, %arg1: memref<1x16x32xf32, #tpu.memory_space<vmem>>, %arg2: memref<15x32x32xbf16, #tpu.memory_space<vmem>>, %arg3: memref<3x1x32xf32, #tpu.memory_space<vmem>>, %arg4: memref<3x1x32xf32, #tpu.memory_space<vmem>>, %arg5: memref<3x1x32xf32, #tpu.memory_space<vmem>>, %arg6: memref<1x16x1xf32, #tpu.memory_space<vmem>>, %arg7: memref<1x16x32xbf16, #tpu.memory_space<vmem>>, %arg8: memref<20x32xbf16, #tpu.memory_space<vmem>>) attributes {dimension_semantics = [#tpu.dimension_semantics<parallel>], iteration_bounds = array<i64: 2>, scalar_prefetch = 0 : i64, scratch_operands = 1 : i64, tpu.core_type = #tpu.core_type<tc>, window_params = [{transform_indices = @transform_0, window_bounds = array<i64: 1, 16, 32>}, {pipeline_mode = #tpu.pipeline_mode<synchronous>, transform_indices = @transform_1, window_bounds = array<i64: 15, 32, 32>}, {pipeline_mode = #tpu.pipeline_mode<synchronous>, transform_indices = @transform_2, window_bounds = array<i64: 3, 1, 32>}, {pipeline_mode = #tpu.pipeline_mode<synchronous>, transform_indices = @transform_3, window_bounds = array<i64: 3, 1, 32>}, {pipeline_mode = #tpu.pipeline_mode<synchronous>, transform_indices = @transform_4, window_bounds = array<i64: 3, 1, 32>}, {transform_indices = @transform_5, window_bounds = array<i64: 1, 16, 1>}, {transform_indices = @transform_6, window_bounds = array<i64: 1, 16, 32>}]} {
    %cst = arith.constant 0.000000e+00 : bf16
    %0 = vector.broadcast %cst : bf16 to vector<2x32xbf16>
    %c0 = arith.constant 0 : index
    %c0_0 = arith.constant 0 : index
    %1 = vector.load %arg8[%c0, %c0_0] : memref<20x32xbf16, #tpu.memory_space<vmem>>, vector<2x32xbf16>
    tpu.vector_store %arg8[%c0, %c0_0], %0 {strides = array<i32>} : memref<20x32xbf16, #tpu.memory_space<vmem>>, vector<2x32xbf16>,
    %cst_1 = arith.constant 0.000000e+00 : bf16
    %2 = vector.broadcast %cst_1 : bf16 to vector<2x32xbf16>
    %c18 = arith.constant 18 : index
    %c0_2 = arith.constant 0 : index
    %3 = vector.load %arg8[%c18, %c0_2] : memref<20x32xbf16, #tpu.memory_space<vmem>>, vector<2x32xbf16>
    tpu.vector_store %arg8[%c18, %c0_2], %2 {strides = array<i32>} : memref<20x32xbf16, #tpu.memory_space<vmem>>, vector<2x32xbf16>,
    %c0_3 = arith.constant 0 : index
    %c0_4 = arith.constant 0 : index
    %c0_5 = arith.constant 0 : index
    %4 = vector.load %arg6[%c0_3, %c0_4, %c0_5] : memref<1x16x1xf32, #tpu.memory_space<vmem>>, vector<1x16x1xf32>
    %5 = vector.shape_cast %4 : vector<1x16x1xf32> to vector<16x1xf32>
    %cst_6 = arith.constant 1.000000e+00 : f32
    %6 = vector.broadcast %cst_6 : f32 to vector<16x1xf32>
    %7 = arith.subf %6, %5 : vector<16x1xf32>
    %c0_7 = arith.constant 0 : index
    %c0_8 = arith.constant 0 : index
    %c0_9 = arith.constant 0 : index
    %8 = vector.load %arg1[%c0_7, %c0_8, %c0_9] : memref<1x16x32xf32, #tpu.memory_space<vmem>>, vector<1x16x32xf32>
    %9 = vector.shape_cast %8 : vector<1x16x32xf32> to vector<16x32xf32>
    %10 = arith.truncf %9 : vector<16x32xf32> to vector<16x32xbf16>
    %c2 = arith.constant 2 : index
    %c0_10 = arith.constant 0 : index
    %11 = vector.load %arg8[%c2, %c0_10] : memref<20x32xbf16, #tpu.memory_space<vmem>>, vector<16x32xbf16>
    tpu.vector_store %arg8[%c2, %c0_10], %10 {strides = array<i32>} : memref<20x32xbf16, #tpu.memory_space<vmem>>, vector<16x32xbf16>,
    %c0_11 = arith.constant 0 : index
    %c0_12 = arith.constant 0 : index
    %12 = vector.load %arg8[%c0_11, %c0_12] : memref<20x32xbf16, #tpu.memory_space<vmem>>, vector<20x32xbf16>
    %cst_13 = arith.constant 0.000000e+00 : f32
    %13 = vector.broadcast %cst_13 : f32 to vector<16x32xf32>
    %14 = vector.extract_strided_slice %12 {offsets = [0, 0], sizes = [16, 32], strides = [1, 1]} : vector<20x32xbf16> to vector<16x32xbf16>
    %c0_14 = arith.constant 0 : index
    %c0_15 = arith.constant 0 : index
    %c0_16 = arith.constant 0 : index
    %15 = vector.load %arg2[%c0_14, %c0_15, %c0_16] : memref<15x32x32xbf16, #tpu.memory_space<vmem>>, vector<1x32x32xbf16>
    %16 = vector.shape_cast %15 : vector<1x32x32xbf16> to vector<32x32xbf16>
    %cst_17 = arith.constant dense<0.000000e+00> : vector<16x32xf32>
    %17 = tpu.matmul %14, %16, %cst_17 {dimension_numbers = #tpu.dot_dimension_numbers<[1], [0], [0], [1], [0, 0, 1, 1], [], []>} : vector<16x32xbf16>, vector<32x32xbf16>, vector<16x32xf32> -> vector<16x32xf32>
    %18 = arith.addf %13, %17 : vector<16x32xf32>
    %19 = vector.extract_strided_slice %12 {offsets = [1, 0], sizes = [16, 32], strides = [1, 1]} : vector<20x32xbf16> to vector<16x32xbf16>
    %c1 = arith.constant 1 : index
    %c0_18 = arith.constant 0 : index
    %c0_19 = arith.constant 0 : index
    %20 = vector.load %arg2[%c1, %c0_18, %c0_19] : memref<15x32x32xbf16, #tpu.memory_space<vmem>>, vector<1x32x32xbf16>
    %21 = vector.shape_cast %20 : vector<1x32x32xbf16> to vector<32x32xbf16>
    %cst_20 = arith.constant dense<0.000000e+00> : vector<16x32xf32>
    %22 = tpu.matmul %19, %21, %cst_20 {dimension_numbers = #tpu.dot_dimension_numbers<[1], [0], [0], [1], [0, 0, 1, 1], [], []>} : vector<16x32xbf16>, vector<32x32xbf16>, vector<16x32xf32> -> vector<16x32xf32>
    %23 = arith.addf %18, %22 : vector<16x32xf32>
    %24 = vector.extract_strided_slice %12 {offsets = [2, 0], sizes = [16, 32], strides = [1, 1]} : vector<20x32xbf16> to vector<16x32xbf16>
    %c2_21 = arith.constant 2 : index
    %c0_22 = arith.constant 0 : index
    %c0_23 = arith.constant 0 : index
    %25 = vector.load %arg2[%c2_21, %c0_22, %c0_23] : memref<15x32x32xbf16, #tpu.memory_space<vmem>>, vector<1x32x32xbf16>
    %26 = vector.shape_cast %25 : vector<1x32x32xbf16> to vector<32x32xbf16>
    %cst_24 = arith.constant dense<0.000000e+00> : vector<16x32xf32>
    %27 = tpu.matmul %24, %26, %cst_24 {dimension_numbers = #tpu.dot_dimension_numbers<[1], [0], [0], [1], [0, 0, 1, 1], [], []>} : vector<16x32xbf16>, vector<32x32xbf16>, vector<16x32xf32> -> vector<16x32xf32>
    %28 = arith.addf %23, %27 : vector<16x32xf32>
    %29 = vector.extract_strided_slice %12 {offsets = [3, 0], sizes = [16, 32], strides = [1, 1]} : vector<20x32xbf16> to vector<16x32xbf16>
    %c3 = arith.constant 3 : index
    %c0_25 = arith.constant 0 : index
    %c0_26 = arith.constant 0 : index
    %30 = vector.load %arg2[%c3, %c0_25, %c0_26] : memref<15x32x32xbf16, #tpu.memory_space<vmem>>, vector<1x32x32xbf16>
    %31 = vector.shape_cast %30 : vector<1x32x32xbf16> to vector<32x32xbf16>
    %cst_27 = arith.constant dense<0.000000e+00> : vector<16x32xf32>
    %32 = tpu.matmul %29, %31, %cst_27 {dimension_numbers = #tpu.dot_dimension_numbers<[1], [0], [0], [1], [0, 0, 1, 1], [], []>} : vector<16x32xbf16>, vector<32x32xbf16>, vector<16x32xf32> -> vector<16x32xf32>
    %33 = arith.addf %28, %32 : vector<16x32xf32>
    %34 = vector.extract_strided_slice %12 {offsets = [4, 0], sizes = [16, 32], strides = [1, 1]} : vector<20x32xbf16> to vector<16x32xbf16>
    %c4 = arith.constant 4 : index
    %c0_28 = arith.constant 0 : index
    %c0_29 = arith.constant 0 : index
    %35 = vector.load %arg2[%c4, %c0_28, %c0_29] : memref<15x32x32xbf16, #tpu.memory_space<vmem>>, vector<1x32x32xbf16>
    %36 = vector.shape_cast %35 : vector<1x32x32xbf16> to vector<32x32xbf16>
    %cst_30 = arith.constant dense<0.000000e+00> : vector<16x32xf32>
    %37 = tpu.matmul %34, %36, %cst_30 {dimension_numbers = #tpu.dot_dimension_numbers<[1], [0], [0], [1], [0, 0, 1, 1], [], []>} : vector<16x32xbf16>, vector<32x32xbf16>, vector<16x32xf32> -> vector<16x32xf32>
    %38 = arith.addf %33, %37 : vector<16x32xf32>
    %c0_31 = arith.constant 0 : index
    %c0_32 = arith.constant 0 : index
    %c0_33 = arith.constant 0 : index
    %39 = vector.load %arg3[%c0_31, %c0_32, %c0_33] : memref<3x1x32xf32, #tpu.memory_space<vmem>>, vector<1x1x32xf32>
    %40 = vector.shape_cast %39 : vector<1x1x32xf32> to vector<1x32xf32>
    %41 = vector.broadcast %40 : vector<1x32xf32> to vector<16x32xf32>
    %42 = arith.addf %38, %41 : vector<16x32xf32>
    %cst_34 = arith.constant dense<0.000000e+00> : vector<16xf32>
    %43 = vector.multi_reduction <add>, %42, %cst_34 [1] : vector<16x32xf32> to vector<16xf32>
    %44 = vector.shape_cast %43 : vector<16xf32> to vector<16x1xf32>
    %cst_35 = arith.constant 3.200000e+01 : f32
    %45 = vector.broadcast %cst_35 : f32 to vector<16x1xf32>
    %46 = arith.divf %44, %45 : vector<16x1xf32>
    %47 = vector.broadcast %46 : vector<16x1xf32> to vector<16x32xf32>
    %48 = arith.subf %42, %47 : vector<16x32xf32>
    %49 = arith.mulf %48, %48 : vector<16x32xf32>
    %cst_36 = arith.constant dense<0.000000e+00> : vector<16xf32>
    %50 = vector.multi_reduction <add>, %49, %cst_36 [1] : vector<16x32xf32> to vector<16xf32>
    %51 = vector.shape_cast %50 : vector<16xf32> to vector<16x1xf32>
    %cst_37 = arith.constant 3.200000e+01 : f32
    %52 = vector.broadcast %cst_37 : f32 to vector<16x1xf32>
    %53 = arith.divf %51, %52 : vector<16x1xf32>
    %54 = vector.broadcast %46 : vector<16x1xf32> to vector<16x32xf32>
    %55 = arith.subf %42, %54 : vector<16x32xf32>
    %cst_38 = arith.constant 9.99999974E-6 : f32
    %56 = vector.broadcast %cst_38 : f32 to vector<16x1xf32>
    %57 = arith.addf %53, %56 : vector<16x1xf32>
    %58 = math.rsqrt %57 : vector<16x1xf32>
    %59 = vector.broadcast %58 : vector<16x1xf32> to vector<16x32xf32>
    %60 = arith.mulf %55, %59 : vector<16x32xf32>
    %c0_39 = arith.constant 0 : index
    %c0_40 = arith.constant 0 : index
    %c0_41 = arith.constant 0 : index
    %61 = vector.load %arg4[%c0_39, %c0_40, %c0_41] : memref<3x1x32xf32, #tpu.memory_space<vmem>>, vector<1x1x32xf32>
    %62 = vector.shape_cast %61 : vector<1x1x32xf32> to vector<1x32xf32>
    %63 = vector.broadcast %62 : vector<1x32xf32> to vector<16x32xf32>
    %64 = arith.mulf %60, %63 : vector<16x32xf32>
    %c0_42 = arith.constant 0 : index
    %c0_43 = arith.constant 0 : index
    %c0_44 = arith.constant 0 : index
    %65 = vector.load %arg5[%c0_42, %c0_43, %c0_44] : memref<3x1x32xf32, #tpu.memory_space<vmem>>, vector<1x1x32xf32>
    %66 = vector.shape_cast %65 : vector<1x1x32xf32> to vector<1x32xf32>
    %67 = vector.broadcast %66 : vector<1x32xf32> to vector<16x32xf32>
    %68 = arith.addf %64, %67 : vector<16x32xf32>
    %cst_45 = arith.constant 0.000000e+00 : f32
    %69 = vector.broadcast %cst_45 : f32 to vector<16x32xf32>
    %70 = arith.cmpf ogt, %68, %69 : vector<16x32xf32>
    %cst_46 = arith.constant 2.000000e-01 : f32
    %71 = vector.broadcast %cst_46 : f32 to vector<16x32xf32>
    %72 = arith.mulf %71, %68 : vector<16x32xf32>
    %73 = arith.select %70, %68, %72 : vector<16x32xi1>, vector<16x32xf32>
    %74 = vector.broadcast %7 : vector<16x1xf32> to vector<16x32xf32>
    %75 = arith.mulf %73, %74 : vector<16x32xf32>
    %76 = arith.truncf %75 : vector<16x32xf32> to vector<16x32xbf16>
    %c2_47 = arith.constant 2 : index
    %c0_48 = arith.constant 0 : index
    %77 = vector.load %arg8[%c2_47, %c0_48] : memref<20x32xbf16, #tpu.memory_space<vmem>>, vector<16x32xbf16>
    tpu.vector_store %arg8[%c2_47, %c0_48], %76 {strides = array<i32>} : memref<20x32xbf16, #tpu.memory_space<vmem>>, vector<16x32xbf16>,
    %c0_49 = arith.constant 0 : index
    %c0_50 = arith.constant 0 : index
    %78 = vector.load %arg8[%c0_49, %c0_50] : memref<20x32xbf16, #tpu.memory_space<vmem>>, vector<20x32xbf16>
    %cst_51 = arith.constant 0.000000e+00 : f32
    %79 = vector.broadcast %cst_51 : f32 to vector<16x32xf32>
    %80 = vector.extract_strided_slice %78 {offsets = [0, 0], sizes = [16, 32], strides = [1, 1]} : vector<20x32xbf16> to vector<16x32xbf16>
    %c5 = arith.constant 5 : index
    %c0_52 = arith.constant 0 : index
    %c0_53 = arith.constant 0 : index
    %81 = vector.load %arg2[%c5, %c0_52, %c0_53] : memref<15x32x32xbf16, #tpu.memory_space<vmem>>, vector<1x32x32xbf16>
    %82 = vector.shape_cast %81 : vector<1x32x32xbf16> to vector<32x32xbf16>
    %cst_54 = arith.constant dense<0.000000e+00> : vector<16x32xf32>
    %83 = tpu.matmul %80, %82, %cst_54 {dimension_numbers = #tpu.dot_dimension_numbers<[1], [0], [0], [1], [0, 0, 1, 1], [], []>} : vector<16x32xbf16>, vector<32x32xbf16>, vector<16x32xf32> -> vector<16x32xf32>
    %84 = arith.addf %79, %83 : vector<16x32xf32>
    %85 = vector.extract_strided_slice %78 {offsets = [1, 0], sizes = [16, 32], strides = [1, 1]} : vector<20x32xbf16> to vector<16x32xbf16>
    %c6 = arith.constant 6 : index
    %c0_55 = arith.constant 0 : index
    %c0_56 = arith.constant 0 : index
    %86 = vector.load %arg2[%c6, %c0_55, %c0_56] : memref<15x32x32xbf16, #tpu.memory_space<vmem>>, vector<1x32x32xbf16>
    %87 = vector.shape_cast %86 : vector<1x32x32xbf16> to vector<32x32xbf16>
    %cst_57 = arith.constant dense<0.000000e+00> : vector<16x32xf32>
    %88 = tpu.matmul %85, %87, %cst_57 {dimension_numbers = #tpu.dot_dimension_numbers<[1], [0], [0], [1], [0, 0, 1, 1], [], []>} : vector<16x32xbf16>, vector<32x32xbf16>, vector<16x32xf32> -> vector<16x32xf32>
    %89 = arith.addf %84, %88 : vector<16x32xf32>
    %90 = vector.extract_strided_slice %78 {offsets = [2, 0], sizes = [16, 32], strides = [1, 1]} : vector<20x32xbf16> to vector<16x32xbf16>
    %c7 = arith.constant 7 : index
    %c0_58 = arith.constant 0 : index
    %c0_59 = arith.constant 0 : index
    %91 = vector.load %arg2[%c7, %c0_58, %c0_59] : memref<15x32x32xbf16, #tpu.memory_space<vmem>>, vector<1x32x32xbf16>
    %92 = vector.shape_cast %91 : vector<1x32x32xbf16> to vector<32x32xbf16>
    %cst_60 = arith.constant dense<0.000000e+00> : vector<16x32xf32>
    %93 = tpu.matmul %90, %92, %cst_60 {dimension_numbers = #tpu.dot_dimension_numbers<[1], [0], [0], [1], [0, 0, 1, 1], [], []>} : vector<16x32xbf16>, vector<32x32xbf16>, vector<16x32xf32> -> vector<16x32xf32>
    %94 = arith.addf %89, %93 : vector<16x32xf32>
    %95 = vector.extract_strided_slice %78 {offsets = [3, 0], sizes = [16, 32], strides = [1, 1]} : vector<20x32xbf16> to vector<16x32xbf16>
    %c8 = arith.constant 8 : index
    %c0_61 = arith.constant 0 : index
    %c0_62 = arith.constant 0 : index
    %96 = vector.load %arg2[%c8, %c0_61, %c0_62] : memref<15x32x32xbf16, #tpu.memory_space<vmem>>, vector<1x32x32xbf16>
    %97 = vector.shape_cast %96 : vector<1x32x32xbf16> to vector<32x32xbf16>
    %cst_63 = arith.constant dense<0.000000e+00> : vector<16x32xf32>
    %98 = tpu.matmul %95, %97, %cst_63 {dimension_numbers = #tpu.dot_dimension_numbers<[1], [0], [0], [1], [0, 0, 1, 1], [], []>} : vector<16x32xbf16>, vector<32x32xbf16>, vector<16x32xf32> -> vector<16x32xf32>
    %99 = arith.addf %94, %98 : vector<16x32xf32>
    %100 = vector.extract_strided_slice %78 {offsets = [4, 0], sizes = [16, 32], strides = [1, 1]} : vector<20x32xbf16> to vector<16x32xbf16>
    %c9 = arith.constant 9 : index
    %c0_64 = arith.constant 0 : index
    %c0_65 = arith.constant 0 : index
    %101 = vector.load %arg2[%c9, %c0_64, %c0_65] : memref<15x32x32xbf16, #tpu.memory_space<vmem>>, vector<1x32x32xbf16>
    %102 = vector.shape_cast %101 : vector<1x32x32xbf16> to vector<32x32xbf16>
    %cst_66 = arith.constant dense<0.000000e+00> : vector<16x32xf32>
    %103 = tpu.matmul %100, %102, %cst_66 {dimension_numbers = #tpu.dot_dimension_numbers<[1], [0], [0], [1], [0, 0, 1, 1], [], []>} : vector<16x32xbf16>, vector<32x32xbf16>, vector<16x32xf32> -> vector<16x32xf32>
    %104 = arith.addf %99, %103 : vector<16x32xf32>
    %c1_67 = arith.constant 1 : index
    %c0_68 = arith.constant 0 : index
    %c0_69 = arith.constant 0 : index
    %105 = vector.load %arg3[%c1_67, %c0_68, %c0_69] : memref<3x1x32xf32, #tpu.memory_space<vmem>>, vector<1x1x32xf32>
    %106 = vector.shape_cast %105 : vector<1x1x32xf32> to vector<1x32xf32>
    %107 = vector.broadcast %106 : vector<1x32xf32> to vector<16x32xf32>
    %108 = arith.addf %104, %107 : vector<16x32xf32>
    %cst_70 = arith.constant dense<0.000000e+00> : vector<16xf32>
    %109 = vector.multi_reduction <add>, %108, %cst_70 [1] : vector<16x32xf32> to vector<16xf32>
    %110 = vector.shape_cast %109 : vector<16xf32> to vector<16x1xf32>
    %cst_71 = arith.constant 3.200000e+01 : f32
    %111 = vector.broadcast %cst_71 : f32 to vector<16x1xf32>
    %112 = arith.divf %110, %111 : vector<16x1xf32>
    %113 = vector.broadcast %112 : vector<16x1xf32> to vector<16x32xf32>
    %114 = arith.subf %108, %113 : vector<16x32xf32>
    %115 = arith.mulf %114, %114 : vector<16x32xf32>
    %cst_72 = arith.constant dense<0.000000e+00> : vector<16xf32>
    %116 = vector.multi_reduction <add>, %115, %cst_72 [1] : vector<16x32xf32> to vector<16xf32>
    %117 = vector.shape_cast %116 : vector<16xf32> to vector<16x1xf32>
    %cst_73 = arith.constant 3.200000e+01 : f32
    %118 = vector.broadcast %cst_73 : f32 to vector<16x1xf32>
    %119 = arith.divf %117, %118 : vector<16x1xf32>
    %120 = vector.broadcast %112 : vector<16x1xf32> to vector<16x32xf32>
    %121 = arith.subf %108, %120 : vector<16x32xf32>
    %cst_74 = arith.constant 9.99999974E-6 : f32
    %122 = vector.broadcast %cst_74 : f32 to vector<16x1xf32>
    %123 = arith.addf %119, %122 : vector<16x1xf32>
    %124 = math.rsqrt %123 : vector<16x1xf32>
    %125 = vector.broadcast %124 : vector<16x1xf32> to vector<16x32xf32>
    %126 = arith.mulf %121, %125 : vector<16x32xf32>
    %c1_75 = arith.constant 1 : index
    %c0_76 = arith.constant 0 : index
    %c0_77 = arith.constant 0 : index
    %127 = vector.load %arg4[%c1_75, %c0_76, %c0_77] : memref<3x1x32xf32, #tpu.memory_space<vmem>>, vector<1x1x32xf32>
    %128 = vector.shape_cast %127 : vector<1x1x32xf32> to vector<1x32xf32>
    %129 = vector.broadcast %128 : vector<1x32xf32> to vector<16x32xf32>
    %130 = arith.mulf %126, %129 : vector<16x32xf32>
    %c1_78 = arith.constant 1 : index
    %c0_79 = arith.constant 0 : index
    %c0_80 = arith.constant 0 : index
    %131 = vector.load %arg5[%c1_78, %c0_79, %c0_80] : memref<3x1x32xf32, #tpu.memory_space<vmem>>, vector<1x1x32xf32>
    %132 = vector.shape_cast %131 : vector<1x1x32xf32> to vector<1x32xf32>
    %133 = vector.broadcast %132 : vector<1x32xf32> to vector<16x32xf32>
    %134 = arith.addf %130, %133 : vector<16x32xf32>
    %cst_81 = arith.constant 0.000000e+00 : f32
    %135 = vector.broadcast %cst_81 : f32 to vector<16x32xf32>
    %136 = arith.cmpf ogt, %134, %135 : vector<16x32xf32>
    %cst_82 = arith.constant 2.000000e-01 : f32
    %137 = vector.broadcast %cst_82 : f32 to vector<16x32xf32>
    %138 = arith.mulf %137, %134 : vector<16x32xf32>
    %139 = arith.select %136, %134, %138 : vector<16x32xi1>, vector<16x32xf32>
    %140 = vector.broadcast %7 : vector<16x1xf32> to vector<16x32xf32>
    %141 = arith.mulf %139, %140 : vector<16x32xf32>
    %142 = arith.truncf %141 : vector<16x32xf32> to vector<16x32xbf16>
    %c2_83 = arith.constant 2 : index
    %c0_84 = arith.constant 0 : index
    %143 = vector.load %arg8[%c2_83, %c0_84] : memref<20x32xbf16, #tpu.memory_space<vmem>>, vector<16x32xbf16>
    tpu.vector_store %arg8[%c2_83, %c0_84], %142 {strides = array<i32>} : memref<20x32xbf16, #tpu.memory_space<vmem>>, vector<16x32xbf16>,
    %c0_85 = arith.constant 0 : index
    %c0_86 = arith.constant 0 : index
    %144 = vector.load %arg8[%c0_85, %c0_86] : memref<20x32xbf16, #tpu.memory_space<vmem>>, vector<20x32xbf16>
    %cst_87 = arith.constant 0.000000e+00 : f32
    %145 = vector.broadcast %cst_87 : f32 to vector<16x32xf32>
    %146 = vector.extract_strided_slice %144 {offsets = [0, 0], sizes = [16, 32], strides = [1, 1]} : vector<20x32xbf16> to vector<16x32xbf16>
    %c10 = arith.constant 10 : index
    %c0_88 = arith.constant 0 : index
    %c0_89 = arith.constant 0 : index
    %147 = vector.load %arg2[%c10, %c0_88, %c0_89] : memref<15x32x32xbf16, #tpu.memory_space<vmem>>, vector<1x32x32xbf16>
    %148 = vector.shape_cast %147 : vector<1x32x32xbf16> to vector<32x32xbf16>
    %cst_90 = arith.constant dense<0.000000e+00> : vector<16x32xf32>
    %149 = tpu.matmul %146, %148, %cst_90 {dimension_numbers = #tpu.dot_dimension_numbers<[1], [0], [0], [1], [0, 0, 1, 1], [], []>} : vector<16x32xbf16>, vector<32x32xbf16>, vector<16x32xf32> -> vector<16x32xf32>
    %150 = arith.addf %145, %149 : vector<16x32xf32>
    %151 = vector.extract_strided_slice %144 {offsets = [1, 0], sizes = [16, 32], strides = [1, 1]} : vector<20x32xbf16> to vector<16x32xbf16>
    %c11 = arith.constant 11 : index
    %c0_91 = arith.constant 0 : index
    %c0_92 = arith.constant 0 : index
    %152 = vector.load %arg2[%c11, %c0_91, %c0_92] : memref<15x32x32xbf16, #tpu.memory_space<vmem>>, vector<1x32x32xbf16>
    %153 = vector.shape_cast %152 : vector<1x32x32xbf16> to vector<32x32xbf16>
    %cst_93 = arith.constant dense<0.000000e+00> : vector<16x32xf32>
    %154 = tpu.matmul %151, %153, %cst_93 {dimension_numbers = #tpu.dot_dimension_numbers<[1], [0], [0], [1], [0, 0, 1, 1], [], []>} : vector<16x32xbf16>, vector<32x32xbf16>, vector<16x32xf32> -> vector<16x32xf32>
    %155 = arith.addf %150, %154 : vector<16x32xf32>
    %156 = vector.extract_strided_slice %144 {offsets = [2, 0], sizes = [16, 32], strides = [1, 1]} : vector<20x32xbf16> to vector<16x32xbf16>
    %c12 = arith.constant 12 : index
    %c0_94 = arith.constant 0 : index
    %c0_95 = arith.constant 0 : index
    %157 = vector.load %arg2[%c12, %c0_94, %c0_95] : memref<15x32x32xbf16, #tpu.memory_space<vmem>>, vector<1x32x32xbf16>
    %158 = vector.shape_cast %157 : vector<1x32x32xbf16> to vector<32x32xbf16>
    %cst_96 = arith.constant dense<0.000000e+00> : vector<16x32xf32>
    %159 = tpu.matmul %156, %158, %cst_96 {dimension_numbers = #tpu.dot_dimension_numbers<[1], [0], [0], [1], [0, 0, 1, 1], [], []>} : vector<16x32xbf16>, vector<32x32xbf16>, vector<16x32xf32> -> vector<16x32xf32>
    %160 = arith.addf %155, %159 : vector<16x32xf32>
    %161 = vector.extract_strided_slice %144 {offsets = [3, 0], sizes = [16, 32], strides = [1, 1]} : vector<20x32xbf16> to vector<16x32xbf16>
    %c13 = arith.constant 13 : index
    %c0_97 = arith.constant 0 : index
    %c0_98 = arith.constant 0 : index
    %162 = vector.load %arg2[%c13, %c0_97, %c0_98] : memref<15x32x32xbf16, #tpu.memory_space<vmem>>, vector<1x32x32xbf16>
    %163 = vector.shape_cast %162 : vector<1x32x32xbf16> to vector<32x32xbf16>
    %cst_99 = arith.constant dense<0.000000e+00> : vector<16x32xf32>
    %164 = tpu.matmul %161, %163, %cst_99 {dimension_numbers = #tpu.dot_dimension_numbers<[1], [0], [0], [1], [0, 0, 1, 1], [], []>} : vector<16x32xbf16>, vector<32x32xbf16>, vector<16x32xf32> -> vector<16x32xf32>
    %165 = arith.addf %160, %164 : vector<16x32xf32>
    %166 = vector.extract_strided_slice %144 {offsets = [4, 0], sizes = [16, 32], strides = [1, 1]} : vector<20x32xbf16> to vector<16x32xbf16>
    %c14 = arith.constant 14 : index
    %c0_100 = arith.constant 0 : index
    %c0_101 = arith.constant 0 : index
    %167 = vector.load %arg2[%c14, %c0_100, %c0_101] : memref<15x32x32xbf16, #tpu.memory_space<vmem>>, vector<1x32x32xbf16>
    %168 = vector.shape_cast %167 : vector<1x32x32xbf16> to vector<32x32xbf16>
    %cst_102 = arith.constant dense<0.000000e+00> : vector<16x32xf32>
    %169 = tpu.matmul %166, %168, %cst_102 {dimension_numbers = #tpu.dot_dimension_numbers<[1], [0], [0], [1], [0, 0, 1, 1], [], []>} : vector<16x32xbf16>, vector<32x32xbf16>, vector<16x32xf32> -> vector<16x32xf32>
    %170 = arith.addf %165, %169 : vector<16x32xf32>
    %c2_103 = arith.constant 2 : index
    %c0_104 = arith.constant 0 : index
    %c0_105 = arith.constant 0 : index
    %171 = vector.load %arg3[%c2_103, %c0_104, %c0_105] : memref<3x1x32xf32, #tpu.memory_space<vmem>>, vector<1x1x32xf32>
    %172 = vector.shape_cast %171 : vector<1x1x32xf32> to vector<1x32xf32>
    %173 = vector.broadcast %172 : vector<1x32xf32> to vector<16x32xf32>
    %174 = arith.addf %170, %173 : vector<16x32xf32>
    %cst_106 = arith.constant dense<0.000000e+00> : vector<16xf32>
    %175 = vector.multi_reduction <add>, %174, %cst_106 [1] : vector<16x32xf32> to vector<16xf32>
    %176 = vector.shape_cast %175 : vector<16xf32> to vector<16x1xf32>
    %cst_107 = arith.constant 3.200000e+01 : f32
    %177 = vector.broadcast %cst_107 : f32 to vector<16x1xf32>
    %178 = arith.divf %176, %177 : vector<16x1xf32>
    %179 = vector.broadcast %178 : vector<16x1xf32> to vector<16x32xf32>
    %180 = arith.subf %174, %179 : vector<16x32xf32>
    %181 = arith.mulf %180, %180 : vector<16x32xf32>
    %cst_108 = arith.constant dense<0.000000e+00> : vector<16xf32>
    %182 = vector.multi_reduction <add>, %181, %cst_108 [1] : vector<16x32xf32> to vector<16xf32>
    %183 = vector.shape_cast %182 : vector<16xf32> to vector<16x1xf32>
    %cst_109 = arith.constant 3.200000e+01 : f32
    %184 = vector.broadcast %cst_109 : f32 to vector<16x1xf32>
    %185 = arith.divf %183, %184 : vector<16x1xf32>
    %186 = vector.broadcast %178 : vector<16x1xf32> to vector<16x32xf32>
    %187 = arith.subf %174, %186 : vector<16x32xf32>
    %cst_110 = arith.constant 9.99999974E-6 : f32
    %188 = vector.broadcast %cst_110 : f32 to vector<16x1xf32>
    %189 = arith.addf %185, %188 : vector<16x1xf32>
    %190 = math.rsqrt %189 : vector<16x1xf32>
    %191 = vector.broadcast %190 : vector<16x1xf32> to vector<16x32xf32>
    %192 = arith.mulf %187, %191 : vector<16x32xf32>
    %c2_111 = arith.constant 2 : index
    %c0_112 = arith.constant 0 : index
    %c0_113 = arith.constant 0 : index
    %193 = vector.load %arg4[%c2_111, %c0_112, %c0_113] : memref<3x1x32xf32, #tpu.memory_space<vmem>>, vector<1x1x32xf32>
    %194 = vector.shape_cast %193 : vector<1x1x32xf32> to vector<1x32xf32>
    %195 = vector.broadcast %194 : vector<1x32xf32> to vector<16x32xf32>
    %196 = arith.mulf %192, %195 : vector<16x32xf32>
    %c2_114 = arith.constant 2 : index
    %c0_115 = arith.constant 0 : index
    %c0_116 = arith.constant 0 : index
    %197 = vector.load %arg5[%c2_114, %c0_115, %c0_116] : memref<3x1x32xf32, #tpu.memory_space<vmem>>, vector<1x1x32xf32>
    %198 = vector.shape_cast %197 : vector<1x1x32xf32> to vector<1x32xf32>
    %199 = vector.broadcast %198 : vector<1x32xf32> to vector<16x32xf32>
    %200 = arith.addf %196, %199 : vector<16x32xf32>
    %cst_117 = arith.constant 0.000000e+00 : f32
    %201 = vector.broadcast %cst_117 : f32 to vector<16x32xf32>
    %202 = arith.cmpf ogt, %200, %201 : vector<16x32xf32>
    %cst_118 = arith.constant 2.000000e-01 : f32
    %203 = vector.broadcast %cst_118 : f32 to vector<16x32xf32>
    %204 = arith.mulf %203, %200 : vector<16x32xf32>
    %205 = arith.select %202, %200, %204 : vector<16x32xi1>, vector<16x32xf32>
    %206 = vector.broadcast %7 : vector<16x1xf32> to vector<16x32xf32>
    %207 = arith.mulf %205, %206 : vector<16x32xf32>
    %208 = arith.truncf %207 : vector<16x32xf32> to vector<16x32xbf16>
    %c0_119 = arith.constant 0 : index
    %c0_120 = arith.constant 0 : index
    %c0_121 = arith.constant 0 : index
    %209 = vector.load %arg7[%c0_119, %c0_120, %c0_121] : memref<1x16x32xbf16, #tpu.memory_space<vmem>>, vector<1x16x32xbf16>
    %210 = vector.shape_cast %209 : vector<1x16x32xbf16> to vector<16x32xbf16>
    %211 = vector.shape_cast %208 : vector<16x32xbf16> to vector<1x16x32xbf16>
    tpu.vector_store %arg7[%c0_119, %c0_120, %c0_121], %211 {strides = array<i32>} : memref<1x16x32xbf16, #tpu.memory_space<vmem>>, vector<1x16x32xbf16>,
    return
  }
  func.func @transform_0(%arg0: i32) -> (i32, i32, i32) {
    %c0_i32 = arith.constant 0 : i32
    %c0_i32_0 = arith.constant 0 : i32
    %c0_i32_1 = arith.constant 0 : i32
    return %arg0, %c0_i32, %c0_i32_0 : i32, i32, i32
  }
  func.func @transform_1(%arg0: i32) -> (i32, i32, i32) {
    %c0_i32 = arith.constant 0 : i32
    %c0_i32_0 = arith.constant 0 : i32
    %c0_i32_1 = arith.constant 0 : i32
    %c0_i32_2 = arith.constant 0 : i32
    return %c0_i32, %c0_i32_0, %c0_i32_1 : i32, i32, i32
  }
  func.func @transform_2(%arg0: i32) -> (i32, i32, i32) {
    %c0_i32 = arith.constant 0 : i32
    %c0_i32_0 = arith.constant 0 : i32
    %c0_i32_1 = arith.constant 0 : i32
    %c0_i32_2 = arith.constant 0 : i32
    return %c0_i32, %c0_i32_0, %c0_i32_1 : i32, i32, i32
  }
  func.func @transform_3(%arg0: i32) -> (i32, i32, i32) {
    %c0_i32 = arith.constant 0 : i32
    %c0_i32_0 = arith.constant 0 : i32
    %c0_i32_1 = arith.constant 0 : i32
    %c0_i32_2 = arith.constant 0 : i32
    return %c0_i32, %c0_i32_0, %c0_i32_1 : i32, i32, i32
  }
  func.func @transform_4(%arg0: i32) -> (i32, i32, i32) {
    %c0_i32 = arith.constant 0 : i32
    %c0_i32_0 = arith.constant 0 : i32
    %c0_i32_1 = arith.constant 0 : i32
    %c0_i32_2 = arith.constant 0 : i32
    return %c0_i32, %c0_i32_0, %c0_i32_1 : i32, i32, i32
  }
  func.func @transform_5(%arg0: i32) -> (i32, i32, i32) {
    %c0_i32 = arith.constant 0 : i32
    %c0_i32_0 = arith.constant 0 : i32
    %c0_i32_1 = arith.constant 0 : i32
    return %arg0, %c0_i32, %c0_i32_0 : i32, i32, i32
  }
  func.func @transform_6(%arg0: i32) -> (i32, i32, i32) {
    %c0_i32 = arith.constant 0 : i32
    %c0_i32_0 = arith.constant 0 : i32
    %c0_i32_1 = arith.constant 0 : i32
    return %arg0, %c0_i32, %c0_i32_0 : i32, i32, i32
  }
}

module attributes {stable_mosaic.version = 11 : i64} {
  func.func @conv_stack_kernel(%arg0: i32, %arg1: memref<1x16x32xf32, #tpu.memory_space<vmem>>, %arg2: memref<15x32x32xbf16, #tpu.memory_space<vmem>>, %arg3: memref<3x1x32xf32, #tpu.memory_space<vmem>>, %arg4: memref<3x1x32xf32, #tpu.memory_space<vmem>>, %arg5: memref<3x1x32xf32, #tpu.memory_space<vmem>>, %arg6: memref<1x16x1xf32, #tpu.memory_space<vmem>>, %arg7: memref<1x16x32xbf16, #tpu.memory_space<vmem>>, %arg8: memref<20x32xbf16, #tpu.memory_space<vmem>>) attributes {dimension_semantics = [#tpu.dimension_semantics<parallel>], iteration_bounds = array<i64: 2>, scalar_prefetch = 0 : i64, scratch_operands = 1 : i64, tpu.core_type = #tpu.core_type<tc>, window_params = [{transform_indices = @transform_0, window_bounds = array<i64: 1, 16, 32>}, {pipeline_mode = #tpu.pipeline_mode<synchronous>, transform_indices = @transform_1, window_bounds = array<i64: 15, 32, 32>}, {pipeline_mode = #tpu.pipeline_mode<synchronous>, transform_indices = @transform_2, window_bounds = array<i64: 3, 1, 32>}, {pipeline_mode = #tpu.pipeline_mode<synchronous>, transform_indices = @transform_3, window_bounds = array<i64: 3, 1, 32>}, {pipeline_mode = #tpu.pipeline_mode<synchronous>, transform_indices = @transform_4, window_bounds = array<i64: 3, 1, 32>}, {transform_indices = @transform_5, window_bounds = array<i64: 1, 16, 1>}, {transform_indices = @transform_6, window_bounds = array<i64: 1, 16, 32>}]} {
    %cst = arith.constant 0.000000e+00 : bf16
    %0 = vector.broadcast %cst : bf16 to vector<2x32xbf16>
    %c0 = arith.constant 0 : index
    %c0_0 = arith.constant 0 : index
    %1 = vector.load %arg8[%c0, %c0_0] : memref<20x32xbf16, #tpu.memory_space<vmem>>, vector<2x32xbf16>
    tpu.vector_store %arg8[%c0, %c0_0], %0 {strides = array<i32>} : memref<20x32xbf16, #tpu.memory_space<vmem>>, vector<2x32xbf16>,
    %cst_1 = arith.constant 0.000000e+00 : bf16
    %2 = vector.broadcast %cst_1 : bf16 to vector<2x32xbf16>
    %c18 = arith.constant 18 : index
    %c0_2 = arith.constant 0 : index
    %3 = vector.load %arg8[%c18, %c0_2] : memref<20x32xbf16, #tpu.memory_space<vmem>>, vector<2x32xbf16>
    tpu.vector_store %arg8[%c18, %c0_2], %2 {strides = array<i32>} : memref<20x32xbf16, #tpu.memory_space<vmem>>, vector<2x32xbf16>,
    %c0_3 = arith.constant 0 : index
    %c0_4 = arith.constant 0 : index
    %c0_5 = arith.constant 0 : index
    %4 = vector.load %arg6[%c0_3, %c0_4, %c0_5] : memref<1x16x1xf32, #tpu.memory_space<vmem>>, vector<1x16x1xf32>
    %5 = vector.shape_cast %4 : vector<1x16x1xf32> to vector<16x1xf32>
    %cst_6 = arith.constant 1.000000e+00 : f32
    %6 = vector.broadcast %cst_6 : f32 to vector<16x1xf32>
    %7 = arith.subf %6, %5 : vector<16x1xf32>
    %c0_7 = arith.constant 0 : index
    %c0_8 = arith.constant 0 : index
    %c0_9 = arith.constant 0 : index
    %8 = vector.load %arg1[%c0_7, %c0_8, %c0_9] : memref<1x16x32xf32, #tpu.memory_space<vmem>>, vector<1x16x32xf32>
    %9 = vector.shape_cast %8 : vector<1x16x32xf32> to vector<16x32xf32>
    %10 = arith.truncf %9 : vector<16x32xf32> to vector<16x32xbf16>
    %c2 = arith.constant 2 : index
    %c0_10 = arith.constant 0 : index
    %11 = vector.load %arg8[%c2, %c0_10] : memref<20x32xbf16, #tpu.memory_space<vmem>>, vector<16x32xbf16>
    tpu.vector_store %arg8[%c2, %c0_10], %10 {strides = array<i32>} : memref<20x32xbf16, #tpu.memory_space<vmem>>, vector<16x32xbf16>,
    %c0_11 = arith.constant 0 : index
    %c0_12 = arith.constant 0 : index
    %12 = vector.load %arg8[%c0_11, %c0_12] : memref<20x32xbf16, #tpu.memory_space<vmem>>, vector<20x32xbf16>
    %cst_13 = arith.constant 0.000000e+00 : f32
    %13 = vector.broadcast %cst_13 : f32 to vector<16x32xf32>
    %14 = vector.extract_strided_slice %12 {offsets = [0, 0], sizes = [16, 32], strides = [1, 1]} : vector<20x32xbf16> to vector<16x32xbf16>
    %c0_14 = arith.constant 0 : index
    %c0_15 = arith.constant 0 : index
    %c0_16 = arith.constant 0 : index
    %15 = vector.load %arg2[%c0_14, %c0_15, %c0_16] : memref<15x32x32xbf16, #tpu.memory_space<vmem>>, vector<1x32x32xbf16>
    %16 = vector.shape_cast %15 : vector<1x32x32xbf16> to vector<32x32xbf16>
    %cst_17 = arith.constant dense<0.000000e+00> : vector<16x32xf32>
    %17 = tpu.matmul %14, %16, %cst_17 {dimension_numbers = #tpu.dot_dimension_numbers<[1], [0], [0], [1], [0, 0, 1, 1], [], []>} : vector<16x32xbf16>, vector<32x32xbf16>, vector<16x32xf32> -> vector<16x32xf32>
    %18 = arith.addf %13, %17 : vector<16x32xf32>
    %19 = vector.extract_strided_slice %12 {offsets = [1, 0], sizes = [16, 32], strides = [1, 1]} : vector<20x32xbf16> to vector<16x32xbf16>
    %c1 = arith.constant 1 : index
    %c0_18 = arith.constant 0 : index
    %c0_19 = arith.constant 0 : index
    %20 = vector.load %arg2[%c1, %c0_18, %c0_19] : memref<15x32x32xbf16, #tpu.memory_space<vmem>>, vector<1x32x32xbf16>
    %21 = vector.shape_cast %20 : vector<1x32x32xbf16> to vector<32x32xbf16>
    %cst_20 = arith.constant dense<0.000000e+00> : vector<16x32xf32>
    %22 = tpu.matmul %19, %21, %cst_20 {dimension_numbers = #tpu.dot_dimension_numbers<[1], [0], [0], [1], [0, 0, 1, 1], [], []>} : vector<16x32xbf16>, vector<32x32xbf16>, vector<16x32xf32> -> vector<16x32xf32>
    %23 = arith.addf %18, %22 : vector<16x32xf32>
    %24 = vector.extract_strided_slice %12 {offsets = [2, 0], sizes = [16, 32], strides = [1, 1]} : vector<20x32xbf16> to vector<16x32xbf16>
    %c2_21 = arith.constant 2 : index
    %c0_22 = arith.constant 0 : index
    %c0_23 = arith.constant 0 : index
    %25 = vector.load %arg2[%c2_21, %c0_22, %c0_23] : memref<15x32x32xbf16, #tpu.memory_space<vmem>>, vector<1x32x32xbf16>
    %26 = vector.shape_cast %25 : vector<1x32x32xbf16> to vector<32x32xbf16>
    %cst_24 = arith.constant dense<0.000000e+00> : vector<16x32xf32>
    %27 = tpu.matmul %24, %26, %cst_24 {dimension_numbers = #tpu.dot_dimension_numbers<[1], [0], [0], [1], [0, 0, 1, 1], [], []>} : vector<16x32xbf16>, vector<32x32xbf16>, vector<16x32xf32> -> vector<16x32xf32>
    %28 = arith.addf %23, %27 : vector<16x32xf32>
    %29 = vector.extract_strided_slice %12 {offsets = [3, 0], sizes = [16, 32], strides = [1, 1]} : vector<20x32xbf16> to vector<16x32xbf16>
    %c3 = arith.constant 3 : index
    %c0_25 = arith.constant 0 : index
    %c0_26 = arith.constant 0 : index
    %30 = vector.load %arg2[%c3, %c0_25, %c0_26] : memref<15x32x32xbf16, #tpu.memory_space<vmem>>, vector<1x32x32xbf16>
    %31 = vector.shape_cast %30 : vector<1x32x32xbf16> to vector<32x32xbf16>
    %cst_27 = arith.constant dense<0.000000e+00> : vector<16x32xf32>
    %32 = tpu.matmul %29, %31, %cst_27 {dimension_numbers = #tpu.dot_dimension_numbers<[1], [0], [0], [1], [0, 0, 1, 1], [], []>} : vector<16x32xbf16>, vector<32x32xbf16>, vector<16x32xf32> -> vector<16x32xf32>
    %33 = arith.addf %28, %32 : vector<16x32xf32>
    %34 = vector.extract_strided_slice %12 {offsets = [4, 0], sizes = [16, 32], strides = [1, 1]} : vector<20x32xbf16> to vector<16x32xbf16>
    %c4 = arith.constant 4 : index
    %c0_28 = arith.constant 0 : index
    %c0_29 = arith.constant 0 : index
    %35 = vector.load %arg2[%c4, %c0_28, %c0_29] : memref<15x32x32xbf16, #tpu.memory_space<vmem>>, vector<1x32x32xbf16>
    %36 = vector.shape_cast %35 : vector<1x32x32xbf16> to vector<32x32xbf16>
    %cst_30 = arith.constant dense<0.000000e+00> : vector<16x32xf32>
    %37 = tpu.matmul %34, %36, %cst_30 {dimension_numbers = #tpu.dot_dimension_numbers<[1], [0], [0], [1], [0, 0, 1, 1], [], []>} : vector<16x32xbf16>, vector<32x32xbf16>, vector<16x32xf32> -> vector<16x32xf32>
    %38 = arith.addf %33, %37 : vector<16x32xf32>
    %c0_31 = arith.constant 0 : index
    %c0_32 = arith.constant 0 : index
    %c0_33 = arith.constant 0 : index
    %39 = vector.load %arg3[%c0_31, %c0_32, %c0_33] : memref<3x1x32xf32, #tpu.memory_space<vmem>>, vector<1x1x32xf32>
    %40 = vector.shape_cast %39 : vector<1x1x32xf32> to vector<1x32xf32>
    %41 = vector.broadcast %40 : vector<1x32xf32> to vector<16x32xf32>
    %42 = arith.addf %38, %41 : vector<16x32xf32>
    %cst_34 = arith.constant dense<0.000000e+00> : vector<16xf32>
    %43 = vector.multi_reduction <add>, %42, %cst_34 [1] : vector<16x32xf32> to vector<16xf32>
    %44 = vector.shape_cast %43 : vector<16xf32> to vector<16x1xf32>
    %cst_35 = arith.constant 3.200000e+01 : f32
    %45 = vector.broadcast %cst_35 : f32 to vector<16x1xf32>
    %46 = arith.divf %44, %45 : vector<16x1xf32>
    %47 = vector.broadcast %46 : vector<16x1xf32> to vector<16x32xf32>
    %48 = arith.subf %42, %47 : vector<16x32xf32>
    %49 = arith.mulf %48, %48 : vector<16x32xf32>
    %cst_36 = arith.constant dense<0.000000e+00> : vector<16xf32>
    %50 = vector.multi_reduction <add>, %49, %cst_36 [1] : vector<16x32xf32> to vector<16xf32>
    %51 = vector.shape_cast %50 : vector<16xf32> to vector<16x1xf32>
    %cst_37 = arith.constant 3.200000e+01 : f32
    %52 = vector.broadcast %cst_37 : f32 to vector<16x1xf32>
    %53 = arith.divf %51, %52 : vector<16x1xf32>
    %54 = vector.broadcast %46 : vector<16x1xf32> to vector<16x32xf32>
    %55 = arith.subf %42, %54 : vector<16x32xf32>
    %cst_38 = arith.constant 9.99999974E-6 : f32
    %56 = vector.broadcast %cst_38 : f32 to vector<16x1xf32>
    %57 = arith.addf %53, %56 : vector<16x1xf32>
    %58 = math.rsqrt %57 : vector<16x1xf32>
    %59 = vector.broadcast %58 : vector<16x1xf32> to vector<16x32xf32>
    %60 = arith.mulf %55, %59 : vector<16x32xf32>
    %c0_39 = arith.constant 0 : index
    %c0_40 = arith.constant 0 : index
    %c0_41 = arith.constant 0 : index
    %61 = vector.load %arg4[%c0_39, %c0_40, %c0_41] : memref<3x1x32xf32, #tpu.memory_space<vmem>>, vector<1x1x32xf32>
    %62 = vector.shape_cast %61 : vector<1x1x32xf32> to vector<1x32xf32>
    %63 = vector.broadcast %62 : vector<1x32xf32> to vector<16x32xf32>
    %64 = arith.mulf %60, %63 : vector<16x32xf32>
    %c0_42 = arith.constant 0 : index
    %c0_43 = arith.constant 0 : index
    %c0_44 = arith.constant 0 : index
    %65 = vector.load %arg5[%c0_42, %c0_43, %c0_44] : memref<3x1x32xf32, #tpu.memory_space<vmem>>, vector<1x1x32xf32>
    %66 = vector.shape_cast %65 : vector<1x1x32xf32> to vector<1x32xf32>
    %67 = vector.broadcast %66 : vector<1x32xf32> to vector<16x32xf32>
    %68 = arith.addf %64, %67 : vector<16x32xf32>
    %cst_45 = arith.constant 0.000000e+00 : f32
    %69 = vector.broadcast %cst_45 : f32 to vector<16x32xf32>
    %70 = arith.cmpf ogt, %68, %69 : vector<16x32xf32>
    %cst_46 = arith.constant 2.000000e-01 : f32
    %71 = vector.broadcast %cst_46 : f32 to vector<16x32xf32>
    %72 = arith.mulf %71, %68 : vector<16x32xf32>
    %73 = arith.select %70, %68, %72 : vector<16x32xi1>, vector<16x32xf32>
    %74 = vector.broadcast %7 : vector<16x1xf32> to vector<16x32xf32>
    %75 = arith.mulf %73, %74 : vector<16x32xf32>
    %76 = arith.truncf %75 : vector<16x32xf32> to vector<16x32xbf16>
    %c2_47 = arith.constant 2 : index
    %c0_48 = arith.constant 0 : index
    %77 = vector.load %arg8[%c2_47, %c0_48] : memref<20x32xbf16, #tpu.memory_space<vmem>>, vector<16x32xbf16>
    tpu.vector_store %arg8[%c2_47, %c0_48], %76 {strides = array<i32>} : memref<20x32xbf16, #tpu.memory_space<vmem>>, vector<16x32xbf16>,
    %c0_49 = arith.constant 0 : index
    %c0_50 = arith.constant 0 : index
    %78 = vector.load %arg8[%c0_49, %c0_50] : memref<20x32xbf16, #tpu.memory_space<vmem>>, vector<20x32xbf16>
    %cst_51 = arith.constant 0.000000e+00 : f32
    %79 = vector.broadcast %cst_51 : f32 to vector<16x32xf32>
    %80 = vector.extract_strided_slice %78 {offsets = [0, 0], sizes = [16, 32], strides = [1, 1]} : vector<20x32xbf16> to vector<16x32xbf16>
    %c5 = arith.constant 5 : index
    %c0_52 = arith.constant 0 : index
    %c0_53 = arith.constant 0 : index
    %81 = vector.load %arg2[%c5, %c0_52, %c0_53] : memref<15x32x32xbf16, #tpu.memory_space<vmem>>, vector<1x32x32xbf16>
    %82 = vector.shape_cast %81 : vector<1x32x32xbf16> to vector<32x32xbf16>
    %cst_54 = arith.constant dense<0.000000e+00> : vector<16x32xf32>
    %83 = tpu.matmul %80, %82, %cst_54 {dimension_numbers = #tpu.dot_dimension_numbers<[1], [0], [0], [1], [0, 0, 1, 1], [], []>} : vector<16x32xbf16>, vector<32x32xbf16>, vector<16x32xf32> -> vector<16x32xf32>
    %84 = arith.addf %79, %83 : vector<16x32xf32>
    %85 = vector.extract_strided_slice %78 {offsets = [1, 0], sizes = [16, 32], strides = [1, 1]} : vector<20x32xbf16> to vector<16x32xbf16>
    %c6 = arith.constant 6 : index
    %c0_55 = arith.constant 0 : index
    %c0_56 = arith.constant 0 : index
    %86 = vector.load %arg2[%c6, %c0_55, %c0_56] : memref<15x32x32xbf16, #tpu.memory_space<vmem>>, vector<1x32x32xbf16>
    %87 = vector.shape_cast %86 : vector<1x32x32xbf16> to vector<32x32xbf16>
    %cst_57 = arith.constant dense<0.000000e+00> : vector<16x32xf32>
    %88 = tpu.matmul %85, %87, %cst_57 {dimension_numbers = #tpu.dot_dimension_numbers<[1], [0], [0], [1], [0, 0, 1, 1], [], []>} : vector<16x32xbf16>, vector<32x32xbf16>, vector<16x32xf32> -> vector<16x32xf32>
    %89 = arith.addf %84, %88 : vector<16x32xf32>
    %90 = vector.extract_strided_slice %78 {offsets = [2, 0], sizes = [16, 32], strides = [1, 1]} : vector<20x32xbf16> to vector<16x32xbf16>
    %c7 = arith.constant 7 : index
    %c0_58 = arith.constant 0 : index
    %c0_59 = arith.constant 0 : index
    %91 = vector.load %arg2[%c7, %c0_58, %c0_59] : memref<15x32x32xbf16, #tpu.memory_space<vmem>>, vector<1x32x32xbf16>
    %92 = vector.shape_cast %91 : vector<1x32x32xbf16> to vector<32x32xbf16>
    %cst_60 = arith.constant dense<0.000000e+00> : vector<16x32xf32>
    %93 = tpu.matmul %90, %92, %cst_60 {dimension_numbers = #tpu.dot_dimension_numbers<[1], [0], [0], [1], [0, 0, 1, 1], [], []>} : vector<16x32xbf16>, vector<32x32xbf16>, vector<16x32xf32> -> vector<16x32xf32>
    %94 = arith.addf %89, %93 : vector<16x32xf32>
    %95 = vector.extract_strided_slice %78 {offsets = [3, 0], sizes = [16, 32], strides = [1, 1]} : vector<20x32xbf16> to vector<16x32xbf16>
    %c8 = arith.constant 8 : index
    %c0_61 = arith.constant 0 : index
    %c0_62 = arith.constant 0 : index
    %96 = vector.load %arg2[%c8, %c0_61, %c0_62] : memref<15x32x32xbf16, #tpu.memory_space<vmem>>, vector<1x32x32xbf16>
    %97 = vector.shape_cast %96 : vector<1x32x32xbf16> to vector<32x32xbf16>
    %cst_63 = arith.constant dense<0.000000e+00> : vector<16x32xf32>
    %98 = tpu.matmul %95, %97, %cst_63 {dimension_numbers = #tpu.dot_dimension_numbers<[1], [0], [0], [1], [0, 0, 1, 1], [], []>} : vector<16x32xbf16>, vector<32x32xbf16>, vector<16x32xf32> -> vector<16x32xf32>
    %99 = arith.addf %94, %98 : vector<16x32xf32>
    %100 = vector.extract_strided_slice %78 {offsets = [4, 0], sizes = [16, 32], strides = [1, 1]} : vector<20x32xbf16> to vector<16x32xbf16>
    %c9 = arith.constant 9 : index
    %c0_64 = arith.constant 0 : index
    %c0_65 = arith.constant 0 : index
    %101 = vector.load %arg2[%c9, %c0_64, %c0_65] : memref<15x32x32xbf16, #tpu.memory_space<vmem>>, vector<1x32x32xbf16>
    %102 = vector.shape_cast %101 : vector<1x32x32xbf16> to vector<32x32xbf16>
    %cst_66 = arith.constant dense<0.000000e+00> : vector<16x32xf32>
    %103 = tpu.matmul %100, %102, %cst_66 {dimension_numbers = #tpu.dot_dimension_numbers<[1], [0], [0], [1], [0, 0, 1, 1], [], []>} : vector<16x32xbf16>, vector<32x32xbf16>, vector<16x32xf32> -> vector<16x32xf32>
    %104 = arith.addf %99, %103 : vector<16x32xf32>
    %c1_67 = arith.constant 1 : index
    %c0_68 = arith.constant 0 : index
    %c0_69 = arith.constant 0 : index
    %105 = vector.load %arg3[%c1_67, %c0_68, %c0_69] : memref<3x1x32xf32, #tpu.memory_space<vmem>>, vector<1x1x32xf32>
    %106 = vector.shape_cast %105 : vector<1x1x32xf32> to vector<1x32xf32>
    %107 = vector.broadcast %106 : vector<1x32xf32> to vector<16x32xf32>
    %108 = arith.addf %104, %107 : vector<16x32xf32>
    %cst_70 = arith.constant dense<0.000000e+00> : vector<16xf32>
    %109 = vector.multi_reduction <add>, %108, %cst_70 [1] : vector<16x32xf32> to vector<16xf32>
    %110 = vector.shape_cast %109 : vector<16xf32> to vector<16x1xf32>
    %cst_71 = arith.constant 3.200000e+01 : f32
    %111 = vector.broadcast %cst_71 : f32 to vector<16x1xf32>
    %112 = arith.divf %110, %111 : vector<16x1xf32>
    %113 = vector.broadcast %112 : vector<16x1xf32> to vector<16x32xf32>
    %114 = arith.subf %108, %113 : vector<16x32xf32>
    %115 = arith.mulf %114, %114 : vector<16x32xf32>
    %cst_72 = arith.constant dense<0.000000e+00> : vector<16xf32>
    %116 = vector.multi_reduction <add>, %115, %cst_72 [1] : vector<16x32xf32> to vector<16xf32>
    %117 = vector.shape_cast %116 : vector<16xf32> to vector<16x1xf32>
    %cst_73 = arith.constant 3.200000e+01 : f32
    %118 = vector.broadcast %cst_73 : f32 to vector<16x1xf32>
    %119 = arith.divf %117, %118 : vector<16x1xf32>
    %120 = vector.broadcast %112 : vector<16x1xf32> to vector<16x32xf32>
    %121 = arith.subf %108, %120 : vector<16x32xf32>
    %cst_74 = arith.constant 9.99999974E-6 : f32
    %122 = vector.broadcast %cst_74 : f32 to vector<16x1xf32>
    %123 = arith.addf %119, %122 : vector<16x1xf32>
    %124 = math.rsqrt %123 : vector<16x1xf32>
    %125 = vector.broadcast %124 : vector<16x1xf32> to vector<16x32xf32>
    %126 = arith.mulf %121, %125 : vector<16x32xf32>
    %c1_75 = arith.constant 1 : index
    %c0_76 = arith.constant 0 : index
    %c0_77 = arith.constant 0 : index
    %127 = vector.load %arg4[%c1_75, %c0_76, %c0_77] : memref<3x1x32xf32, #tpu.memory_space<vmem>>, vector<1x1x32xf32>
    %128 = vector.shape_cast %127 : vector<1x1x32xf32> to vector<1x32xf32>
    %129 = vector.broadcast %128 : vector<1x32xf32> to vector<16x32xf32>
    %130 = arith.mulf %126, %129 : vector<16x32xf32>
    %c1_78 = arith.constant 1 : index
    %c0_79 = arith.constant 0 : index
    %c0_80 = arith.constant 0 : index
    %131 = vector.load %arg5[%c1_78, %c0_79, %c0_80] : memref<3x1x32xf32, #tpu.memory_space<vmem>>, vector<1x1x32xf32>
    %132 = vector.shape_cast %131 : vector<1x1x32xf32> to vector<1x32xf32>
    %133 = vector.broadcast %132 : vector<1x32xf32> to vector<16x32xf32>
    %134 = arith.addf %130, %133 : vector<16x32xf32>
    %cst_81 = arith.constant 0.000000e+00 : f32
    %135 = vector.broadcast %cst_81 : f32 to vector<16x32xf32>
    %136 = arith.cmpf ogt, %134, %135 : vector<16x32xf32>
    %cst_82 = arith.constant 2.000000e-01 : f32
    %137 = vector.broadcast %cst_82 : f32 to vector<16x32xf32>
    %138 = arith.mulf %137, %134 : vector<16x32xf32>
    %139 = arith.select %136, %134, %138 : vector<16x32xi1>, vector<16x32xf32>
    %140 = vector.broadcast %7 : vector<16x1xf32> to vector<16x32xf32>
    %141 = arith.mulf %139, %140 : vector<16x32xf32>
    %142 = arith.truncf %141 : vector<16x32xf32> to vector<16x32xbf16>
    %c2_83 = arith.constant 2 : index
    %c0_84 = arith.constant 0 : index
    %143 = vector.load %arg8[%c2_83, %c0_84] : memref<20x32xbf16, #tpu.memory_space<vmem>>, vector<16x32xbf16>
    tpu.vector_store %arg8[%c2_83, %c0_84], %142 {strides = array<i32>} : memref<20x32xbf16, #tpu.memory_space<vmem>>, vector<16x32xbf16>,
    %c0_85 = arith.constant 0 : index
    %c0_86 = arith.constant 0 : index
    %144 = vector.load %arg8[%c0_85, %c0_86] : memref<20x32xbf16, #tpu.memory_space<vmem>>, vector<20x32xbf16>
    %cst_87 = arith.constant 0.000000e+00 : f32
    %145 = vector.broadcast %cst_87 : f32 to vector<16x32xf32>
    %146 = vector.extract_strided_slice %144 {offsets = [0, 0], sizes = [16, 32], strides = [1, 1]} : vector<20x32xbf16> to vector<16x32xbf16>
    %c10 = arith.constant 10 : index
    %c0_88 = arith.constant 0 : index
    %c0_89 = arith.constant 0 : index
    %147 = vector.load %arg2[%c10, %c0_88, %c0_89] : memref<15x32x32xbf16, #tpu.memory_space<vmem>>, vector<1x32x32xbf16>
    %148 = vector.shape_cast %147 : vector<1x32x32xbf16> to vector<32x32xbf16>
    %cst_90 = arith.constant dense<0.000000e+00> : vector<16x32xf32>
    %149 = tpu.matmul %146, %148, %cst_90 {dimension_numbers = #tpu.dot_dimension_numbers<[1], [0], [0], [1], [0, 0, 1, 1], [], []>} : vector<16x32xbf16>, vector<32x32xbf16>, vector<16x32xf32> -> vector<16x32xf32>
    %150 = arith.addf %145, %149 : vector<16x32xf32>
    %151 = vector.extract_strided_slice %144 {offsets = [1, 0], sizes = [16, 32], strides = [1, 1]} : vector<20x32xbf16> to vector<16x32xbf16>
    %c11 = arith.constant 11 : index
    %c0_91 = arith.constant 0 : index
    %c0_92 = arith.constant 0 : index
    %152 = vector.load %arg2[%c11, %c0_91, %c0_92] : memref<15x32x32xbf16, #tpu.memory_space<vmem>>, vector<1x32x32xbf16>
    %153 = vector.shape_cast %152 : vector<1x32x32xbf16> to vector<32x32xbf16>
    %cst_93 = arith.constant dense<0.000000e+00> : vector<16x32xf32>
    %154 = tpu.matmul %151, %153, %cst_93 {dimension_numbers = #tpu.dot_dimension_numbers<[1], [0], [0], [1], [0, 0, 1, 1], [], []>} : vector<16x32xbf16>, vector<32x32xbf16>, vector<16x32xf32> -> vector<16x32xf32>
    %155 = arith.addf %150, %154 : vector<16x32xf32>
    %156 = vector.extract_strided_slice %144 {offsets = [2, 0], sizes = [16, 32], strides = [1, 1]} : vector<20x32xbf16> to vector<16x32xbf16>
    %c12 = arith.constant 12 : index
    %c0_94 = arith.constant 0 : index
    %c0_95 = arith.constant 0 : index
    %157 = vector.load %arg2[%c12, %c0_94, %c0_95] : memref<15x32x32xbf16, #tpu.memory_space<vmem>>, vector<1x32x32xbf16>
    %158 = vector.shape_cast %157 : vector<1x32x32xbf16> to vector<32x32xbf16>
    %cst_96 = arith.constant dense<0.000000e+00> : vector<16x32xf32>
    %159 = tpu.matmul %156, %158, %cst_96 {dimension_numbers = #tpu.dot_dimension_numbers<[1], [0], [0], [1], [0, 0, 1, 1], [], []>} : vector<16x32xbf16>, vector<32x32xbf16>, vector<16x32xf32> -> vector<16x32xf32>
    %160 = arith.addf %155, %159 : vector<16x32xf32>
    %161 = vector.extract_strided_slice %144 {offsets = [3, 0], sizes = [16, 32], strides = [1, 1]} : vector<20x32xbf16> to vector<16x32xbf16>
    %c13 = arith.constant 13 : index
    %c0_97 = arith.constant 0 : index
    %c0_98 = arith.constant 0 : index
    %162 = vector.load %arg2[%c13, %c0_97, %c0_98] : memref<15x32x32xbf16, #tpu.memory_space<vmem>>, vector<1x32x32xbf16>
    %163 = vector.shape_cast %162 : vector<1x32x32xbf16> to vector<32x32xbf16>
    %cst_99 = arith.constant dense<0.000000e+00> : vector<16x32xf32>
    %164 = tpu.matmul %161, %163, %cst_99 {dimension_numbers = #tpu.dot_dimension_numbers<[1], [0], [0], [1], [0, 0, 1, 1], [], []>} : vector<16x32xbf16>, vector<32x32xbf16>, vector<16x32xf32> -> vector<16x32xf32>
    %165 = arith.addf %160, %164 : vector<16x32xf32>
    %166 = vector.extract_strided_slice %144 {offsets = [4, 0], sizes = [16, 32], strides = [1, 1]} : vector<20x32xbf16> to vector<16x32xbf16>
    %c14 = arith.constant 14 : index
    %c0_100 = arith.constant 0 : index
    %c0_101 = arith.constant 0 : index
    %167 = vector.load %arg2[%c14, %c0_100, %c0_101] : memref<15x32x32xbf16, #tpu.memory_space<vmem>>, vector<1x32x32xbf16>
    %168 = vector.shape_cast %167 : vector<1x32x32xbf16> to vector<32x32xbf16>
    %cst_102 = arith.constant dense<0.000000e+00> : vector<16x32xf32>
    %169 = tpu.matmul %166, %168, %cst_102 {dimension_numbers = #tpu.dot_dimension_numbers<[1], [0], [0], [1], [0, 0, 1, 1], [], []>} : vector<16x32xbf16>, vector<32x32xbf16>, vector<16x32xf32> -> vector<16x32xf32>
    %170 = arith.addf %165, %169 : vector<16x32xf32>
    %c2_103 = arith.constant 2 : index
    %c0_104 = arith.constant 0 : index
    %c0_105 = arith.constant 0 : index
    %171 = vector.load %arg3[%c2_103, %c0_104, %c0_105] : memref<3x1x32xf32, #tpu.memory_space<vmem>>, vector<1x1x32xf32>
    %172 = vector.shape_cast %171 : vector<1x1x32xf32> to vector<1x32xf32>
    %173 = vector.broadcast %172 : vector<1x32xf32> to vector<16x32xf32>
    %174 = arith.addf %170, %173 : vector<16x32xf32>
    %cst_106 = arith.constant dense<0.000000e+00> : vector<16xf32>
    %175 = vector.multi_reduction <add>, %174, %cst_106 [1] : vector<16x32xf32> to vector<16xf32>
    %176 = vector.shape_cast %175 : vector<16xf32> to vector<16x1xf32>
    %cst_107 = arith.constant 3.200000e+01 : f32
    %177 = vector.broadcast %cst_107 : f32 to vector<16x1xf32>
    %178 = arith.divf %176, %177 : vector<16x1xf32>
    %179 = vector.broadcast %178 : vector<16x1xf32> to vector<16x32xf32>
    %180 = arith.subf %174, %179 : vector<16x32xf32>
    %181 = arith.mulf %180, %180 : vector<16x32xf32>
    %cst_108 = arith.constant dense<0.000000e+00> : vector<16xf32>
    %182 = vector.multi_reduction <add>, %181, %cst_108 [1] : vector<16x32xf32> to vector<16xf32>
    %183 = vector.shape_cast %182 : vector<16xf32> to vector<16x1xf32>
    %cst_109 = arith.constant 3.200000e+01 : f32
    %184 = vector.broadcast %cst_109 : f32 to vector<16x1xf32>
    %185 = arith.divf %183, %184 : vector<16x1xf32>
    %186 = vector.broadcast %178 : vector<16x1xf32> to vector<16x32xf32>
    %187 = arith.subf %174, %186 : vector<16x32xf32>
    %cst_110 = arith.constant 9.99999974E-6 : f32
    %188 = vector.broadcast %cst_110 : f32 to vector<16x1xf32>
    %189 = arith.addf %185, %188 : vector<16x1xf32>
    %190 = math.rsqrt %189 : vector<16x1xf32>
    %191 = vector.broadcast %190 : vector<16x1xf32> to vector<16x32xf32>
    %192 = arith.mulf %187, %191 : vector<16x32xf32>
    %c2_111 = arith.constant 2 : index
    %c0_112 = arith.constant 0 : index
    %c0_113 = arith.constant 0 : index
    %193 = vector.load %arg4[%c2_111, %c0_112, %c0_113] : memref<3x1x32xf32, #tpu.memory_space<vmem>>, vector<1x1x32xf32>
    %194 = vector.shape_cast %193 : vector<1x1x32xf32> to vector<1x32xf32>
    %195 = vector.broadcast %194 : vector<1x32xf32> to vector<16x32xf32>
    %196 = arith.mulf %192, %195 : vector<16x32xf32>
    %c2_114 = arith.constant 2 : index
    %c0_115 = arith.constant 0 : index
    %c0_116 = arith.constant 0 : index
    %197 = vector.load %arg5[%c2_114, %c0_115, %c0_116] : memref<3x1x32xf32, #tpu.memory_space<vmem>>, vector<1x1x32xf32>
    %198 = vector.shape_cast %197 : vector<1x1x32xf32> to vector<1x32xf32>
    %199 = vector.broadcast %198 : vector<1x32xf32> to vector<16x32xf32>
    %200 = arith.addf %196, %199 : vector<16x32xf32>
    %cst_117 = arith.constant 0.000000e+00 : f32
    %201 = vector.broadcast %cst_117 : f32 to vector<16x32xf32>
    %202 = arith.cmpf ogt, %200, %201 : vector<16x32xf32>
    %cst_118 = arith.constant 2.000000e-01 : f32
    %203 = vector.broadcast %cst_118 : f32 to vector<16x32xf32>
    %204 = arith.mulf %203, %200 : vector<16x32xf32>
    %205 = arith.select %202, %200, %204 : vector<16x32xi1>, vector<16x32xf32>
    %206 = vector.broadcast %7 : vector<16x1xf32> to vector<16x32xf32>
    %207 = arith.mulf %205, %206 : vector<16x32xf32>
    %208 = arith.truncf %207 : vector<16x32xf32> to vector<16x32xbf16>
    %c0_119 = arith.constant 0 : index
    %c0_120 = arith.constant 0 : index
    %c0_121 = arith.constant 0 : index
    %209 = vector.load %arg7[%c0_119, %c0_120, %c0_121] : memref<1x16x32xbf16, #tpu.memory_space<vmem>>, vector<1x16x32xbf16>
    %210 = vector.shape_cast %209 : vector<1x16x32xbf16> to vector<16x32xbf16>
    %211 = vector.shape_cast %208 : vector<16x32xbf16> to vector<1x16x32xbf16>
    tpu.vector_store %arg7[%c0_119, %c0_120, %c0_121], %211 {strides = array<i32>} : memref<1x16x32xbf16, #tpu.memory_space<vmem>>, vector<1x16x32xbf16>,
    return
  }
  func.func @transform_0(%arg0: i32) -> (i32, i32, i32) {
    %c0_i32 = arith.constant 0 : i32
    %c0_i32_0 = arith.constant 0 : i32
    %c0_i32_1 = arith.constant 0 : i32
    return %arg0, %c0_i32, %c0_i32_0 : i32, i32, i32
  }
  func.func @transform_1(%arg0: i32) -> (i32, i32, i32) {
    %c0_i32 = arith.constant 0 : i32
    %c0_i32_0 = arith.constant 0 : i32
    %c0_i32_1 = arith.constant 0 : i32
    %c0_i32_2 = arith.constant 0 : i32
    return %c0_i32, %c0_i32_0, %c0_i32_1 : i32, i32, i32
  }
  func.func @transform_2(%arg0: i32) -> (i32, i32, i32) {
    %c0_i32 = arith.constant 0 : i32
    %c0_i32_0 = arith.constant 0 : i32
    %c0_i32_1 = arith.constant 0 : i32
    %c0_i32_2 = arith.constant 0 : i32
    return %c0_i32, %c0_i32_0, %c0_i32_1 : i32, i32, i32
  }
  func.func @transform_3(%arg0: i32) -> (i32, i32, i32) {
    %c0_i32 = arith.constant 0 : i32
    %c0_i32_0 = arith.constant 0 : i32
    %c0_i32_1 = arith.constant 0 : i32
    %c0_i32_2 = arith.constant 0 : i32
    return %c0_i32, %c0_i32_0, %c0_i32_1 : i32, i32, i32
  }
  func.func @transform_4(%arg0: i32) -> (i32, i32, i32) {
    %c0_i32 = arith.constant 0 : i32
    %c0_i32_0 = arith.constant 0 : i32
    %c0_i32_1 = arith.constant 0 : i32
    %c0_i32_2 = arith.constant 0 : i32
    return %c0_i32, %c0_i32_0, %c0_i32_1 : i32, i32, i32
  }
  func.func @transform_5(%arg0: i32) -> (i32, i32, i32) {
    %c0_i32 = arith.constant 0 : i32
    %c0_i32_0 = arith.constant 0 : i32
    %c0_i32_1 = arith.constant 0 : i32
    return %arg0, %c0_i32, %c0_i32_0 : i32, i32, i32
  }
  func.func @transform_6(%arg0: i32) -> (i32, i32, i32) {
    %c0_i32 = arith.constant 0 : i32
    %c0_i32_0 = arith.constant 0 : i32
    %c0_i32_1 = arith.constant 0 : i32
    return %arg0, %c0_i32, %c0_i32_0 : i32, i32, i32
  }
}

</mosaic_0001>

<llo_original>
// kernel: tpu_custom_call.1
$region0: #{tpu_custom_call.1}
  #allocation0 [shape = 'u32[]', space=smem, size = 0x4, offset = 0x4, fixed_abs, tag = 'smem constant byte address 0x4 - core index']
  #allocation1 [shape = 'u32[144,128]{1,0:T(1,128)}', space=vmem, size = 0x12000, scoped, tag = 'internal scratch']
  #allocation2 [shape = 'bf16[20,32]{1,0:T(8,128)(2,1)}', space=vmem, size = 0x1800, scoped, tag = 'scratch operand']
  %s0 = inlined_call_operand.vmem [shape: f32[2,16,32], index: 0, kind: input, shape index: {}]
  %s1 = inlined_call_operand.hbm [shape: bf16[15,32,32], index: 1, kind: input, shape index: {}]
  %s2 = inlined_call_operand.vmem [shape: f32[3,1,32], index: 2, kind: input, shape index: {}]
  %s3 = inlined_call_operand.vmem [shape: f32[3,1,32], index: 3, kind: input, shape index: {}]
  %s4 = inlined_call_operand.vmem [shape: f32[3,1,32], index: 4, kind: input, shape index: {}]
  %s5 = inlined_call_operand.vmem [shape: f32[2,16,1], index: 5, kind: input, shape index: {}]
  %s6 = inlined_call_operand.hbm [shape: bf16[2,16,32], index: 6, kind: output, shape index: {}]
  %s7 = sld [smem:[#allocation0]]
  $region61: #{tpu_custom_call.1} parent=0
    _
  %s9 = ssub.s32 1, %s7
  %s10 = scalar_select 0, %s9, %s7
  $region1: #{tpu_custom_call.1} parent=0
    #allocation3 [shape = 'u8[122880]{0}', space=vmem, size = 0x1e000, scoped, tag = 'input window, operand 1, single buffered']
    #allocation4 [shape = 's32[2]{0}', space=sflag, size = 0x8, scoped, tag = 'scoped memory for tpu_custom_call.1']
    #allocation5 [shape = 's32[2]{0}', space=sflag, size = 0x8, scoped, tag = 'scoped memory for tpu_custom_call.1']
    #allocation6 [shape = 'u8[8192]{0}', space=vmem, size = 0x2000, scoped, tag = 'output window, operand 0']
    %11 = vsyncpa [#allocation4], 0
    %12 = vsyncpa [#allocation5], 0
    %s13 = scalar_lea.sflag [#allocation5], 1
    %14 = vsyncpa %s13, 0
    loop: start=0, step=1, limit=4
    $region2: #{tpu_custom_call.1} parent=1 // loop_pre_header
      _
    $region3: #{tpu_custom_call.1} parent=1 // loop_header
      %s16 = sphi 0, %s20
      %p17 = scmp.ge.s32.totalorder %s16, 4
      %s26 = sphi 0, %s28
      %s29 = sphi 0, %s26
      %s30 = sphi 0, %s29
      %s46 = sphi 0, %s30
      %s50 = sphi 0, %s50
      %s52 = sphi 0, %s50
      %s53 = sphi 0, %s52
      %s67 = sphi 0, %s53
      %s71 = sphi 0, %s71
      %s73 = sphi 0, %s71
      %s74 = sphi 0, %s73
      %s88 = sphi 0, %s74
      %s92 = sphi 0, %s92
      %s94 = sphi 0, %s92
      %s95 = sphi 0, %s94
      %s109 = sphi 0, %s95
      %s113 = sphi 0, %s113
      %s115 = sphi 0, %s113
      %s116 = sphi 0, %s115
      %s130 = sphi 0, %s116
      %s136 = sphi 0, %s138
      %s139 = sphi 0, %s136
      %s140 = sphi 0, %s139
      %s156 = sphi 0, %s140
      %s162 = sphi 0, %s164
      %s165 = sphi 0, %s162
      %s166 = sphi 0, %s165
      %s182 = sphi 0, %s166
    $region4: #{tpu_custom_call.1} parent=1 // loop_header_branch
      %19 = sbr.rel (%p17) target = $region8
    $region5: #{tpu_custom_call.1} parent=1 // loop_body
      %s21 = ssub.s32 %s16, 1
      %s22 = ssub.s32 %s16, 2
      %s23 = sadd.s32 %s16, 1
      %s24 = ssub.s32 %s16, %s23
      %p25 = scmp.eq.s32.totalorder %s24, 0
      %s27 = sadd.s32 %s26, 1
      %s28 = scalar_select %p25, %s26, %s27
      %p31 = pneg %p25
      %p32 = scmp.eq.s32.totalorder %s16, 1
      %p33 = por %p31, %p32
      %p34 = scmp.ne.s32.totalorder %s26, %s29
      %p35 = scmp.eq.s32.totalorder %s16, 0
      %p36 = por %p34, %p35
      %p37 = scmp.ne.s32.totalorder %s26, %s29
      %p38 = scmp.eq.s32.totalorder %s21, 1
      %p39 = por %p37, %p38
      %p40 = scmp.ne.s32.totalorder %s29, %s30
      %p41 = scmp.eq.s32.totalorder %s21, 0
      %p42 = por %p40, %p41
      %p43 = scmp.ne.s32.totalorder %s29, %s30
      %p44 = scmp.eq.s32.totalorder %s22, 1
      %p45 = por %p43, %p44
      %p47 = scmp.ne.s32.totalorder %s30, %s46
      %p48 = scmp.eq.s32.totalorder %s22, 0
      %p49 = por %p47, %p48
      %s51 = sadd.s32 %s50, 1
      %p54 = scmp.eq.s32.totalorder %s16, 1
      %p55 = scmp.ne.s32.totalorder %s50, %s52
      %p56 = scmp.eq.s32.totalorder %s16, 0
      %p57 = por %p55, %p56
      %p58 = scmp.ne.s32.totalorder %s50, %s52
      %p59 = scmp.eq.s32.totalorder %s21, 1
      %p60 = por %p58, %p59
      %p61 = scmp.ne.s32.totalorder %s52, %s53
      %p62 = scmp.eq.s32.totalorder %s21, 0
      %p63 = por %p61, %p62
      %p64 = scmp.ne.s32.totalorder %s52, %s53
      %p65 = scmp.eq.s32.totalorder %s22, 1
      %p66 = por %p64, %p65
      %p68 = scmp.ne.s32.totalorder %s53, %s67
      %p69 = scmp.eq.s32.totalorder %s22, 0
      %p70 = por %p68, %p69
      %s72 = sadd.s32 %s71, 1
      %p75 = scmp.eq.s32.totalorder %s16, 1
      %p76 = scmp.ne.s32.totalorder %s71, %s73
      %p77 = scmp.eq.s32.totalorder %s16, 0
      %p78 = por %p76, %p77
      %p79 = scmp.ne.s32.totalorder %s71, %s73
      %p80 = scmp.eq.s32.totalorder %s21, 1
      %p81 = por %p79, %p80
      %p82 = scmp.ne.s32.totalorder %s73, %s74
      %p83 = scmp.eq.s32.totalorder %s21, 0
      %p84 = por %p82, %p83
      %p85 = scmp.ne.s32.totalorder %s73, %s74
      %p86 = scmp.eq.s32.totalorder %s22, 1
      %p87 = por %p85, %p86
      %p89 = scmp.ne.s32.totalorder %s74, %s88
      %p90 = scmp.eq.s32.totalorder %s22, 0
      %p91 = por %p89, %p90
      %s93 = sadd.s32 %s92, 1
      %p96 = scmp.eq.s32.totalorder %s16, 1
      %p97 = scmp.ne.s32.totalorder %s92, %s94
      %p98 = scmp.eq.s32.totalorder %s16, 0
      %p99 = por %p97, %p98
      %p100 = scmp.ne.s32.totalorder %s92, %s94
      %p101 = scmp.eq.s32.totalorder %s21, 1
      %p102 = por %p100, %p101
      %p103 = scmp.ne.s32.totalorder %s94, %s95
      %p104 = scmp.eq.s32.totalorder %s21, 0
      %p105 = por %p103, %p104
      %p106 = scmp.ne.s32.totalorder %s94, %s95
      %p107 = scmp.eq.s32.totalorder %s22, 1
      %p108 = por %p106, %p107
      %p110 = scmp.ne.s32.totalorder %s95, %s109
      %p111 = scmp.eq.s32.totalorder %s22, 0
      %p112 = por %p110, %p111
      %s114 = sadd.s32 %s113, 1
      %p117 = scmp.eq.s32.totalorder %s16, 1
      %p118 = scmp.ne.s32.totalorder %s113, %s115
      %p119 = scmp.eq.s32.totalorder %s16, 0
      %p120 = por %p118, %p119
      %p121 = scmp.ne.s32.totalorder %s113, %s115
      %p122 = scmp.eq.s32.totalorder %s21, 1
      %p123 = por %p121, %p122
      %p124 = scmp.ne.s32.totalorder %s115, %s116
      %p125 = scmp.eq.s32.totalorder %s21, 0
      %p126 = por %p124, %p125
      %p127 = scmp.ne.s32.totalorder %s115, %s116
      %p128 = scmp.eq.s32.totalorder %s22, 1
      %p129 = por %p127, %p128
      %p131 = scmp.ne.s32.totalorder %s116, %s130
      %p132 = scmp.eq.s32.totalorder %s22, 0
      %p133 = por %p131, %p132
      %s134 = ssub.s32 %s16, %s23
      %p135 = scmp.eq.s32.totalorder %s134, 0
      %s137 = sadd.s32 %s136, 1
      %s138 = scalar_select %p135, %s136, %s137
      %p141 = pneg %p135
      %p142 = scmp.eq.s32.totalorder %s16, 1
      %p143 = por %p141, %p142
      %p144 = scmp.ne.s32.totalorder %s136, %s139
      %p145 = scmp.eq.s32.totalorder %s16, 0
      %p146 = por %p144, %p145
      %p147 = scmp.ne.s32.totalorder %s136, %s139
      %p148 = scmp.eq.s32.totalorder %s21, 1
      %p149 = por %p147, %p148
      %p150 = scmp.ne.s32.totalorder %s139, %s140
      %p151 = scmp.eq.s32.totalorder %s21, 0
      %p152 = por %p150, %p151
      %p153 = scmp.ne.s32.totalorder %s139, %s140
      %p154 = scmp.eq.s32.totalorder %s22, 1
      %p155 = por %p153, %p154
      %p157 = scmp.ne.s32.totalorder %s140, %s156
      %p158 = scmp.eq.s32.totalorder %s22, 0
      %p159 = por %p157, %p158
      %s160 = ssub.s32 %s16, %s23
      %p161 = scmp.eq.s32.totalorder %s160, 0
      %s163 = sadd.s32 %s162, 1
      %s164 = scalar_select %p161, %s162, %s163
      %p167 = pneg %p161
      %p168 = scmp.eq.s32.totalorder %s16, 1
      %p169 = por %p167, %p168
      %p170 = scmp.ne.s32.totalorder %s162, %s165
      %p171 = scmp.eq.s32.totalorder %s16, 0
      %p172 = por %p170, %p171
      %p173 = scmp.ne.s32.totalorder %s162, %s165
      %p174 = scmp.eq.s32.totalorder %s21, 1
      %p175 = por %p173, %p174
      %p176 = scmp.ne.s32.totalorder %s165, %s166
      %p177 = scmp.eq.s32.totalorder %s21, 0
      %p178 = por %p176, %p177
      %p179 = scmp.ne.s32.totalorder %s165, %s166
      %p180 = scmp.eq.s32.totalorder %s22, 1
      %p181 = por %p179, %p180
      %p183 = scmp.ne.s32.totalorder %s166, %s182
      %p184 = scmp.eq.s32.totalorder %s22, 0
      %p185 = por %p183, %p184
      %p186 = scmp.le.s32.totalorder 1, %s16
      %p187 = scmp.lt.s32.totalorder %s16, 3
      %p188 = pnand %p186, %p187
      %p189 = pneg %p188
      // Predicated region
      $region9: #{tpu_custom_call.1} parent=5 // pred_check
        _
      $region10: #{tpu_custom_call.1} parent=5 // pred_check_branch
        %191 = sbr.rel (%p188) target = $region12
      $region11: #{tpu_custom_call.1} parent=5 // pred_region
        %s192 = ssub.s32 %s16, 1
        // Predicated region
        $region13: #{tpu_custom_call.1} parent=11 // pred_check
          %p193 = pneg %p63
        $region14: #{tpu_custom_call.1} parent=11 // pred_check_branch
          %195 = sbr.rel (%p193) target = $region16
        $region15: #{tpu_custom_call.1} parent=11 // pred_region
          %s197 = ssub.s32 3840, 3840
          %198 = vsyncadd [#allocation4], %s197
          %s199 = sshll.u32 [#allocation3], 4
          %s200 = int_to_ptr.vmem [resolvable:$true] %s199
          %205 = dma.hbm_to_vmem [thread:$0]  %s1, 3840, %s200, [#allocation4], 64, 64, 4
        $region16: #{tpu_custom_call.1} parent=11 // pred_fallthru
          _
        // Predicated region
        $region17: #{tpu_custom_call.1} parent=11 // pred_check
          %p206 = pneg %p84
        $region18: #{tpu_custom_call.1} parent=11 // pred_check_branch
          %208 = sbr.rel (%p206) target = $region20
        $region19: #{tpu_custom_call.1} parent=11 // pred_region
          _
        $region20: #{tpu_custom_call.1} parent=11 // pred_fallthru
          _
        // Predicated region
        $region21: #{tpu_custom_call.1} parent=11 // pred_check
          %p209 = pneg %p105
        $region22: #{tpu_custom_call.1} parent=11 // pred_check_branch
          %211 = sbr.rel (%p209) target = $region24
        $region23: #{tpu_custom_call.1} parent=11 // pred_region
          _
        $region24: #{tpu_custom_call.1} parent=11 // pred_fallthru
          _
        // Predicated region
        $region25: #{tpu_custom_call.1} parent=11 // pred_check
          %p212 = pneg %p126
        $region26: #{tpu_custom_call.1} parent=11 // pred_check_branch
          %214 = sbr.rel (%p212) target = $region28
        $region27: #{tpu_custom_call.1} parent=11 // pred_region
          _
        $region28: #{tpu_custom_call.1} parent=11 // pred_fallthru
          _
      $region12: #{tpu_custom_call.1} parent=5 // pred_fallthru
        _
      %p215 = scmp.lt.s32.totalorder %s16, 2
      // Predicated region
      $region29: #{tpu_custom_call.1} parent=5 // pred_check
        %p216 = pneg %p215
      $region30: #{tpu_custom_call.1} parent=5 // pred_check_branch
        %218 = sbr.rel (%p216) target = $region32
      $region31: #{tpu_custom_call.1} parent=5 // pred_region
        // Predicated region
        $region33: #{tpu_custom_call.1} parent=31 // pred_check
          %p219 = pneg %p36
        $region34: #{tpu_custom_call.1} parent=31 // pred_check_branch
          %221 = sbr.rel (%p219) target = $region36
        $region35: #{tpu_custom_call.1} parent=31 // pred_region
          %p222 = scmp.lt.s32.totalorder %s16, 1
          %s223 = scalar_select %p222, %s16, 1
          %s224 = smul.addr %s223, 2
          %s225 = smul.addr %s224, 8
          %s226 = scalar_lea.vmem %s0, %s225
        $region36: #{tpu_custom_call.1} parent=31 // pred_fallthru
          _
        // Predicated region
        $region37: #{tpu_custom_call.1} parent=31 // pred_check
          %p227 = pneg %p146
        $region38: #{tpu_custom_call.1} parent=31 // pred_check_branch
          %229 = sbr.rel (%p227) target = $region40
        $region39: #{tpu_custom_call.1} parent=31 // pred_region
          %p230 = scmp.lt.s32.totalorder %s16, 1
          %s231 = scalar_select %p230, %s16, 1
          %s232 = smul.addr %s231, 2
          %s233 = smul.addr %s232, 8
          %s234 = scalar_lea.vmem %s5, %s233
        $region40: #{tpu_custom_call.1} parent=31 // pred_fallthru
          _
      $region32: #{tpu_custom_call.1} parent=5 // pred_fallthru
        _
      %p235 = scmp.le.s32.totalorder 1, %s16
      %p236 = scmp.lt.s32.totalorder %s16, 3
      %p237 = pnand %p235, %p236
      %p238 = pneg %p237
      // Predicated region
      $region41: #{tpu_custom_call.1} parent=5 // pred_check
        _
      $region42: #{tpu_custom_call.1} parent=5 // pred_check_branch
        %240 = sbr.rel (%p237) target = $region44
      $region43: #{tpu_custom_call.1} parent=5 // pred_region
        %s241 = ssub.s32 %s16, 1
        // Predicated region
        $region45: #{tpu_custom_call.1} parent=43 // pred_check
          %p242 = pneg %p63
        $region46: #{tpu_custom_call.1} parent=43 // pred_check_branch
          %244 = sbr.rel (%p242) target = $region48
        $region47: #{tpu_custom_call.1} parent=43 // pred_region
          %245 = dma.done [#allocation4], 3840
        $region48: #{tpu_custom_call.1} parent=43 // pred_fallthru
          _
        %p246 = scmp.lt.s32.totalorder %s21, 1
        %s247 = scalar_select %p246, %s21, 1
        %s248 = smul.addr %s247, 2
        %s249 = smul.addr %s248, 8
        %s250 = scalar_lea.vmem %s0, %s249
        %p251 = pneg %p42
        %p252 = pneg %p39
        %p253 = pneg %p63
        %p254 = pneg %p60
        %p255 = pneg %p84
        %p256 = pneg %p81
        %p257 = pneg %p105
        %p258 = pneg %p102
        %p259 = pneg %p126
        %p260 = pneg %p123
        %p261 = scmp.lt.s32.totalorder %s21, 1
        %s262 = scalar_select %p261, %s21, 1
        %s263 = smul.addr %s262, 2
        %s264 = smul.addr %s263, 8
        %s265 = scalar_lea.vmem %s5, %s264
        %p266 = pneg %p152
        %p267 = pneg %p149
        %p268 = pneg %p178
        %p269 = pneg %p175
        %s270 = sand.u32 %s165, 1
        %s271 = scalar_lea.sflag [#allocation5], %s270
        %s272 = sand.u32 %s165, 1
        %s273 = smul.addr %s272, 8
        %s274 = scalar_lea.vmem [#allocation6], %s273
        %p275 = scmp.lt.s32.totalorder %s21, 1
        %s276 = scalar_select %p275, %s21, 1
        %s277 = smul.addr %s276, 2
        %s278 = smul.addr %s277, 8
        %s279 = scalar_lea.vmem %s0, %s278
        %p280 = scmp.lt.s32.totalorder %s21, 1
        %s281 = scalar_select %p280, %s21, 1
        %s282 = smul.addr %s281, 2
        %s283 = smul.addr %s282, 8
        %s284 = scalar_lea.vmem %s5, %s283
        %vm286 = vcmask 253952
        %287 = vst.msk [vmem:[#allocation2] sm:$0x1] %vm286, 0
        %vm288 = vcmask 254977
        %289 = vst.msk [vmem:[#allocation2 + $0x8] sm:$0x2] %vm288, 0
        %v290 = vld [vmem:[%s284] sm:$0xff]
        %v291 = vld [vmem:[%s284 + $0x8] sm:$0xff]
        %v292 = vsub.f32 1.0, %v290
        %v293 = vsub.f32 1.0, %v291
        %v294 = vld [vmem:[%s279] sm:$0xff]
        %v295 = vld [vmem:[%s279 + $0x8] sm:$0xff]
        %v296 = vpack.c.bf16 %v295, %v294
        %v298 = vunpack.c.l.b16 %v296
        %v299 = vunpack.c.h.b16 %v296
        %v300 = vpack.c.b16 %v298, %v298
        %v301 = vpack.c.b16 %v299, %v299
        %vm302 = vcmask 1040384
        %vm303 = vcmask 1044484
        %vm304 = vmor %vm302, %vm303
        %v305 = vrot.slane %v300, 7
        %v306 = vrot.slane %v305, 4
        %v307 = vrot.slane %v301, 7
        %v308 = vsel %vm304, %v306, %v307
        %v309 = vrot.slane %v307, 4
        %vm313 = vcmask 257025
        %314 = vst.msk [vmem:[#allocation2] sm:$0xe] %vm313, %v305
        %vm315 = vcmask 257024
        %316 = vst.msk [vmem:[#allocation2 + $0x4] sm:$0xf] %vm315, %v308
        %317 = vst.msk [vmem:[#allocation2 + $0x8] sm:$0x1] %vm286, %v309
        %v318 = vld [vmem:[#allocation2] sm:$0xf]
        %v319 = vld [vmem:[#allocation2 + $0x4] sm:$0xf]
        %v320 = vld [vmem:[#allocation2 + $0x8] sm:$0x3]
        %v321 = vld [vmem:[#allocation3] sm:$0xf]
        %v322 = vld [vmem:[#allocation3 + $0x4] sm:$0xf]
        %v323 = vld [vmem:[#allocation3 + $0x8] sm:$0xf]
        %v324 = vld [vmem:[#allocation3 + $0xc] sm:$0xf]
        %s325 = scalar_lea.vmem [#allocation3], 16
        %v326 = vld [vmem:[%s325] sm:$0xf]
        %v327 = vld [vmem:[%s325 + $0x4] sm:$0xf]
        %v328 = vld [vmem:[%s325 + $0x8] sm:$0xf]
        %v329 = vld [vmem:[%s325 + $0xc] sm:$0xf]
        %v333 = vunpack.c.l.b16 %v318
        %v334 = vunpack.c.l.b16 %v319
        %v335 = vunpack.c.l.b16 %v320
        %v336 = vpack.c.b16 %v334, %v333
        %v337 = vpack.c.b16 %v335, %v335
        %vm338 = vsmask.f32 7424
        %v340 = vshrl.u32 %v336, 16
        %v342 = vshll.u32 %v336, 16
        %v344 = vrot.slane %v342, 1
        %v345 = vor.u32 %v340, %v344
        %v347 = vshll.u32 %v337, 16
        %v349 = vrot.slane %v347, 1
        %v350 = vsel %vm338, %v345, %v349
        %v355 = vunpack.c.l.b16 %v326
        %v356 = vunpack.c.l.b16 %v327
        %v357 = vunpack.c.l.b16 %v328
        %v358 = vunpack.c.l.b16 %v329
        %v359 = vpack.c.b16 %v356, %v355
        %v360 = vpack.c.b16 %v358, %v357
        %vm363 = vcmask 261120
        %v365 = vsel %vm363, %v350, 0
        %367 = vmatprep.subr.bf16.mxu0 0
        %368 = vmatpush1.bf16.msra.mxu0 %v359
        %369 = vmatprep.subr.bf16.mxu0 0
        %370 = vmatpush1.bf16.msra.mxu0 %v360
        %371 = vmatprep.subr.bf16.mxu0 0
        %372 = vmatpush1.bf16.msra.mxu0 0
        %373 = vmatprep.subr.bf16.mxu0 0
        %374 = vmatpush1.bf16.msra.mxu0 0
        %375 = vmatprep.subr.bf16.mxu0 0
        %376 = vmatpush1.bf16.msra.mxu0 0
        %377 = vmatprep.subr.bf16.mxu0 0
        %378 = vmatpush1.bf16.msra.mxu0 0
        %379 = vmatprep.subr.bf16.mxu0 0
        %380 = vmatpush1.bf16.msra.mxu0 0
        %381 = vmatprep.subr.bf16.mxu0 0
        %382 = vmatpush1.bf16.msra.mxu0 0
        %383 = vmatprep.subr.bf16.mxu0 0
        %384 = vmatpush1.bf16.msra.mxu0 0
        %385 = vmatprep.subr.bf16.mxu0 0
        %386 = vmatpush1.bf16.msra.mxu0 0
        %387 = vmatprep.subr.bf16.mxu0 0
        %388 = vmatpush1.bf16.msra.mxu0 0
        %389 = vmatprep.subr.bf16.mxu0 0
        %390 = vmatpush1.bf16.msra.mxu0 0
        %391 = vmatprep.subr.bf16.mxu0 0
        %392 = vmatpush1.bf16.msra.mxu0 0
        %393 = vmatprep.subr.bf16.mxu0 0
        %394 = vmatpush1.bf16.msra.mxu0 0
        %395 = vmatprep.subr.bf16.mxu0 0
        %396 = vmatpush1.bf16.msra.mxu0 0
        %397 = vmatprep.subr.bf16.mxu0 0
        %398 = vmatpush1.bf16.msra.mxu0 0
        %399 = vmatprep.mubr.bf16.mxu0 0
        %400 = vmatmul.mubr.bf16.gmra.mrb[0].mxu0 %v365
        %v401 = vpop.f32.mrb[0].mxu0
        %v402 = vadd.f32 0.0, %v401
        %v403 = vpop.f32.mrb[0].mxu0
        %v404 = vpop.f32.mrb[0].mxu0
        %v405 = vadd.f32 0.0, %v404
        %v406 = vpop.f32.mrb[0].mxu0
        %407 = vdwg.mxu0
        %v412 = vunpack.c.l.b16 %v321
        %v413 = vunpack.c.l.b16 %v322
        %v414 = vunpack.c.l.b16 %v323
        %v415 = vunpack.c.l.b16 %v324
        %v416 = vpack.c.b16 %v413, %v412
        %v417 = vpack.c.b16 %v415, %v414
        %v420 = vsel %vm363, %v336, 0
        %422 = vmatprep.subr.bf16.mxu0 0
        %423 = vmatpush1.bf16.msra.mxu0 %v416
        %424 = vmatprep.subr.bf16.mxu0 0
        %425 = vmatpush1.bf16.msra.mxu0 %v417
        %426 = vmatprep.subr.bf16.mxu0 0
        %427 = vmatpush1.bf16.msra.mxu0 0
        %428 = vmatprep.subr.bf16.mxu0 0
        %429 = vmatpush1.bf16.msra.mxu0 0
        %430 = vmatprep.subr.bf16.mxu0 0
        %431 = vmatpush1.bf16.msra.mxu0 0
        %432 = vmatprep.subr.bf16.mxu0 0
        %433 = vmatpush1.bf16.msra.mxu0 0
        %434 = vmatprep.subr.bf16.mxu0 0
        %435 = vmatpush1.bf16.msra.mxu0 0
        %436 = vmatprep.subr.bf16.mxu0 0
        %437 = vmatpush1.bf16.msra.mxu0 0
        %438 = vmatprep.subr.bf16.mxu0 0
        %439 = vmatpush1.bf16.msra.mxu0 0
        %440 = vmatprep.subr.bf16.mxu0 0
        %441 = vmatpush1.bf16.msra.mxu0 0
        %442 = vmatprep.subr.bf16.mxu0 0
        %443 = vmatpush1.bf16.msra.mxu0 0
        %444 = vmatprep.subr.bf16.mxu0 0
        %445 = vmatpush1.bf16.msra.mxu0 0
        %446 = vmatprep.subr.bf16.mxu0 0
        %447 = vmatpush1.bf16.msra.mxu0 0
        %448 = vmatprep.subr.bf16.mxu0 0
        %449 = vmatpush1.bf16.msra.mxu0 0
        %450 = vmatprep.subr.bf16.mxu0 0
        %451 = vmatpush1.bf16.msra.mxu0 0
        %452 = vmatprep.subr.bf16.mxu0 0
        %453 = vmatpush1.bf16.msra.mxu0 0
        %454 = vmatprep.mubr.bf16.mxu0 0
        %455 = vmatmul.mubr.bf16.gmra.mrb[0].mxu0 %v420
        %v456 = vpop.f32.mrb[0].mxu0
        %v457 = vadd.f32 %v402, %v456
        %v458 = vpop.f32.mrb[0].mxu0
        %v459 = vpop.f32.mrb[0].mxu0
        %v460 = vadd.f32 %v405, %v459
        %v461 = vpop.f32.mrb[0].mxu0
        %462 = vdwg.mxu0
        %s463 = scalar_lea.vmem [#allocation3], 32
        %v464 = vld [vmem:[%s463] sm:$0xf]
        %v465 = vld [vmem:[%s463 + $0x4] sm:$0xf]
        %v466 = vld [vmem:[%s463 + $0x8] sm:$0xf]
        %v467 = vld [vmem:[%s463 + $0xc] sm:$0xf]
        %vm468 = vcmask 1046528
        %v469 = vrot.slane %v336, 1
        %v470 = vrot.slane %v337, 1
        %v471 = vsel %vm468, %v469, %v470
        %v476 = vunpack.c.l.b16 %v464
        %v477 = vunpack.c.l.b16 %v465
        %v478 = vunpack.c.l.b16 %v466
        %v479 = vunpack.c.l.b16 %v467
        %v480 = vpack.c.b16 %v477, %v476
        %v481 = vpack.c.b16 %v479, %v478
        %v485 = vsel %vm363, %v471, 0
        %487 = vmatprep.subr.bf16.mxu0 0
        %488 = vmatpush1.bf16.msra.mxu0 %v480
        %489 = vmatprep.subr.bf16.mxu0 0
        %490 = vmatpush1.bf16.msra.mxu0 %v481
        %491 = vmatprep.subr.bf16.mxu0 0
        %492 = vmatpush1.bf16.msra.mxu0 0
        %493 = vmatprep.subr.bf16.mxu0 0
        %494 = vmatpush1.bf16.msra.mxu0 0
        %495 = vmatprep.subr.bf16.mxu0 0
        %496 = vmatpush1.bf16.msra.mxu0 0
        %497 = vmatprep.subr.bf16.mxu0 0
        %498 = vmatpush1.bf16.msra.mxu0 0
        %499 = vmatprep.subr.bf16.mxu0 0
        %500 = vmatpush1.bf16.msra.mxu0 0
        %501 = vmatprep.subr.bf16.mxu0 0
        %502 = vmatpush1.bf16.msra.mxu0 0
        %503 = vmatprep.subr.bf16.mxu0 0
        %504 = vmatpush1.bf16.msra.mxu0 0
        %505 = vmatprep.subr.bf16.mxu0 0
        %506 = vmatpush1.bf16.msra.mxu0 0
        %507 = vmatprep.subr.bf16.mxu0 0
        %508 = vmatpush1.bf16.msra.mxu0 0
        %509 = vmatprep.subr.bf16.mxu0 0
        %510 = vmatpush1.bf16.msra.mxu0 0
        %511 = vmatprep.subr.bf16.mxu0 0
        %512 = vmatpush1.bf16.msra.mxu0 0
        %513 = vmatprep.subr.bf16.mxu0 0
        %514 = vmatpush1.bf16.msra.mxu0 0
        %515 = vmatprep.subr.bf16.mxu0 0
        %516 = vmatpush1.bf16.msra.mxu0 0
        %517 = vmatprep.subr.bf16.mxu0 0
        %518 = vmatpush1.bf16.msra.mxu0 0
        %519 = vmatprep.mubr.bf16.mxu0 0
        %520 = vmatmul.mubr.bf16.gmra.mrb[0].mxu0 %v485
        %v521 = vpop.f32.mrb[0].mxu0
        %v522 = vadd.f32 0.0, %v521
        %v523 = vpop.f32.mrb[0].mxu0
        %v524 = vpop.f32.mrb[0].mxu0
        %v525 = vadd.f32 0.0, %v524
        %v526 = vpop.f32.mrb[0].mxu0
        %527 = vdwg.mxu0
        %v528 = vadd.f32 %v457, %v522
        %v529 = vadd.f32 %v460, %v525
        %s530 = scalar_lea.vmem [#allocation3], 48
        %v531 = vld [vmem:[%s530] sm:$0xf]
        %v532 = vld [vmem:[%s530 + $0x4] sm:$0xf]
        %v533 = vld [vmem:[%s530 + $0x8] sm:$0xf]
        %v534 = vld [vmem:[%s530 + $0xc] sm:$0xf]
        %vm535 = vsmask.f32 6400
        %v536 = vrot.slane %v340, 1
        %v537 = vrot.slane %v342, 2
        %v538 = vor.u32 %v536, %v537
        %v539 = vshrl.u32 %v337, 16
        %v541 = vrot.slane %v539, 1
        %v542 = vrot.slane %v347, 2
        %v543 = vor.u32 %v541, %v542
        %v544 = vsel %vm535, %v538, %v543
        %v549 = vunpack.c.l.b16 %v531
        %v550 = vunpack.c.l.b16 %v532
        %v551 = vunpack.c.l.b16 %v533
        %v552 = vunpack.c.l.b16 %v534
        %v553 = vpack.c.b16 %v550, %v549
        %v554 = vpack.c.b16 %v552, %v551
        %v558 = vsel %vm363, %v544, 0
        %560 = vmatprep.subr.bf16.mxu0 0
        %561 = vmatpush1.bf16.msra.mxu0 %v553
        %562 = vmatprep.subr.bf16.mxu0 0
        %563 = vmatpush1.bf16.msra.mxu0 %v554
        %564 = vmatprep.subr.bf16.mxu0 0
        %565 = vmatpush1.bf16.msra.mxu0 0
        %566 = vmatprep.subr.bf16.mxu0 0
        %567 = vmatpush1.bf16.msra.mxu0 0
        %568 = vmatprep.subr.bf16.mxu0 0
        %569 = vmatpush1.bf16.msra.mxu0 0
        %570 = vmatprep.subr.bf16.mxu0 0
        %571 = vmatpush1.bf16.msra.mxu0 0
        %572 = vmatprep.subr.bf16.mxu0 0
        %573 = vmatpush1.bf16.msra.mxu0 0
        %574 = vmatprep.subr.bf16.mxu0 0
        %575 = vmatpush1.bf16.msra.mxu0 0
        %576 = vmatprep.subr.bf16.mxu0 0
        %577 = vmatpush1.bf16.msra.mxu0 0
        %578 = vmatprep.subr.bf16.mxu0 0
        %579 = vmatpush1.bf16.msra.mxu0 0
        %580 = vmatprep.subr.bf16.mxu0 0
        %581 = vmatpush1.bf16.msra.mxu0 0
        %582 = vmatprep.subr.bf16.mxu0 0
        %583 = vmatpush1.bf16.msra.mxu0 0
        %584 = vmatprep.subr.bf16.mxu0 0
        %585 = vmatpush1.bf16.msra.mxu0 0
        %586 = vmatprep.subr.bf16.mxu0 0
        %587 = vmatpush1.bf16.msra.mxu0 0
        %588 = vmatprep.subr.bf16.mxu0 0
        %589 = vmatpush1.bf16.msra.mxu0 0
        %590 = vmatprep.subr.bf16.mxu0 0
        %591 = vmatpush1.bf16.msra.mxu0 0
        %592 = vmatprep.mubr.bf16.mxu0 0
        %593 = vmatmul.mubr.bf16.gmra.mrb[0].mxu0 %v558
        %v594 = vpop.f32.mrb[0].mxu0
        %v595 = vadd.f32 0.0, %v594
        %v596 = vpop.f32.mrb[0].mxu0
        %v597 = vpop.f32.mrb[0].mxu0
        %v598 = vadd.f32 0.0, %v597
        %v599 = vpop.f32.mrb[0].mxu0
        %600 = vdwg.mxu0
        %v601 = vadd.f32 %v528, %v595
        %v602 = vadd.f32 %v529, %v598
        %s603 = scalar_lea.vmem [#allocation3], 64
        %v604 = vld [vmem:[%s603] sm:$0xf]
        %v605 = vld [vmem:[%s603 + $0x4] sm:$0xf]
        %v606 = vld [vmem:[%s603 + $0x8] sm:$0xf]
        %v607 = vld [vmem:[%s603 + $0xc] sm:$0xf]
        %vm608 = vcmask 1045504
        %v609 = vrot.slane %v336, 2
        %v610 = vrot.slane %v337, 2
        %v611 = vsel %vm608, %v609, %v610
        %v616 = vunpack.c.l.b16 %v604
        %v617 = vunpack.c.l.b16 %v605
        %v618 = vunpack.c.l.b16 %v606
        %v619 = vunpack.c.l.b16 %v607
        %v620 = vpack.c.b16 %v617, %v616
        %v621 = vpack.c.b16 %v619, %v618
        %v625 = vsel %vm363, %v611, 0
        %627 = vmatprep.subr.bf16.mxu0 0
        %628 = vmatpush1.bf16.msra.mxu0 %v620
        %629 = vmatprep.subr.bf16.mxu0 0
        %630 = vmatpush1.bf16.msra.mxu0 %v621
        %631 = vmatprep.subr.bf16.mxu0 0
        %632 = vmatpush1.bf16.msra.mxu0 0
        %633 = vmatprep.subr.bf16.mxu0 0
        %634 = vmatpush1.bf16.msra.mxu0 0
        %635 = vmatprep.subr.bf16.mxu0 0
        %636 = vmatpush1.bf16.msra.mxu0 0
        %637 = vmatprep.subr.bf16.mxu0 0
        %638 = vmatpush1.bf16.msra.mxu0 0
        %639 = vmatprep.subr.bf16.mxu0 0
        %640 = vmatpush1.bf16.msra.mxu0 0
        %641 = vmatprep.subr.bf16.mxu0 0
        %642 = vmatpush1.bf16.msra.mxu0 0
        %643 = vmatprep.subr.bf16.mxu0 0
        %644 = vmatpush1.bf16.msra.mxu0 0
        %645 = vmatprep.subr.bf16.mxu0 0
        %646 = vmatpush1.bf16.msra.mxu0 0
        %647 = vmatprep.subr.bf16.mxu0 0
        %648 = vmatpush1.bf16.msra.mxu0 0
        %649 = vmatprep.subr.bf16.mxu0 0
        %650 = vmatpush1.bf16.msra.mxu0 0
        %651 = vmatprep.subr.bf16.mxu0 0
        %652 = vmatpush1.bf16.msra.mxu0 0
        %653 = vmatprep.subr.bf16.mxu0 0
        %654 = vmatpush1.bf16.msra.mxu0 0
        %655 = vmatprep.subr.bf16.mxu0 0
        %656 = vmatpush1.bf16.msra.mxu0 0
        %657 = vmatprep.subr.bf16.mxu0 0
        %658 = vmatpush1.bf16.msra.mxu0 0
        %659 = vmatprep.mubr.bf16.mxu0 0
        %660 = vmatmul.mubr.bf16.gmra.mrb[0].mxu0 %v625
        %v661 = vpop.f32.mrb[0].mxu0
        %v662 = vadd.f32 0.0, %v661
        %v663 = vpop.f32.mrb[0].mxu0
        %v664 = vpop.f32.mrb[0].mxu0
        %v665 = vadd.f32 0.0, %v664
        %v666 = vpop.f32.mrb[0].mxu0
        %667 = vdwg.mxu0
        %v668 = vadd.f32 %v601, %v662
        %v669 = vadd.f32 %v602, %v665
        %v670 = vld [vmem:[%s2] sm:$0x1]
        %v672 = vlaneseq
        %v673 = vshrl.u32 %v672, 7
        %v674 = vsub.s32 0, %v673
        %v675 = vrot.slane %v670, %v674
        %v677 = vadd.f32 %v668, %v675
        %v678 = vadd.f32 %v669, %v675
        %v679 = vsel %vm363, %v677, 0.0
        %680 = vadd.xlane.f32.xlu0 %v679
        %v681 = vpop.xlane.xlu0 %680
        %v682 = vsel %vm363, %v678, 0.0
        %683 = vadd.xlane.f32.xlu0 %v682
        %v684 = vpop.xlane.xlu0 %683
        %v685 = vrcp.pop 32.0
        %v686 = vmul.f32 %v681, %v685
        %v687 = vmul.f32 %v684, %v685
        %v688 = vsub.f32 %v677, %v686
        %v689 = vsub.f32 %v678, %v687
        %v690 = vmul.f32 %v688, %v688
        %v691 = vmul.f32 %v689, %v689
        %v692 = vsel %vm363, %v690, 0.0
        %693 = vadd.xlane.f32.xlu0 %v692
        %v694 = vpop.xlane.xlu0 %693
        %v695 = vsel %vm363, %v691, 0.0
        %696 = vadd.xlane.f32.xlu0 %v695
        %v697 = vpop.xlane.xlu0 %696
        %v698 = vmul.f32 %v694, %v685
        %v699 = vmul.f32 %v697, %v685
        %v700 = vadd.f32 %v698, 1e-05
        %v701 = vadd.f32 %v699, 1e-05
        %v702 = vrsqrt.pop %v700
        %v703 = vrsqrt.pop %v701
        %v704 = vmul.f32 %v688, %v702
        %v705 = vmul.f32 %v689, %v703
        %v706 = vld [vmem:[%s3] sm:$0x1]
        %v708 = vlaneseq
        %v709 = vshrl.u32 %v708, 7
        %v710 = vsub.s32 0, %v709
        %v711 = vrot.slane %v706, %v710
        %v713 = vmul.f32 %v704, %v711
        %v714 = vmul.f32 %v705, %v711
        %v715 = vld [vmem:[%s4] sm:$0x1]
        %v717 = vlaneseq
        %v718 = vshrl.u32 %v717, 7
        %v719 = vsub.s32 0, %v718
        %v720 = vrot.slane %v715, %v719
        %v722 = vadd.f32 %v713, %v720
        %v723 = vadd.f32 %v714, %v720
        %vm724 = vcmp.gt.f32.partialorder %v722, 0.0
        %vm725 = vcmp.gt.f32.partialorder %v723, 0.0
        %v726 = vmul.f32 %v722, 0.2
        %v727 = vmul.f32 %v723, 0.2
        %v728 = vsel %vm724, %v722, %v726
        %v729 = vsel %vm725, %v723, %v727
        %731 = vset.pattern.permute.xlu0 0
        %732 = vperm.xlu0 %731, %v292
        %v733 = vpop.permute.xlu0 %732
        %736 = vset.pattern.permute.xlu0 0
        %737 = vperm.xlu0 %736, %v293
        %v738 = vpop.permute.xlu0 %737
        %v740 = vmul.f32 %v728, %v733
        %v741 = vmul.f32 %v729, %v738
        %v742 = vpack.c.bf16 %v741, %v740
        %v744 = vunpack.c.l.b16 %v742
        %v745 = vunpack.c.h.b16 %v742
        %v746 = vpack.c.b16 %v744, %v744
        %v747 = vpack.c.b16 %v745, %v745
        %v748 = vrot.slane %v746, 7
        %v749 = vrot.slane %v748, 4
        %v750 = vrot.slane %v747, 7
        %v751 = vsel %vm304, %v749, %v750
        %v752 = vrot.slane %v750, 4
        %756 = vst.msk [vmem:[#allocation2] sm:$0xe] %vm313, %v748
        %757 = vst.msk [vmem:[#allocation2 + $0x4] sm:$0xf] %vm315, %v751
        %758 = vst.msk [vmem:[#allocation2 + $0x8] sm:$0x1] %vm286, %v752
        %v759 = vld [vmem:[#allocation2] sm:$0xf]
        %v760 = vld [vmem:[#allocation2 + $0x4] sm:$0xf]
        %v761 = vld [vmem:[#allocation2 + $0x8] sm:$0x3]
        %s762 = scalar_lea.vmem [#allocation3], 80
        %v763 = vld [vmem:[%s762] sm:$0xf]
        %v764 = vld [vmem:[%s762 + $0x4] sm:$0xf]
        %v765 = vld [vmem:[%s762 + $0x8] sm:$0xf]
        %v766 = vld [vmem:[%s762 + $0xc] sm:$0xf]
        %s767 = scalar_lea.vmem [#allocation3], 96
        %v768 = vld [vmem:[%s767] sm:$0xf]
        %v769 = vld [vmem:[%s767 + $0x4] sm:$0xf]
        %v770 = vld [vmem:[%s767 + $0x8] sm:$0xf]
        %v771 = vld [vmem:[%s767 + $0xc] sm:$0xf]
        %v775 = vunpack.c.l.b16 %v759
        %v776 = vunpack.c.l.b16 %v760
        %v777 = vunpack.c.l.b16 %v761
        %v778 = vpack.c.b16 %v776, %v775
        %v779 = vpack.c.b16 %v777, %v777
        %v781 = vshrl.u32 %v778, 16
        %v783 = vshll.u32 %v778, 16
        %v785 = vrot.slane %v783, 1
        %v786 = vor.u32 %v781, %v785
        %v788 = vshll.u32 %v779, 16
        %v790 = vrot.slane %v788, 1
        %v791 = vsel %vm338, %v786, %v790
        %v796 = vunpack.c.l.b16 %v768
        %v797 = vunpack.c.l.b16 %v769
        %v798 = vunpack.c.l.b16 %v770
        %v799 = vunpack.c.l.b16 %v771
        %v800 = vpack.c.b16 %v797, %v796
        %v801 = vpack.c.b16 %v799, %v798
        %v805 = vsel %vm363, %v791, 0
        %807 = vmatprep.subr.bf16.mxu0 0
        %808 = vmatpush1.bf16.msra.mxu0 %v800
        %809 = vmatprep.subr.bf16.mxu0 0
        %810 = vmatpush1.bf16.msra.mxu0 %v801
        %811 = vmatprep.subr.bf16.mxu0 0
        %812 = vmatpush1.bf16.msra.mxu0 0
        %813 = vmatprep.subr.bf16.mxu0 0
        %814 = vmatpush1.bf16.msra.mxu0 0
        %815 = vmatprep.subr.bf16.mxu0 0
        %816 = vmatpush1.bf16.msra.mxu0 0
        %817 = vmatprep.subr.bf16.mxu0 0
        %818 = vmatpush1.bf16.msra.mxu0 0
        %819 = vmatprep.subr.bf16.mxu0 0
        %820 = vmatpush1.bf16.msra.mxu0 0
        %821 = vmatprep.subr.bf16.mxu0 0
        %822 = vmatpush1.bf16.msra.mxu0 0
        %823 = vmatprep.subr.bf16.mxu0 0
        %824 = vmatpush1.bf16.msra.mxu0 0
        %825 = vmatprep.subr.bf16.mxu0 0
        %826 = vmatpush1.bf16.msra.mxu0 0
        %827 = vmatprep.subr.bf16.mxu0 0
        %828 = vmatpush1.bf16.msra.mxu0 0
        %829 = vmatprep.subr.bf16.mxu0 0
        %830 = vmatpush1.bf16.msra.mxu0 0
        %831 = vmatprep.subr.bf16.mxu0 0
        %832 = vmatpush1.bf16.msra.mxu0 0
        %833 = vmatprep.subr.bf16.mxu0 0
        %834 = vmatpush1.bf16.msra.mxu0 0
        %835 = vmatprep.subr.bf16.mxu0 0
        %836 = vmatpush1.bf16.msra.mxu0 0
        %837 = vmatprep.subr.bf16.mxu0 0
        %838 = vmatpush1.bf16.msra.mxu0 0
        %839 = vmatprep.mubr.bf16.mxu0 0
        %840 = vmatmul.mubr.bf16.gmra.mrb[0].mxu0 %v805
        %v841 = vpop.f32.mrb[0].mxu0
        %v842 = vadd.f32 0.0, %v841
        %v843 = vpop.f32.mrb[0].mxu0
        %v844 = vpop.f32.mrb[0].mxu0
        %v845 = vadd.f32 0.0, %v844
        %v846 = vpop.f32.mrb[0].mxu0
        %847 = vdwg.mxu0
        %v852 = vunpack.c.l.b16 %v763
        %v853 = vunpack.c.l.b16 %v764
        %v854 = vunpack.c.l.b16 %v765
        %v855 = vunpack.c.l.b16 %v766
        %v856 = vpack.c.b16 %v853, %v852
        %v857 = vpack.c.b16 %v855, %v854
        %v860 = vsel %vm363, %v778, 0
        %862 = vmatprep.subr.bf16.mxu0 0
        %863 = vmatpush1.bf16.msra.mxu0 %v856
        %864 = vmatprep.subr.bf16.mxu0 0
        %865 = vmatpush1.bf16.msra.mxu0 %v857
        %866 = vmatprep.subr.bf16.mxu0 0
        %867 = vmatpush1.bf16.msra.mxu0 0
        %868 = vmatprep.subr.bf16.mxu0 0
        %869 = vmatpush1.bf16.msra.mxu0 0
        %870 = vmatprep.subr.bf16.mxu0 0
        %871 = vmatpush1.bf16.msra.mxu0 0
        %872 = vmatprep.subr.bf16.mxu0 0
        %873 = vmatpush1.bf16.msra.mxu0 0
        %874 = vmatprep.subr.bf16.mxu0 0
        %875 = vmatpush1.bf16.msra.mxu0 0
        %876 = vmatprep.subr.bf16.mxu0 0
        %877 = vmatpush1.bf16.msra.mxu0 0
        %878 = vmatprep.subr.bf16.mxu0 0
        %879 = vmatpush1.bf16.msra.mxu0 0
        %880 = vmatprep.subr.bf16.mxu0 0
        %881 = vmatpush1.bf16.msra.mxu0 0
        %882 = vmatprep.subr.bf16.mxu0 0
        %883 = vmatpush1.bf16.msra.mxu0 0
        %884 = vmatprep.subr.bf16.mxu0 0
        %885 = vmatpush1.bf16.msra.mxu0 0
        %886 = vmatprep.subr.bf16.mxu0 0
        %887 = vmatpush1.bf16.msra.mxu0 0
        %888 = vmatprep.subr.bf16.mxu0 0
        %889 = vmatpush1.bf16.msra.mxu0 0
        %890 = vmatprep.subr.bf16.mxu0 0
        %891 = vmatpush1.bf16.msra.mxu0 0
        %892 = vmatprep.subr.bf16.mxu0 0
        %893 = vmatpush1.bf16.msra.mxu0 0
        %894 = vmatprep.mubr.bf16.mxu0 0
        %895 = vmatmul.mubr.bf16.gmra.mrb[0].mxu0 %v860
        %v896 = vpop.f32.mrb[0].mxu0
        %v897 = vadd.f32 %v842, %v896
        %v898 = vpop.f32.mrb[0].mxu0
        %v899 = vpop.f32.mrb[0].mxu0
        %v900 = vadd.f32 %v845, %v899
        %v901 = vpop.f32.mrb[0].mxu0
        %902 = vdwg.mxu0
        %s903 = scalar_lea.vmem [#allocation3], 112
        %v904 = vld [vmem:[%s903] sm:$0xf]
        %v905 = vld [vmem:[%s903 + $0x4] sm:$0xf]
        %v906 = vld [vmem:[%s903 + $0x8] sm:$0xf]
        %v907 = vld [vmem:[%s903 + $0xc] sm:$0xf]
        %v908 = vrot.slane %v778, 1
        %v909 = vrot.slane %v779, 1
        %v910 = vsel %vm468, %v908, %v909
        %v915 = vunpack.c.l.b16 %v904
        %v916 = vunpack.c.l.b16 %v905
        %v917 = vunpack.c.l.b16 %v906
        %v918 = vunpack.c.l.b16 %v907
        %v919 = vpack.c.b16 %v916, %v915
        %v920 = vpack.c.b16 %v918, %v917
        %v924 = vsel %vm363, %v910, 0
        %926 = vmatprep.subr.bf16.mxu0 0
        %927 = vmatpush1.bf16.msra.mxu0 %v919
        %928 = vmatprep.subr.bf16.mxu0 0
        %929 = vmatpush1.bf16.msra.mxu0 %v920
        %930 = vmatprep.subr.bf16.mxu0 0
        %931 = vmatpush1.bf16.msra.mxu0 0
        %932 = vmatprep.subr.bf16.mxu0 0
        %933 = vmatpush1.bf16.msra.mxu0 0
        %934 = vmatprep.subr.bf16.mxu0 0
        %935 = vmatpush1.bf16.msra.mxu0 0
        %936 = vmatprep.subr.bf16.mxu0 0
        %937 = vmatpush1.bf16.msra.mxu0 0
        %938 = vmatprep.subr.bf16.mxu0 0
        %939 = vmatpush1.bf16.msra.mxu0 0
        %940 = vmatprep.subr.bf16.mxu0 0
        %941 = vmatpush1.bf16.msra.mxu0 0
        %942 = vmatprep.subr.bf16.mxu0 0
        %943 = vmatpush1.bf16.msra.mxu0 0
        %944 = vmatprep.subr.bf16.mxu0 0
        %945 = vmatpush1.bf16.msra.mxu0 0
        %946 = vmatprep.subr.bf16.mxu0 0
        %947 = vmatpush1.bf16.msra.mxu0 0
        %948 = vmatprep.subr.bf16.mxu0 0
        %949 = vmatpush1.bf16.msra.mxu0 0
        %950 = vmatprep.subr.bf16.mxu0 0
        %951 = vmatpush1.bf16.msra.mxu0 0
        %952 = vmatprep.subr.bf16.mxu0 0
        %953 = vmatpush1.bf16.msra.mxu0 0
        %954 = vmatprep.subr.bf16.mxu0 0
        %955 = vmatpush1.bf16.msra.mxu0 0
        %956 = vmatprep.subr.bf16.mxu0 0
        %957 = vmatpush1.bf16.msra.mxu0 0
        %958 = vmatprep.mubr.bf16.mxu0 0
        %959 = vmatmul.mubr.bf16.gmra.mrb[0].mxu0 %v924
        %v960 = vpop.f32.mrb[0].mxu0
        %v961 = vadd.f32 0.0, %v960
        %v962 = vpop.f32.mrb[0].mxu0
        %v963 = vpop.f32.mrb[0].mxu0
        %v964 = vadd.f32 0.0, %v963
        %v965 = vpop.f32.mrb[0].mxu0
        %966 = vdwg.mxu0
        %v967 = vadd.f32 %v897, %v961
        %v968 = vadd.f32 %v900, %v964
        %s969 = scalar_lea.vmem [#allocation3], 128
        %v970 = vld [vmem:[%s969] sm:$0xf]
        %v971 = vld [vmem:[%s969 + $0x4] sm:$0xf]
        %v972 = vld [vmem:[%s969 + $0x8] sm:$0xf]
        %v973 = vld [vmem:[%s969 + $0xc] sm:$0xf]
        %v974 = vrot.slane %v781, 1
        %v975 = vrot.slane %v783, 2
        %v976 = vor.u32 %v974, %v975
        %v977 = vshrl.u32 %v779, 16
        %v979 = vrot.slane %v977, 1
        %v980 = vrot.slane %v788, 2
        %v981 = vor.u32 %v979, %v980
        %v982 = vsel %vm535, %v976, %v981
        %v987 = vunpack.c.l.b16 %v970
        %v988 = vunpack.c.l.b16 %v971
        %v989 = vunpack.c.l.b16 %v972
        %v990 = vunpack.c.l.b16 %v973
        %v991 = vpack.c.b16 %v988, %v987
        %v992 = vpack.c.b16 %v990, %v989
        %v996 = vsel %vm363, %v982, 0
        %998 = vmatprep.subr.bf16.mxu0 0
        %999 = vmatpush1.bf16.msra.mxu0 %v991
        %1000 = vmatprep.subr.bf16.mxu0 0
        %1001 = vmatpush1.bf16.msra.mxu0 %v992
        %1002 = vmatprep.subr.bf16.mxu0 0
        %1003 = vmatpush1.bf16.msra.mxu0 0
        %1004 = vmatprep.subr.bf16.mxu0 0
        %1005 = vmatpush1.bf16.msra.mxu0 0
        %1006 = vmatprep.subr.bf16.mxu0 0
        %1007 = vmatpush1.bf16.msra.mxu0 0
        %1008 = vmatprep.subr.bf16.mxu0 0
        %1009 = vmatpush1.bf16.msra.mxu0 0
        %1010 = vmatprep.subr.bf16.mxu0 0
        %1011 = vmatpush1.bf16.msra.mxu0 0
        %1012 = vmatprep.subr.bf16.mxu0 0
        %1013 = vmatpush1.bf16.msra.mxu0 0
        %1014 = vmatprep.subr.bf16.mxu0 0
        %1015 = vmatpush1.bf16.msra.mxu0 0
        %1016 = vmatprep.subr.bf16.mxu0 0
        %1017 = vmatpush1.bf16.msra.mxu0 0
        %1018 = vmatprep.subr.bf16.mxu0 0
        %1019 = vmatpush1.bf16.msra.mxu0 0
        %1020 = vmatprep.subr.bf16.mxu0 0
        %1021 = vmatpush1.bf16.msra.mxu0 0
        %1022 = vmatprep.subr.bf16.mxu0 0
        %1023 = vmatpush1.bf16.msra.mxu0 0
        %1024 = vmatprep.subr.bf16.mxu0 0
        %1025 = vmatpush1.bf16.msra.mxu0 0
        %1026 = vmatprep.subr.bf16.mxu0 0
        %1027 = vmatpush1.bf16.msra.mxu0 0
        %1028 = vmatprep.subr.bf16.mxu0 0
        %1029 = vmatpush1.bf16.msra.mxu0 0
        %1030 = vmatprep.mubr.bf16.mxu0 0
        %1031 = vmatmul.mubr.bf16.gmra.mrb[0].mxu0 %v996
        %v1032 = vpop.f32.mrb[0].mxu0
        %v1033 = vadd.f32 0.0, %v1032
        %v1034 = vpop.f32.mrb[0].mxu0
        %v1035 = vpop.f32.mrb[0].mxu0
        %v1036 = vadd.f32 0.0, %v1035
        %v1037 = vpop.f32.mrb[0].mxu0
        %1038 = vdwg.mxu0
        %v1039 = vadd.f32 %v967, %v1033
        %v1040 = vadd.f32 %v968, %v1036
        %s1041 = scalar_lea.vmem [#allocation3], 144
        %v1042 = vld [vmem:[%s1041] sm:$0xf]
        %v1043 = vld [vmem:[%s1041 + $0x4] sm:$0xf]
        %v1044 = vld [vmem:[%s1041 + $0x8] sm:$0xf]
        %v1045 = vld [vmem:[%s1041 + $0xc] sm:$0xf]
        %v1046 = vrot.slane %v778, 2
        %v1047 = vrot.slane %v779, 2
        %v1048 = vsel %vm608, %v1046, %v1047
        %v1053 = vunpack.c.l.b16 %v1042
        %v1054 = vunpack.c.l.b16 %v1043
        %v1055 = vunpack.c.l.b16 %v1044
        %v1056 = vunpack.c.l.b16 %v1045
        %v1057 = vpack.c.b16 %v1054, %v1053
        %v1058 = vpack.c.b16 %v1056, %v1055
        %v1062 = vsel %vm363, %v1048, 0
        %1064 = vmatprep.subr.bf16.mxu0 0
        %1065 = vmatpush1.bf16.msra.mxu0 %v1057
        %1066 = vmatprep.subr.bf16.mxu0 0
        %1067 = vmatpush1.bf16.msra.mxu0 %v1058
        %1068 = vmatprep.subr.bf16.mxu0 0
        %1069 = vmatpush1.bf16.msra.mxu0 0
        %1070 = vmatprep.subr.bf16.mxu0 0
        %1071 = vmatpush1.bf16.msra.mxu0 0
        %1072 = vmatprep.subr.bf16.mxu0 0
        %1073 = vmatpush1.bf16.msra.mxu0 0
        %1074 = vmatprep.subr.bf16.mxu0 0
        %1075 = vmatpush1.bf16.msra.mxu0 0
        %1076 = vmatprep.subr.bf16.mxu0 0
        %1077 = vmatpush1.bf16.msra.mxu0 0
        %1078 = vmatprep.subr.bf16.mxu0 0
        %1079 = vmatpush1.bf16.msra.mxu0 0
        %1080 = vmatprep.subr.bf16.mxu0 0
        %1081 = vmatpush1.bf16.msra.mxu0 0
        %1082 = vmatprep.subr.bf16.mxu0 0
        %1083 = vmatpush1.bf16.msra.mxu0 0
        %1084 = vmatprep.subr.bf16.mxu0 0
        %1085 = vmatpush1.bf16.msra.mxu0 0
        %1086 = vmatprep.subr.bf16.mxu0 0
        %1087 = vmatpush1.bf16.msra.mxu0 0
        %1088 = vmatprep.subr.bf16.mxu0 0
        %1089 = vmatpush1.bf16.msra.mxu0 0
        %1090 = vmatprep.subr.bf16.mxu0 0
        %1091 = vmatpush1.bf16.msra.mxu0 0
        %1092 = vmatprep.subr.bf16.mxu0 0
        %1093 = vmatpush1.bf16.msra.mxu0 0
        %1094 = vmatprep.subr.bf16.mxu0 0
        %1095 = vmatpush1.bf16.msra.mxu0 0
        %1096 = vmatprep.mubr.bf16.mxu0 0
        %1097 = vmatmul.mubr.bf16.gmra.mrb[0].mxu0 %v1062
        %v1098 = vpop.f32.mrb[0].mxu0
        %v1099 = vadd.f32 0.0, %v1098
        %v1100 = vpop.f32.mrb[0].mxu0
        %v1101 = vpop.f32.mrb[0].mxu0
        %v1102 = vadd.f32 0.0, %v1101
        %v1103 = vpop.f32.mrb[0].mxu0
        %1104 = vdwg.mxu0
        %v1105 = vadd.f32 %v1039, %v1099
        %v1106 = vadd.f32 %v1040, %v1102
        %s1107 = scalar_lea.vmem %s2, 1
        %v1108 = vld [vmem:[%s1107] sm:$0x1]
        %v1110 = vlaneseq
        %v1111 = vshrl.u32 %v1110, 7
        %v1112 = vsub.s32 0, %v1111
        %v1113 = vrot.slane %v1108, %v1112
        %v1115 = vadd.f32 %v1105, %v1113
        %v1116 = vadd.f32 %v1106, %v1113
        %v1117 = vsel %vm363, %v1115, 0.0
        %1118 = vadd.xlane.f32.xlu0 %v1117
        %v1119 = vpop.xlane.xlu0 %1118
        %v1120 = vsel %vm363, %v1116, 0.0
        %1121 = vadd.xlane.f32.xlu0 %v1120
        %v1122 = vpop.xlane.xlu0 %1121
        %v1123 = vmul.f32 %v1119, %v685
        %v1124 = vmul.f32 %v1122, %v685
        %v1125 = vsub.f32 %v1115, %v1123
        %v1126 = vsub.f32 %v1116, %v1124
        %v1127 = vmul.f32 %v1125, %v1125
        %v1128 = vmul.f32 %v1126, %v1126
        %v1129 = vsel %vm363, %v1127, 0.0
        %1130 = vadd.xlane.f32.xlu0 %v1129
        %v1131 = vpop.xlane.xlu0 %1130
        %v1132 = vsel %vm363, %v1128, 0.0
        %1133 = vadd.xlane.f32.xlu0 %v1132
        %v1134 = vpop.xlane.xlu0 %1133
        %v1135 = vmul.f32 %v1131, %v685
        %v1136 = vmul.f32 %v1134, %v685
        %v1137 = vadd.f32 %v1135, 1e-05
        %v1138 = vadd.f32 %v1136, 1e-05
        %v1139 = vrsqrt.pop %v1137
        %v1140 = vrsqrt.pop %v1138
        %v1141 = vmul.f32 %v1125, %v1139
        %v1142 = vmul.f32 %v1126, %v1140
        %s1143 = scalar_lea.vmem %s3, 1
        %v1144 = vld [vmem:[%s1143] sm:$0x1]
        %v1146 = vlaneseq
        %v1147 = vshrl.u32 %v1146, 7
        %v1148 = vsub.s32 0, %v1147
        %v1149 = vrot.slane %v1144, %v1148
        %v1151 = vmul.f32 %v1141, %v1149
        %v1152 = vmul.f32 %v1142, %v1149
        %s1153 = scalar_lea.vmem %s4, 1
        %v1154 = vld [vmem:[%s1153] sm:$0x1]
        %v1156 = vlaneseq
        %v1157 = vshrl.u32 %v1156, 7
        %v1158 = vsub.s32 0, %v1157
        %v1159 = vrot.slane %v1154, %v1158
        %v1161 = vadd.f32 %v1151, %v1159
        %v1162 = vadd.f32 %v1152, %v1159
        %vm1163 = vcmp.gt.f32.partialorder %v1161, 0.0
        %vm1164 = vcmp.gt.f32.partialorder %v1162, 0.0
        %v1165 = vmul.f32 %v1161, 0.2
        %v1166 = vmul.f32 %v1162, 0.2
        %v1167 = vsel %vm1163, %v1161, %v1165
        %v1168 = vsel %vm1164, %v1162, %v1166
        %v1169 = vmul.f32 %v1167, %v733
        %v1170 = vmul.f32 %v1168, %v738
        %v1171 = vpack.c.bf16 %v1170, %v1169
        %v1173 = vunpack.c.l.b16 %v1171
        %v1174 = vunpack.c.h.b16 %v1171
        %v1175 = vpack.c.b16 %v1173, %v1173
        %v1176 = vpack.c.b16 %v1174, %v1174
        %v1177 = vrot.slane %v1175, 7
        %v1178 = vrot.slane %v1177, 4
        %v1179 = vrot.slane %v1176, 7
        %v1180 = vsel %vm304, %v1178, %v1179
        %v1181 = vrot.slane %v1179, 4
        %1185 = vst.msk [vmem:[#allocation2] sm:$0xe] %vm313, %v1177
        %1186 = vst.msk [vmem:[#allocation2 + $0x4] sm:$0xf] %vm315, %v1180
        %1187 = vst.msk [vmem:[#allocation2 + $0x8] sm:$0x1] %vm286, %v1181
        %v1188 = vld [vmem:[#allocation2] sm:$0xf]
        %v1189 = vld [vmem:[#allocation2 + $0x4] sm:$0xf]
        %v1190 = vld [vmem:[#allocation2 + $0x8] sm:$0x3]
        %s1191 = scalar_lea.vmem [#allocation3], 160
        %v1192 = vld [vmem:[%s1191] sm:$0xf]
        %v1193 = vld [vmem:[%s1191 + $0x4] sm:$0xf]
        %v1194 = vld [vmem:[%s1191 + $0x8] sm:$0xf]
        %v1195 = vld [vmem:[%s1191 + $0xc] sm:$0xf]
        %s1196 = scalar_lea.vmem [#allocation3], 176
        %v1197 = vld [vmem:[%s1196] sm:$0xf]
        %v1198 = vld [vmem:[%s1196 + $0x4] sm:$0xf]
        %v1199 = vld [vmem:[%s1196 + $0x8] sm:$0xf]
        %v1200 = vld [vmem:[%s1196 + $0xc] sm:$0xf]
        %v1204 = vunpack.c.l.b16 %v1188
        %v1205 = vunpack.c.l.b16 %v1189
        %v1206 = vunpack.c.l.b16 %v1190
        %v1207 = vpack.c.b16 %v1205, %v1204
        %v1208 = vpack.c.b16 %v1206, %v1206
        %v1210 = vshrl.u32 %v1207, 16
        %v1212 = vshll.u32 %v1207, 16
        %v1214 = vrot.slane %v1212, 1
        %v1215 = vor.u32 %v1210, %v1214
        %v1217 = vshll.u32 %v1208, 16
        %v1219 = vrot.slane %v1217, 1
        %v1220 = vsel %vm338, %v1215, %v1219
        %v1225 = vunpack.c.l.b16 %v1197
        %v1226 = vunpack.c.l.b16 %v1198
        %v1227 = vunpack.c.l.b16 %v1199
        %v1228 = vunpack.c.l.b16 %v1200
        %v1229 = vpack.c.b16 %v1226, %v1225
        %v1230 = vpack.c.b16 %v1228, %v1227
        %v1234 = vsel %vm363, %v1220, 0
        %1236 = vmatprep.subr.bf16.mxu0 0
        %1237 = vmatpush1.bf16.msra.mxu0 %v1229
        %1238 = vmatprep.subr.bf16.mxu0 0
        %1239 = vmatpush1.bf16.msra.mxu0 %v1230
        %1240 = vmatprep.subr.bf16.mxu0 0
        %1241 = vmatpush1.bf16.msra.mxu0 0
        %1242 = vmatprep.subr.bf16.mxu0 0
        %1243 = vmatpush1.bf16.msra.mxu0 0
        %1244 = vmatprep.subr.bf16.mxu0 0
        %1245 = vmatpush1.bf16.msra.mxu0 0
        %1246 = vmatprep.subr.bf16.mxu0 0
        %1247 = vmatpush1.bf16.msra.mxu0 0
        %1248 = vmatprep.subr.bf16.mxu0 0
        %1249 = vmatpush1.bf16.msra.mxu0 0
        %1250 = vmatprep.subr.bf16.mxu0 0
        %1251 = vmatpush1.bf16.msra.mxu0 0
        %1252 = vmatprep.subr.bf16.mxu0 0
        %1253 = vmatpush1.bf16.msra.mxu0 0
        %1254 = vmatprep.subr.bf16.mxu0 0
        %1255 = vmatpush1.bf16.msra.mxu0 0
        %1256 = vmatprep.subr.bf16.mxu0 0
        %1257 = vmatpush1.bf16.msra.mxu0 0
        %1258 = vmatprep.subr.bf16.mxu0 0
        %1259 = vmatpush1.bf16.msra.mxu0 0
        %1260 = vmatprep.subr.bf16.mxu0 0
        %1261 = vmatpush1.bf16.msra.mxu0 0
        %1262 = vmatprep.subr.bf16.mxu0 0
        %1263 = vmatpush1.bf16.msra.mxu0 0
        %1264 = vmatprep.subr.bf16.mxu0 0
        %1265 = vmatpush1.bf16.msra.mxu0 0
        %1266 = vmatprep.subr.bf16.mxu0 0
        %1267 = vmatpush1.bf16.msra.mxu0 0
        %1268 = vmatprep.mubr.bf16.mxu0 0
        %1269 = vmatmul.mubr.bf16.gmra.mrb[0].mxu0 %v1234
        %v1270 = vpop.f32.mrb[0].mxu0
        %v1271 = vadd.f32 0.0, %v1270
        %v1272 = vpop.f32.mrb[0].mxu0
        %v1273 = vpop.f32.mrb[0].mxu0
        %v1274 = vadd.f32 0.0, %v1273
        %v1275 = vpop.f32.mrb[0].mxu0
        %1276 = vdwg.mxu0
        %v1281 = vunpack.c.l.b16 %v1192
        %v1282 = vunpack.c.l.b16 %v1193
        %v1283 = vunpack.c.l.b16 %v1194
        %v1284 = vunpack.c.l.b16 %v1195
        %v1285 = vpack.c.b16 %v1282, %v1281
        %v1286 = vpack.c.b16 %v1284, %v1283
        %v1289 = vsel %vm363, %v1207, 0
        %1291 = vmatprep.subr.bf16.mxu0 0
        %1292 = vmatpush1.bf16.msra.mxu0 %v1285
        %1293 = vmatprep.subr.bf16.mxu0 0
        %1294 = vmatpush1.bf16.msra.mxu0 %v1286
        %1295 = vmatprep.subr.bf16.mxu0 0
        %1296 = vmatpush1.bf16.msra.mxu0 0
        %1297 = vmatprep.subr.bf16.mxu0 0
        %1298 = vmatpush1.bf16.msra.mxu0 0
        %1299 = vmatprep.subr.bf16.mxu0 0
        %1300 = vmatpush1.bf16.msra.mxu0 0
        %1301 = vmatprep.subr.bf16.mxu0 0
        %1302 = vmatpush1.bf16.msra.mxu0 0
        %1303 = vmatprep.subr.bf16.mxu0 0
        %1304 = vmatpush1.bf16.msra.mxu0 0
        %1305 = vmatprep.subr.bf16.mxu0 0
        %1306 = vmatpush1.bf16.msra.mxu0 0
        %1307 = vmatprep.subr.bf16.mxu0 0
        %1308 = vmatpush1.bf16.msra.mxu0 0
        %1309 = vmatprep.subr.bf16.mxu0 0
        %1310 = vmatpush1.bf16.msra.mxu0 0
        %1311 = vmatprep.subr.bf16.mxu0 0
        %1312 = vmatpush1.bf16.msra.mxu0 0
        %1313 = vmatprep.subr.bf16.mxu0 0
        %1314 = vmatpush1.bf16.msra.mxu0 0
        %1315 = vmatprep.subr.bf16.mxu0 0
        %1316 = vmatpush1.bf16.msra.mxu0 0
        %1317 = vmatprep.subr.bf16.mxu0 0
        %1318 = vmatpush1.bf16.msra.mxu0 0
        %1319 = vmatprep.subr.bf16.mxu0 0
        %1320 = vmatpush1.bf16.msra.mxu0 0
        %1321 = vmatprep.subr.bf16.mxu0 0
        %1322 = vmatpush1.bf16.msra.mxu0 0
        %1323 = vmatprep.mubr.bf16.mxu0 0
        %1324 = vmatmul.mubr.bf16.gmra.mrb[0].mxu0 %v1289
        %v1325 = vpop.f32.mrb[0].mxu0
        %v1326 = vadd.f32 %v1271, %v1325
        %v1327 = vpop.f32.mrb[0].mxu0
        %v1328 = vpop.f32.mrb[0].mxu0
        %v1329 = vadd.f32 %v1274, %v1328
        %v1330 = vpop.f32.mrb[0].mxu0
        %1331 = vdwg.mxu0
        %s1332 = scalar_lea.vmem [#allocation3], 192
        %v1333 = vld [vmem:[%s1332] sm:$0xf]
        %v1334 = vld [vmem:[%s1332 + $0x4] sm:$0xf]
        %v1335 = vld [vmem:[%s1332 + $0x8] sm:$0xf]
        %v1336 = vld [vmem:[%s1332 + $0xc] sm:$0xf]
        %v1337 = vrot.slane %v1207, 1
        %v1338 = vrot.slane %v1208, 1
        %v1339 = vsel %vm468, %v1337, %v1338
        %v1344 = vunpack.c.l.b16 %v1333
        %v1345 = vunpack.c.l.b16 %v1334
        %v1346 = vunpack.c.l.b16 %v1335
        %v1347 = vunpack.c.l.b16 %v1336
        %v1348 = vpack.c.b16 %v1345, %v1344
        %v1349 = vpack.c.b16 %v1347, %v1346
        %v1353 = vsel %vm363, %v1339, 0
        %1355 = vmatprep.subr.bf16.mxu0 0
        %1356 = vmatpush1.bf16.msra.mxu0 %v1348
        %1357 = vmatprep.subr.bf16.mxu0 0
        %1358 = vmatpush1.bf16.msra.mxu0 %v1349
        %1359 = vmatprep.subr.bf16.mxu0 0
        %1360 = vmatpush1.bf16.msra.mxu0 0
        %1361 = vmatprep.subr.bf16.mxu0 0
        %1362 = vmatpush1.bf16.msra.mxu0 0
        %1363 = vmatprep.subr.bf16.mxu0 0
        %1364 = vmatpush1.bf16.msra.mxu0 0
        %1365 = vmatprep.subr.bf16.mxu0 0
        %1366 = vmatpush1.bf16.msra.mxu0 0
        %1367 = vmatprep.subr.bf16.mxu0 0
        %1368 = vmatpush1.bf16.msra.mxu0 0
        %1369 = vmatprep.subr.bf16.mxu0 0
        %1370 = vmatpush1.bf16.msra.mxu0 0
        %1371 = vmatprep.subr.bf16.mxu0 0
        %1372 = vmatpush1.bf16.msra.mxu0 0
        %1373 = vmatprep.subr.bf16.mxu0 0
        %1374 = vmatpush1.bf16.msra.mxu0 0
        %1375 = vmatprep.subr.bf16.mxu0 0
        %1376 = vmatpush1.bf16.msra.mxu0 0
        %1377 = vmatprep.subr.bf16.mxu0 0
        %1378 = vmatpush1.bf16.msra.mxu0 0
        %1379 = vmatprep.subr.bf16.mxu0 0
        %1380 = vmatpush1.bf16.msra.mxu0 0
        %1381 = vmatprep.subr.bf16.mxu0 0
        %1382 = vmatpush1.bf16.msra.mxu0 0
        %1383 = vmatprep.subr.bf16.mxu0 0
        %1384 = vmatpush1.bf16.msra.mxu0 0
        %1385 = vmatprep.subr.bf16.mxu0 0
        %1386 = vmatpush1.bf16.msra.mxu0 0
        %1387 = vmatprep.mubr.bf16.mxu0 0
        %1388 = vmatmul.mubr.bf16.gmra.mrb[0].mxu0 %v1353
        %v1389 = vpop.f32.mrb[0].mxu0
        %v1390 = vadd.f32 0.0, %v1389
        %v1391 = vpop.f32.mrb[0].mxu0
        %v1392 = vpop.f32.mrb[0].mxu0
        %v1393 = vadd.f32 0.0, %v1392
        %v1394 = vpop.f32.mrb[0].mxu0
        %1395 = vdwg.mxu0
        %v1396 = vadd.f32 %v1326, %v1390
        %v1397 = vadd.f32 %v1329, %v1393
        %s1398 = scalar_lea.vmem [#allocation3], 208
        %v1399 = vld [vmem:[%s1398] sm:$0xf]
        %v1400 = vld [vmem:[%s1398 + $0x4] sm:$0xf]
        %v1401 = vld [vmem:[%s1398 + $0x8] sm:$0xf]
        %v1402 = vld [vmem:[%s1398 + $0xc] sm:$0xf]
        %v1403 = vrot.slane %v1210, 1
        %v1404 = vrot.slane %v1212, 2
        %v1405 = vor.u32 %v1403, %v1404
        %v1406 = vshrl.u32 %v1208, 16
        %v1408 = vrot.slane %v1406, 1
        %v1409 = vrot.slane %v1217, 2
        %v1410 = vor.u32 %v1408, %v1409
        %v1411 = vsel %vm535, %v1405, %v1410
        %v1416 = vunpack.c.l.b16 %v1399
        %v1417 = vunpack.c.l.b16 %v1400
        %v1418 = vunpack.c.l.b16 %v1401
        %v1419 = vunpack.c.l.b16 %v1402
        %v1420 = vpack.c.b16 %v1417, %v1416
        %v1421 = vpack.c.b16 %v1419, %v1418
        %v1425 = vsel %vm363, %v1411, 0
        %1427 = vmatprep.subr.bf16.mxu0 0
        %1428 = vmatpush1.bf16.msra.mxu0 %v1420
        %1429 = vmatprep.subr.bf16.mxu0 0
        %1430 = vmatpush1.bf16.msra.mxu0 %v1421
        %1431 = vmatprep.subr.bf16.mxu0 0
        %1432 = vmatpush1.bf16.msra.mxu0 0
        %1433 = vmatprep.subr.bf16.mxu0 0
        %1434 = vmatpush1.bf16.msra.mxu0 0
        %1435 = vmatprep.subr.bf16.mxu0 0
        %1436 = vmatpush1.bf16.msra.mxu0 0
        %1437 = vmatprep.subr.bf16.mxu0 0
        %1438 = vmatpush1.bf16.msra.mxu0 0
        %1439 = vmatprep.subr.bf16.mxu0 0
        %1440 = vmatpush1.bf16.msra.mxu0 0
        %1441 = vmatprep.subr.bf16.mxu0 0
        %1442 = vmatpush1.bf16.msra.mxu0 0
        %1443 = vmatprep.subr.bf16.mxu0 0
        %1444 = vmatpush1.bf16.msra.mxu0 0
        %1445 = vmatprep.subr.bf16.mxu0 0
        %1446 = vmatpush1.bf16.msra.mxu0 0
        %1447 = vmatprep.subr.bf16.mxu0 0
        %1448 = vmatpush1.bf16.msra.mxu0 0
        %1449 = vmatprep.subr.bf16.mxu0 0
        %1450 = vmatpush1.bf16.msra.mxu0 0
        %1451 = vmatprep.subr.bf16.mxu0 0
        %1452 = vmatpush1.bf16.msra.mxu0 0
        %1453 = vmatprep.subr.bf16.mxu0 0
        %1454 = vmatpush1.bf16.msra.mxu0 0
        %1455 = vmatprep.subr.bf16.mxu0 0
        %1456 = vmatpush1.bf16.msra.mxu0 0
        %1457 = vmatprep.subr.bf16.mxu0 0
        %1458 = vmatpush1.bf16.msra.mxu0 0
        %1459 = vmatprep.mubr.bf16.mxu0 0
        %1460 = vmatmul.mubr.bf16.gmra.mrb[0].mxu0 %v1425
        %v1461 = vpop.f32.mrb[0].mxu0
        %v1462 = vadd.f32 0.0, %v1461
        %v1463 = vpop.f32.mrb[0].mxu0
        %v1464 = vpop.f32.mrb[0].mxu0
        %v1465 = vadd.f32 0.0, %v1464
        %v1466 = vpop.f32.mrb[0].mxu0
        %1467 = vdwg.mxu0
        %v1468 = vadd.f32 %v1396, %v1462
        %v1469 = vadd.f32 %v1397, %v1465
        %s1470 = scalar_lea.vmem [#allocation3], 224
        %v1471 = vld [vmem:[%s1470] sm:$0xf]
        %v1472 = vld [vmem:[%s1470 + $0x4] sm:$0xf]
        %v1473 = vld [vmem:[%s1470 + $0x8] sm:$0xf]
        %v1474 = vld [vmem:[%s1470 + $0xc] sm:$0xf]
        %v1475 = vrot.slane %v1207, 2
        %v1476 = vrot.slane %v1208, 2
        %v1477 = vsel %vm608, %v1475, %v1476
        %v1482 = vunpack.c.l.b16 %v1471
        %v1483 = vunpack.c.l.b16 %v1472
        %v1484 = vunpack.c.l.b16 %v1473
        %v1485 = vunpack.c.l.b16 %v1474
        %v1486 = vpack.c.b16 %v1483, %v1482
        %v1487 = vpack.c.b16 %v1485, %v1484
        %v1491 = vsel %vm363, %v1477, 0
        %1493 = vmatprep.subr.bf16.mxu0 0
        %1494 = vmatpush1.bf16.msra.mxu0 %v1486
        %1495 = vmatprep.subr.bf16.mxu0 0
        %1496 = vmatpush1.bf16.msra.mxu0 %v1487
        %1497 = vmatprep.subr.bf16.mxu0 0
        %1498 = vmatpush1.bf16.msra.mxu0 0
        %1499 = vmatprep.subr.bf16.mxu0 0
        %1500 = vmatpush1.bf16.msra.mxu0 0
        %1501 = vmatprep.subr.bf16.mxu0 0
        %1502 = vmatpush1.bf16.msra.mxu0 0
        %1503 = vmatprep.subr.bf16.mxu0 0
        %1504 = vmatpush1.bf16.msra.mxu0 0
        %1505 = vmatprep.subr.bf16.mxu0 0
        %1506 = vmatpush1.bf16.msra.mxu0 0
        %1507 = vmatprep.subr.bf16.mxu0 0
        %1508 = vmatpush1.bf16.msra.mxu0 0
        %1509 = vmatprep.subr.bf16.mxu0 0
        %1510 = vmatpush1.bf16.msra.mxu0 0
        %1511 = vmatprep.subr.bf16.mxu0 0
        %1512 = vmatpush1.bf16.msra.mxu0 0
        %1513 = vmatprep.subr.bf16.mxu0 0
        %1514 = vmatpush1.bf16.msra.mxu0 0
        %1515 = vmatprep.subr.bf16.mxu0 0
        %1516 = vmatpush1.bf16.msra.mxu0 0
        %1517 = vmatprep.subr.bf16.mxu0 0
        %1518 = vmatpush1.bf16.msra.mxu0 0
        %1519 = vmatprep.subr.bf16.mxu0 0
        %1520 = vmatpush1.bf16.msra.mxu0 0
        %1521 = vmatprep.subr.bf16.mxu0 0
        %1522 = vmatpush1.bf16.msra.mxu0 0
        %1523 = vmatprep.subr.bf16.mxu0 0
        %1524 = vmatpush1.bf16.msra.mxu0 0
        %1525 = vmatprep.mubr.bf16.mxu0 0
        %1526 = vmatmul.mubr.bf16.gmra.mrb[0].mxu0 %v1491
        %v1527 = vpop.f32.mrb[0].mxu0
        %v1528 = vadd.f32 0.0, %v1527
        %v1529 = vpop.f32.mrb[0].mxu0
        %v1530 = vpop.f32.mrb[0].mxu0
        %v1531 = vadd.f32 0.0, %v1530
        %v1532 = vpop.f32.mrb[0].mxu0
        %1533 = vdwg.mxu0
        %v1534 = vadd.f32 %v1468, %v1528
        %v1535 = vadd.f32 %v1469, %v1531
        %s1536 = scalar_lea.vmem %s2, 2
        %v1537 = vld [vmem:[%s1536] sm:$0x1]
        %v1539 = vlaneseq
        %v1540 = vshrl.u32 %v1539, 7
        %v1541 = vsub.s32 0, %v1540
        %v1542 = vrot.slane %v1537, %v1541
        %v1544 = vadd.f32 %v1534, %v1542
        %v1545 = vadd.f32 %v1535, %v1542
        %v1546 = vsel %vm363, %v1544, 0.0
        %1547 = vadd.xlane.f32.xlu0 %v1546
        %v1548 = vpop.xlane.xlu0 %1547
        %v1549 = vsel %vm363, %v1545, 0.0
        %1550 = vadd.xlane.f32.xlu0 %v1549
        %v1551 = vpop.xlane.xlu0 %1550
        %v1552 = vmul.f32 %v1548, %v685
        %v1553 = vmul.f32 %v1551, %v685
        %v1554 = vsub.f32 %v1544, %v1552
        %v1555 = vsub.f32 %v1545, %v1553
        %v1556 = vmul.f32 %v1554, %v1554
        %v1557 = vmul.f32 %v1555, %v1555
        %v1558 = vsel %vm363, %v1556, 0.0
        %1559 = vadd.xlane.f32.xlu0 %v1558
        %v1560 = vpop.xlane.xlu0 %1559
        %v1561 = vsel %vm363, %v1557, 0.0
        %1562 = vadd.xlane.f32.xlu0 %v1561
        %v1563 = vpop.xlane.xlu0 %1562
        %v1564 = vmul.f32 %v1560, %v685
        %v1565 = vmul.f32 %v1563, %v685
        %v1566 = vadd.f32 %v1564, 1e-05
        %v1567 = vadd.f32 %v1565, 1e-05
        %v1568 = vrsqrt.pop %v1566
        %v1569 = vrsqrt.pop %v1567
        %v1570 = vmul.f32 %v1554, %v1568
        %v1571 = vmul.f32 %v1555, %v1569
        %s1572 = scalar_lea.vmem %s3, 2
        %v1573 = vld [vmem:[%s1572] sm:$0x1]
        %v1575 = vlaneseq
        %v1576 = vshrl.u32 %v1575, 7
        %v1577 = vsub.s32 0, %v1576
        %v1578 = vrot.slane %v1573, %v1577
        %v1580 = vmul.f32 %v1570, %v1578
        %v1581 = vmul.f32 %v1571, %v1578
        %s1582 = scalar_lea.vmem %s4, 2
        %v1583 = vld [vmem:[%s1582] sm:$0x1]
        %v1585 = vlaneseq
        %v1586 = vshrl.u32 %v1585, 7
        %v1587 = vsub.s32 0, %v1586
        %v1588 = vrot.slane %v1583, %v1587
        %v1590 = vadd.f32 %v1580, %v1588
        %v1591 = vadd.f32 %v1581, %v1588
        %vm1592 = vcmp.gt.f32.partialorder %v1590, 0.0
        %vm1593 = vcmp.gt.f32.partialorder %v1591, 0.0
        %v1594 = vmul.f32 %v1590, 0.2
        %v1595 = vmul.f32 %v1591, 0.2
        %v1596 = vsel %vm1592, %v1590, %v1594
        %v1597 = vsel %vm1593, %v1591, %v1595
        %v1598 = vmul.f32 %v1596, %v733
        %v1599 = vmul.f32 %v1597, %v738
        %v1600 = vpack.c.bf16 %v1599, %v1598
        %v1602 = vunpack.c.l.b16 %v1600
        %v1603 = vunpack.c.h.b16 %v1600
        %v1604 = vpack.c.b16 %v1602, %v1602
        %v1605 = vpack.c.b16 %v1603, %v1603
        %1608 = vst.msk [vmem:[%s274] sm:$0xf] %vm315, %v1604
        %1609 = vst.msk [vmem:[%s274 + $0x4] sm:$0xf] %vm315, %v1605
        %s1610 = sand.u32 %s165, 1
        %s1611 = scalar_lea.sflag [#allocation5], %s1610
        %s1612 = sand.u32 %s165, 1
        %s1613 = smul.addr %s1612, 8
        %s1614 = scalar_lea.vmem [#allocation6], %s1613
        // Predicated region
        $region49: #{tpu_custom_call.1} parent=43 // pred_check
          %p1615 = pneg %p175
        $region50: #{tpu_custom_call.1} parent=43 // pred_check_branch
          %1617 = sbr.rel (%p1615) target = $region52
        $region51: #{tpu_custom_call.1} parent=43 // pred_region
          %s1619 = ssub.s32 128, 128
          %1620 = vsyncadd %s1611, %s1619
          %s1621 = smul.addr %s21, 2
          %s1622 = smul.addr %s1621, 64
          %s1623 = scalar_lea.hbm %s6, %s1622
          %s1624 = sshll.u32 %s1614, 4
          %s1625 = int_to_ptr.vmem [resolvable:$true] %s1624
          %1630 = dma.vmem_to_hbm [thread:$0]  %s1625, 128, %s1623, %s1611, 64, 64, 4
        $region52: #{tpu_custom_call.1} parent=43 // pred_fallthru
          _
      $region44: #{tpu_custom_call.1} parent=5 // pred_fallthru
        _
      %p1631 = scmp.le.s32.totalorder 2, %s16
      // Predicated region
      $region53: #{tpu_custom_call.1} parent=5 // pred_check
        %p1632 = pneg %p1631
      $region54: #{tpu_custom_call.1} parent=5 // pred_check_branch
        %1634 = sbr.rel (%p1632) target = $region56
      $region55: #{tpu_custom_call.1} parent=5 // pred_region
        %s1635 = ssub.s32 %s16, 2
        // Predicated region
        $region57: #{tpu_custom_call.1} parent=55 // pred_check
          %p1636 = pneg %p181
        $region58: #{tpu_custom_call.1} parent=55 // pred_check_branch
          %1638 = sbr.rel (%p1636) target = $region60
        $region59: #{tpu_custom_call.1} parent=55 // pred_region
          %s1639 = sand.u32 %s166, 1
          %s1640 = scalar_lea.sflag [#allocation5], %s1639
          %s1641 = sand.u32 %s166, 1
          %s1642 = smul.addr %s1641, 8
          %s1643 = scalar_lea.vmem [#allocation6], %s1642
          %1644 = dma.done %s1640, 128
        $region60: #{tpu_custom_call.1} parent=55 // pred_fallthru
          _
      $region56: #{tpu_custom_call.1} parent=5 // pred_fallthru
        _
    $region6: #{tpu_custom_call.1} parent=1 // loop_footer
      %s20 = sadd.s32 1, %s16
    $region7: #{tpu_custom_call.1} parent=1 // loop_footer_branch
      %15 = sbr.rel target = $region3
    $region8: #{tpu_custom_call.1} parent=1 // loop_exit
      _
    %1645 = vsyncpa [#allocation4], 1
    %s1646 = scalar_lea.sflag [#allocation4], 1
    %1647 = vsyncpa %s1646, 1
    %1648 = vsyncpa [#allocation5], 1
    %s1649 = scalar_lea.sflag [#allocation5], 1
    %1650 = vsyncpa %s1649, 1

// kernel: tpu_custom_call.1
$region0: #{tpu_custom_call.1}
  #allocation0 [shape = 'u32[]', space=smem, size = 0x4, offset = 0x4, fixed_abs, tag = 'smem constant byte address 0x4 - core index']
  #allocation1 [shape = 'u32[144,128]{1,0:T(1,128)}', space=vmem, size = 0x12000, scoped, tag = 'internal scratch']
  #allocation2 [shape = 'bf16[20,32]{1,0:T(8,128)(2,1)}', space=vmem, size = 0x1800, scoped, tag = 'scratch operand']
  %s0 = inlined_call_operand.vmem [shape: f32[2,16,32], index: 0, kind: input, shape index: {}]
  %s1 = inlined_call_operand.hbm [shape: bf16[15,32,32], index: 1, kind: input, shape index: {}]
  %s2 = inlined_call_operand.vmem [shape: f32[3,1,32], index: 2, kind: input, shape index: {}]
  %s3 = inlined_call_operand.vmem [shape: f32[3,1,32], index: 3, kind: input, shape index: {}]
  %s4 = inlined_call_operand.vmem [shape: f32[3,1,32], index: 4, kind: input, shape index: {}]
  %s5 = inlined_call_operand.vmem [shape: f32[2,16,1], index: 5, kind: input, shape index: {}]
  %s6 = inlined_call_operand.hbm [shape: bf16[2,16,32], index: 6, kind: output, shape index: {}]
  %s7 = sld [smem:[#allocation0]]
  $region61: #{tpu_custom_call.1} parent=0
    _
  %s9 = ssub.s32 1, %s7
  %s10 = scalar_select 0, %s9, %s7
  $region1: #{tpu_custom_call.1} parent=0
    #allocation3 [shape = 'u8[122880]{0}', space=vmem, size = 0x1e000, scoped, tag = 'input window, operand 1, single buffered']
    #allocation4 [shape = 's32[2]{0}', space=sflag, size = 0x8, scoped, tag = 'scoped memory for tpu_custom_call.1']
    #allocation5 [shape = 's32[2]{0}', space=sflag, size = 0x8, scoped, tag = 'scoped memory for tpu_custom_call.1']
    #allocation6 [shape = 'u8[8192]{0}', space=vmem, size = 0x2000, scoped, tag = 'output window, operand 0']
    %11 = vsyncpa [#allocation4], 0
    %12 = vsyncpa [#allocation5], 0
    %s13 = scalar_lea.sflag [#allocation5], 1
    %14 = vsyncpa %s13, 0
    loop: start=0, step=1, limit=4
    $region2: #{tpu_custom_call.1} parent=1 // loop_pre_header
      _
    $region3: #{tpu_custom_call.1} parent=1 // loop_header
      %s16 = sphi 0, %s20
      %p17 = scmp.ge.s32.totalorder %s16, 4
      %s26 = sphi 0, %s28
      %s29 = sphi 0, %s26
      %s30 = sphi 0, %s29
      %s46 = sphi 0, %s30
      %s50 = sphi 0, %s50
      %s52 = sphi 0, %s50
      %s53 = sphi 0, %s52
      %s67 = sphi 0, %s53
      %s71 = sphi 0, %s71
      %s73 = sphi 0, %s71
      %s74 = sphi 0, %s73
      %s88 = sphi 0, %s74
      %s92 = sphi 0, %s92
      %s94 = sphi 0, %s92
      %s95 = sphi 0, %s94
      %s109 = sphi 0, %s95
      %s113 = sphi 0, %s113
      %s115 = sphi 0, %s113
      %s116 = sphi 0, %s115
      %s130 = sphi 0, %s116
      %s136 = sphi 0, %s138
      %s139 = sphi 0, %s136
      %s140 = sphi 0, %s139
      %s156 = sphi 0, %s140
      %s162 = sphi 0, %s164
      %s165 = sphi 0, %s162
      %s166 = sphi 0, %s165
      %s182 = sphi 0, %s166
    $region4: #{tpu_custom_call.1} parent=1 // loop_header_branch
      %19 = sbr.rel (%p17) target = $region8
    $region5: #{tpu_custom_call.1} parent=1 // loop_body
      %s21 = ssub.s32 %s16, 1
      %s22 = ssub.s32 %s16, 2
      %s23 = sadd.s32 %s16, 1
      %s24 = ssub.s32 %s16, %s23
      %p25 = scmp.eq.s32.totalorder %s24, 0
      %s27 = sadd.s32 %s26, 1
      %s28 = scalar_select %p25, %s26, %s27
      %p31 = pneg %p25
      %p32 = scmp.eq.s32.totalorder %s16, 1
      %p33 = por %p31, %p32
      %p34 = scmp.ne.s32.totalorder %s26, %s29
      %p35 = scmp.eq.s32.totalorder %s16, 0
      %p36 = por %p34, %p35
      %p37 = scmp.ne.s32.totalorder %s26, %s29
      %p38 = scmp.eq.s32.totalorder %s21, 1
      %p39 = por %p37, %p38
      %p40 = scmp.ne.s32.totalorder %s29, %s30
      %p41 = scmp.eq.s32.totalorder %s21, 0
      %p42 = por %p40, %p41
      %p43 = scmp.ne.s32.totalorder %s29, %s30
      %p44 = scmp.eq.s32.totalorder %s22, 1
      %p45 = por %p43, %p44
      %p47 = scmp.ne.s32.totalorder %s30, %s46
      %p48 = scmp.eq.s32.totalorder %s22, 0
      %p49 = por %p47, %p48
      %s51 = sadd.s32 %s50, 1
      %p54 = scmp.eq.s32.totalorder %s16, 1
      %p55 = scmp.ne.s32.totalorder %s50, %s52
      %p56 = scmp.eq.s32.totalorder %s16, 0
      %p57 = por %p55, %p56
      %p58 = scmp.ne.s32.totalorder %s50, %s52
      %p59 = scmp.eq.s32.totalorder %s21, 1
      %p60 = por %p58, %p59
      %p61 = scmp.ne.s32.totalorder %s52, %s53
      %p62 = scmp.eq.s32.totalorder %s21, 0
      %p63 = por %p61, %p62
      %p64 = scmp.ne.s32.totalorder %s52, %s53
      %p65 = scmp.eq.s32.totalorder %s22, 1
      %p66 = por %p64, %p65
      %p68 = scmp.ne.s32.totalorder %s53, %s67
      %p69 = scmp.eq.s32.totalorder %s22, 0
      %p70 = por %p68, %p69
      %s72 = sadd.s32 %s71, 1
      %p75 = scmp.eq.s32.totalorder %s16, 1
      %p76 = scmp.ne.s32.totalorder %s71, %s73
      %p77 = scmp.eq.s32.totalorder %s16, 0
      %p78 = por %p76, %p77
      %p79 = scmp.ne.s32.totalorder %s71, %s73
      %p80 = scmp.eq.s32.totalorder %s21, 1
      %p81 = por %p79, %p80
      %p82 = scmp.ne.s32.totalorder %s73, %s74
      %p83 = scmp.eq.s32.totalorder %s21, 0
      %p84 = por %p82, %p83
      %p85 = scmp.ne.s32.totalorder %s73, %s74
      %p86 = scmp.eq.s32.totalorder %s22, 1
      %p87 = por %p85, %p86
      %p89 = scmp.ne.s32.totalorder %s74, %s88
      %p90 = scmp.eq.s32.totalorder %s22, 0
      %p91 = por %p89, %p90
      %s93 = sadd.s32 %s92, 1
      %p96 = scmp.eq.s32.totalorder %s16, 1
      %p97 = scmp.ne.s32.totalorder %s92, %s94
      %p98 = scmp.eq.s32.totalorder %s16, 0
      %p99 = por %p97, %p98
      %p100 = scmp.ne.s32.totalorder %s92, %s94
      %p101 = scmp.eq.s32.totalorder %s21, 1
      %p102 = por %p100, %p101
      %p103 = scmp.ne.s32.totalorder %s94, %s95
      %p104 = scmp.eq.s32.totalorder %s21, 0
      %p105 = por %p103, %p104
      %p106 = scmp.ne.s32.totalorder %s94, %s95
      %p107 = scmp.eq.s32.totalorder %s22, 1
      %p108 = por %p106, %p107
      %p110 = scmp.ne.s32.totalorder %s95, %s109
      %p111 = scmp.eq.s32.totalorder %s22, 0
      %p112 = por %p110, %p111
      %s114 = sadd.s32 %s113, 1
      %p117 = scmp.eq.s32.totalorder %s16, 1
      %p118 = scmp.ne.s32.totalorder %s113, %s115
      %p119 = scmp.eq.s32.totalorder %s16, 0
      %p120 = por %p118, %p119
      %p121 = scmp.ne.s32.totalorder %s113, %s115
      %p122 = scmp.eq.s32.totalorder %s21, 1
      %p123 = por %p121, %p122
      %p124 = scmp.ne.s32.totalorder %s115, %s116
      %p125 = scmp.eq.s32.totalorder %s21, 0
      %p126 = por %p124, %p125
      %p127 = scmp.ne.s32.totalorder %s115, %s116
      %p128 = scmp.eq.s32.totalorder %s22, 1
      %p129 = por %p127, %p128
      %p131 = scmp.ne.s32.totalorder %s116, %s130
      %p132 = scmp.eq.s32.totalorder %s22, 0
      %p133 = por %p131, %p132
      %s134 = ssub.s32 %s16, %s23
      %p135 = scmp.eq.s32.totalorder %s134, 0
      %s137 = sadd.s32 %s136, 1
      %s138 = scalar_select %p135, %s136, %s137
      %p141 = pneg %p135
      %p142 = scmp.eq.s32.totalorder %s16, 1
      %p143 = por %p141, %p142
      %p144 = scmp.ne.s32.totalorder %s136, %s139
      %p145 = scmp.eq.s32.totalorder %s16, 0
      %p146 = por %p144, %p145
      %p147 = scmp.ne.s32.totalorder %s136, %s139
      %p148 = scmp.eq.s32.totalorder %s21, 1
      %p149 = por %p147, %p148
      %p150 = scmp.ne.s32.totalorder %s139, %s140
      %p151 = scmp.eq.s32.totalorder %s21, 0
      %p152 = por %p150, %p151
      %p153 = scmp.ne.s32.totalorder %s139, %s140
      %p154 = scmp.eq.s32.totalorder %s22, 1
      %p155 = por %p153, %p154
      %p157 = scmp.ne.s32.totalorder %s140, %s156
      %p158 = scmp.eq.s32.totalorder %s22, 0
      %p159 = por %p157, %p158
      %s160 = ssub.s32 %s16, %s23
      %p161 = scmp.eq.s32.totalorder %s160, 0
      %s163 = sadd.s32 %s162, 1
      %s164 = scalar_select %p161, %s162, %s163
      %p167 = pneg %p161
      %p168 = scmp.eq.s32.totalorder %s16, 1
      %p169 = por %p167, %p168
      %p170 = scmp.ne.s32.totalorder %s162, %s165
      %p171 = scmp.eq.s32.totalorder %s16, 0
      %p172 = por %p170, %p171
      %p173 = scmp.ne.s32.totalorder %s162, %s165
      %p174 = scmp.eq.s32.totalorder %s21, 1
      %p175 = por %p173, %p174
      %p176 = scmp.ne.s32.totalorder %s165, %s166
      %p177 = scmp.eq.s32.totalorder %s21, 0
      %p178 = por %p176, %p177
      %p179 = scmp.ne.s32.totalorder %s165, %s166
      %p180 = scmp.eq.s32.totalorder %s22, 1
      %p181 = por %p179, %p180
      %p183 = scmp.ne.s32.totalorder %s166, %s182
      %p184 = scmp.eq.s32.totalorder %s22, 0
      %p185 = por %p183, %p184
      %p186 = scmp.le.s32.totalorder 1, %s16
      %p187 = scmp.lt.s32.totalorder %s16, 3
      %p188 = pnand %p186, %p187
      %p189 = pneg %p188
      // Predicated region
      $region9: #{tpu_custom_call.1} parent=5 // pred_check
        _
      $region10: #{tpu_custom_call.1} parent=5 // pred_check_branch
        %191 = sbr.rel (%p188) target = $region12
      $region11: #{tpu_custom_call.1} parent=5 // pred_region
        %s192 = ssub.s32 %s16, 1
        // Predicated region
        $region13: #{tpu_custom_call.1} parent=11 // pred_check
          %p193 = pneg %p63
        $region14: #{tpu_custom_call.1} parent=11 // pred_check_branch
          %195 = sbr.rel (%p193) target = $region16
        $region15: #{tpu_custom_call.1} parent=11 // pred_region
          %s197 = ssub.s32 3840, 3840
          %198 = vsyncadd [#allocation4], %s197
          %s199 = sshll.u32 [#allocation3], 4
          %s200 = int_to_ptr.vmem [resolvable:$true] %s199
          %205 = dma.hbm_to_vmem [thread:$0]  %s1, 3840, %s200, [#allocation4], 64, 64, 4
        $region16: #{tpu_custom_call.1} parent=11 // pred_fallthru
          _
        // Predicated region
        $region17: #{tpu_custom_call.1} parent=11 // pred_check
          %p206 = pneg %p84
        $region18: #{tpu_custom_call.1} parent=11 // pred_check_branch
          %208 = sbr.rel (%p206) target = $region20
        $region19: #{tpu_custom_call.1} parent=11 // pred_region
          _
        $region20: #{tpu_custom_call.1} parent=11 // pred_fallthru
          _
        // Predicated region
        $region21: #{tpu_custom_call.1} parent=11 // pred_check
          %p209 = pneg %p105
        $region22: #{tpu_custom_call.1} parent=11 // pred_check_branch
          %211 = sbr.rel (%p209) target = $region24
        $region23: #{tpu_custom_call.1} parent=11 // pred_region
          _
        $region24: #{tpu_custom_call.1} parent=11 // pred_fallthru
          _
        // Predicated region
        $region25: #{tpu_custom_call.1} parent=11 // pred_check
          %p212 = pneg %p126
        $region26: #{tpu_custom_call.1} parent=11 // pred_check_branch
          %214 = sbr.rel (%p212) target = $region28
        $region27: #{tpu_custom_call.1} parent=11 // pred_region
          _
        $region28: #{tpu_custom_call.1} parent=11 // pred_fallthru
          _
      $region12: #{tpu_custom_call.1} parent=5 // pred_fallthru
        _
      %p215 = scmp.lt.s32.totalorder %s16, 2
      // Predicated region
      $region29: #{tpu_custom_call.1} parent=5 // pred_check
        %p216 = pneg %p215
      $region30: #{tpu_custom_call.1} parent=5 // pred_check_branch
        %218 = sbr.rel (%p216) target = $region32
      $region31: #{tpu_custom_call.1} parent=5 // pred_region
        // Predicated region
        $region33: #{tpu_custom_call.1} parent=31 // pred_check
          %p219 = pneg %p36
        $region34: #{tpu_custom_call.1} parent=31 // pred_check_branch
          %221 = sbr.rel (%p219) target = $region36
        $region35: #{tpu_custom_call.1} parent=31 // pred_region
          %p222 = scmp.lt.s32.totalorder %s16, 1
          %s223 = scalar_select %p222, %s16, 1
          %s224 = smul.addr %s223, 2
          %s225 = smul.addr %s224, 8
          %s226 = scalar_lea.vmem %s0, %s225
        $region36: #{tpu_custom_call.1} parent=31 // pred_fallthru
          _
        // Predicated region
        $region37: #{tpu_custom_call.1} parent=31 // pred_check
          %p227 = pneg %p146
        $region38: #{tpu_custom_call.1} parent=31 // pred_check_branch
          %229 = sbr.rel (%p227) target = $region40
        $region39: #{tpu_custom_call.1} parent=31 // pred_region
          %p230 = scmp.lt.s32.totalorder %s16, 1
          %s231 = scalar_select %p230, %s16, 1
          %s232 = smul.addr %s231, 2
          %s233 = smul.addr %s232, 8
          %s234 = scalar_lea.vmem %s5, %s233
        $region40: #{tpu_custom_call.1} parent=31 // pred_fallthru
          _
      $region32: #{tpu_custom_call.1} parent=5 // pred_fallthru
        _
      %p235 = scmp.le.s32.totalorder 1, %s16
      %p236 = scmp.lt.s32.totalorder %s16, 3
      %p237 = pnand %p235, %p236
      %p238 = pneg %p237
      // Predicated region
      $region41: #{tpu_custom_call.1} parent=5 // pred_check
        _
      $region42: #{tpu_custom_call.1} parent=5 // pred_check_branch
        %240 = sbr.rel (%p237) target = $region44
      $region43: #{tpu_custom_call.1} parent=5 // pred_region
        %s241 = ssub.s32 %s16, 1
        // Predicated region
        $region45: #{tpu_custom_call.1} parent=43 // pred_check
          %p242 = pneg %p63
        $region46: #{tpu_custom_call.1} parent=43 // pred_check_branch
          %244 = sbr.rel (%p242) target = $region48
        $region47: #{tpu_custom_call.1} parent=43 // pred_region
          %245 = dma.done [#allocation4], 3840
        $region48: #{tpu_custom_call.1} parent=43 // pred_fallthru
          _
        %p246 = scmp.lt.s32.totalorder %s21, 1
        %s247 = scalar_select %p246, %s21, 1
        %s248 = smul.addr %s247, 2
        %s249 = smul.addr %s248, 8
        %s250 = scalar_lea.vmem %s0, %s249
        %p251 = pneg %p42
        %p252 = pneg %p39
        %p253 = pneg %p63
        %p254 = pneg %p60
        %p255 = pneg %p84
        %p256 = pneg %p81
        %p257 = pneg %p105
        %p258 = pneg %p102
        %p259 = pneg %p126
        %p260 = pneg %p123
        %p261 = scmp.lt.s32.totalorder %s21, 1
        %s262 = scalar_select %p261, %s21, 1
        %s263 = smul.addr %s262, 2
        %s264 = smul.addr %s263, 8
        %s265 = scalar_lea.vmem %s5, %s264
        %p266 = pneg %p152
        %p267 = pneg %p149
        %p268 = pneg %p178
        %p269 = pneg %p175
        %s270 = sand.u32 %s165, 1
        %s271 = scalar_lea.sflag [#allocation5], %s270
        %s272 = sand.u32 %s165, 1
        %s273 = smul.addr %s272, 8
        %s274 = scalar_lea.vmem [#allocation6], %s273
        %p275 = scmp.lt.s32.totalorder %s21, 1
        %s276 = scalar_select %p275, %s21, 1
        %s277 = smul.addr %s276, 2
        %s278 = smul.addr %s277, 8
        %s279 = scalar_lea.vmem %s0, %s278
        %p280 = scmp.lt.s32.totalorder %s21, 1
        %s281 = scalar_select %p280, %s21, 1
        %s282 = smul.addr %s281, 2
        %s283 = smul.addr %s282, 8
        %s284 = scalar_lea.vmem %s5, %s283
        %vm286 = vcmask 253952
        %287 = vst.msk [vmem:[#allocation2] sm:$0x1] %vm286, 0
        %vm288 = vcmask 254977
        %289 = vst.msk [vmem:[#allocation2 + $0x8] sm:$0x2] %vm288, 0
        %v290 = vld [vmem:[%s284] sm:$0xff]
        %v291 = vld [vmem:[%s284 + $0x8] sm:$0xff]
        %v292 = vsub.f32 1.0, %v290
        %v293 = vsub.f32 1.0, %v291
        %v294 = vld [vmem:[%s279] sm:$0xff]
        %v295 = vld [vmem:[%s279 + $0x8] sm:$0xff]
        %v296 = vpack.c.bf16 %v295, %v294
        %v298 = vunpack.c.l.b16 %v296
        %v299 = vunpack.c.h.b16 %v296
        %v300 = vpack.c.b16 %v298, %v298
        %v301 = vpack.c.b16 %v299, %v299
        %vm302 = vcmask 1040384
        %vm303 = vcmask 1044484
        %vm304 = vmor %vm302, %vm303
        %v305 = vrot.slane %v300, 7
        %v306 = vrot.slane %v305, 4
        %v307 = vrot.slane %v301, 7
        %v308 = vsel %vm304, %v306, %v307
        %v309 = vrot.slane %v307, 4
        %vm313 = vcmask 257025
        %314 = vst.msk [vmem:[#allocation2] sm:$0xe] %vm313, %v305
        %vm315 = vcmask 257024
        %316 = vst.msk [vmem:[#allocation2 + $0x4] sm:$0xf] %vm315, %v308
        %317 = vst.msk [vmem:[#allocation2 + $0x8] sm:$0x1] %vm286, %v309
        %v318 = vld [vmem:[#allocation2] sm:$0xf]
        %v319 = vld [vmem:[#allocation2 + $0x4] sm:$0xf]
        %v320 = vld [vmem:[#allocation2 + $0x8] sm:$0x3]
        %v321 = vld [vmem:[#allocation3] sm:$0xf]
        %v322 = vld [vmem:[#allocation3 + $0x4] sm:$0xf]
        %v323 = vld [vmem:[#allocation3 + $0x8] sm:$0xf]
        %v324 = vld [vmem:[#allocation3 + $0xc] sm:$0xf]
        %s325 = scalar_lea.vmem [#allocation3], 16
        %v326 = vld [vmem:[%s325] sm:$0xf]
        %v327 = vld [vmem:[%s325 + $0x4] sm:$0xf]
        %v328 = vld [vmem:[%s325 + $0x8] sm:$0xf]
        %v329 = vld [vmem:[%s325 + $0xc] sm:$0xf]
        %v333 = vunpack.c.l.b16 %v318
        %v334 = vunpack.c.l.b16 %v319
        %v335 = vunpack.c.l.b16 %v320
        %v336 = vpack.c.b16 %v334, %v333
        %v337 = vpack.c.b16 %v335, %v335
        %vm338 = vsmask.f32 7424
        %v340 = vshrl.u32 %v336, 16
        %v342 = vshll.u32 %v336, 16
        %v344 = vrot.slane %v342, 1
        %v345 = vor.u32 %v340, %v344
        %v347 = vshll.u32 %v337, 16
        %v349 = vrot.slane %v347, 1
        %v350 = vsel %vm338, %v345, %v349
        %v355 = vunpack.c.l.b16 %v326
        %v356 = vunpack.c.l.b16 %v327
        %v357 = vunpack.c.l.b16 %v328
        %v358 = vunpack.c.l.b16 %v329
        %v359 = vpack.c.b16 %v356, %v355
        %v360 = vpack.c.b16 %v358, %v357
        %vm363 = vcmask 261120
        %v365 = vsel %vm363, %v350, 0
        %367 = vmatprep.subr.bf16.mxu0 0
        %368 = vmatpush1.bf16.msra.mxu0 %v359
        %369 = vmatprep.subr.bf16.mxu0 0
        %370 = vmatpush1.bf16.msra.mxu0 %v360
        %371 = vmatprep.subr.bf16.mxu0 0
        %372 = vmatpush1.bf16.msra.mxu0 0
        %373 = vmatprep.subr.bf16.mxu0 0
        %374 = vmatpush1.bf16.msra.mxu0 0
        %375 = vmatprep.subr.bf16.mxu0 0
        %376 = vmatpush1.bf16.msra.mxu0 0
        %377 = vmatprep.subr.bf16.mxu0 0
        %378 = vmatpush1.bf16.msra.mxu0 0
        %379 = vmatprep.subr.bf16.mxu0 0
        %380 = vmatpush1.bf16.msra.mxu0 0
        %381 = vmatprep.subr.bf16.mxu0 0
        %382 = vmatpush1.bf16.msra.mxu0 0
        %383 = vmatprep.subr.bf16.mxu0 0
        %384 = vmatpush1.bf16.msra.mxu0 0
        %385 = vmatprep.subr.bf16.mxu0 0
        %386 = vmatpush1.bf16.msra.mxu0 0
        %387 = vmatprep.subr.bf16.mxu0 0
        %388 = vmatpush1.bf16.msra.mxu0 0
        %389 = vmatprep.subr.bf16.mxu0 0
        %390 = vmatpush1.bf16.msra.mxu0 0
        %391 = vmatprep.subr.bf16.mxu0 0
        %392 = vmatpush1.bf16.msra.mxu0 0
        %393 = vmatprep.subr.bf16.mxu0 0
        %394 = vmatpush1.bf16.msra.mxu0 0
        %395 = vmatprep.subr.bf16.mxu0 0
        %396 = vmatpush1.bf16.msra.mxu0 0
        %397 = vmatprep.subr.bf16.mxu0 0
        %398 = vmatpush1.bf16.msra.mxu0 0
        %399 = vmatprep.mubr.bf16.mxu0 0
        %400 = vmatmul.mubr.bf16.gmra.mrb[0].mxu0 %v365
        %v401 = vpop.f32.mrb[0].mxu0
        %v402 = vadd.f32 0.0, %v401
        %v403 = vpop.f32.mrb[0].mxu0
        %v404 = vpop.f32.mrb[0].mxu0
        %v405 = vadd.f32 0.0, %v404
        %v406 = vpop.f32.mrb[0].mxu0
        %407 = vdwg.mxu0
        %v412 = vunpack.c.l.b16 %v321
        %v413 = vunpack.c.l.b16 %v322
        %v414 = vunpack.c.l.b16 %v323
        %v415 = vunpack.c.l.b16 %v324
        %v416 = vpack.c.b16 %v413, %v412
        %v417 = vpack.c.b16 %v415, %v414
        %v420 = vsel %vm363, %v336, 0
        %422 = vmatprep.subr.bf16.mxu0 0
        %423 = vmatpush1.bf16.msra.mxu0 %v416
        %424 = vmatprep.subr.bf16.mxu0 0
        %425 = vmatpush1.bf16.msra.mxu0 %v417
        %426 = vmatprep.subr.bf16.mxu0 0
        %427 = vmatpush1.bf16.msra.mxu0 0
        %428 = vmatprep.subr.bf16.mxu0 0
        %429 = vmatpush1.bf16.msra.mxu0 0
        %430 = vmatprep.subr.bf16.mxu0 0
        %431 = vmatpush1.bf16.msra.mxu0 0
        %432 = vmatprep.subr.bf16.mxu0 0
        %433 = vmatpush1.bf16.msra.mxu0 0
        %434 = vmatprep.subr.bf16.mxu0 0
        %435 = vmatpush1.bf16.msra.mxu0 0
        %436 = vmatprep.subr.bf16.mxu0 0
        %437 = vmatpush1.bf16.msra.mxu0 0
        %438 = vmatprep.subr.bf16.mxu0 0
        %439 = vmatpush1.bf16.msra.mxu0 0
        %440 = vmatprep.subr.bf16.mxu0 0
        %441 = vmatpush1.bf16.msra.mxu0 0
        %442 = vmatprep.subr.bf16.mxu0 0
        %443 = vmatpush1.bf16.msra.mxu0 0
        %444 = vmatprep.subr.bf16.mxu0 0
        %445 = vmatpush1.bf16.msra.mxu0 0
        %446 = vmatprep.subr.bf16.mxu0 0
        %447 = vmatpush1.bf16.msra.mxu0 0
        %448 = vmatprep.subr.bf16.mxu0 0
        %449 = vmatpush1.bf16.msra.mxu0 0
        %450 = vmatprep.subr.bf16.mxu0 0
        %451 = vmatpush1.bf16.msra.mxu0 0
        %452 = vmatprep.subr.bf16.mxu0 0
        %453 = vmatpush1.bf16.msra.mxu0 0
        %454 = vmatprep.mubr.bf16.mxu0 0
        %455 = vmatmul.mubr.bf16.gmra.mrb[0].mxu0 %v420
        %v456 = vpop.f32.mrb[0].mxu0
        %v457 = vadd.f32 %v402, %v456
        %v458 = vpop.f32.mrb[0].mxu0
        %v459 = vpop.f32.mrb[0].mxu0
        %v460 = vadd.f32 %v405, %v459
        %v461 = vpop.f32.mrb[0].mxu0
        %462 = vdwg.mxu0
        %s463 = scalar_lea.vmem [#allocation3], 32
        %v464 = vld [vmem:[%s463] sm:$0xf]
        %v465 = vld [vmem:[%s463 + $0x4] sm:$0xf]
        %v466 = vld [vmem:[%s463 + $0x8] sm:$0xf]
        %v467 = vld [vmem:[%s463 + $0xc] sm:$0xf]
        %vm468 = vcmask 1046528
        %v469 = vrot.slane %v336, 1
        %v470 = vrot.slane %v337, 1
        %v471 = vsel %vm468, %v469, %v470
        %v476 = vunpack.c.l.b16 %v464
        %v477 = vunpack.c.l.b16 %v465
        %v478 = vunpack.c.l.b16 %v466
        %v479 = vunpack.c.l.b16 %v467
        %v480 = vpack.c.b16 %v477, %v476
        %v481 = vpack.c.b16 %v479, %v478
        %v485 = vsel %vm363, %v471, 0
        %487 = vmatprep.subr.bf16.mxu0 0
        %488 = vmatpush1.bf16.msra.mxu0 %v480
        %489 = vmatprep.subr.bf16.mxu0 0
        %490 = vmatpush1.bf16.msra.mxu0 %v481
        %491 = vmatprep.subr.bf16.mxu0 0
        %492 = vmatpush1.bf16.msra.mxu0 0
        %493 = vmatprep.subr.bf16.mxu0 0
        %494 = vmatpush1.bf16.msra.mxu0 0
        %495 = vmatprep.subr.bf16.mxu0 0
        %496 = vmatpush1.bf16.msra.mxu0 0
        %497 = vmatprep.subr.bf16.mxu0 0
        %498 = vmatpush1.bf16.msra.mxu0 0
        %499 = vmatprep.subr.bf16.mxu0 0
        %500 = vmatpush1.bf16.msra.mxu0 0
        %501 = vmatprep.subr.bf16.mxu0 0
        %502 = vmatpush1.bf16.msra.mxu0 0
        %503 = vmatprep.subr.bf16.mxu0 0
        %504 = vmatpush1.bf16.msra.mxu0 0
        %505 = vmatprep.subr.bf16.mxu0 0
        %506 = vmatpush1.bf16.msra.mxu0 0
        %507 = vmatprep.subr.bf16.mxu0 0
        %508 = vmatpush1.bf16.msra.mxu0 0
        %509 = vmatprep.subr.bf16.mxu0 0
        %510 = vmatpush1.bf16.msra.mxu0 0
        %511 = vmatprep.subr.bf16.mxu0 0
        %512 = vmatpush1.bf16.msra.mxu0 0
        %513 = vmatprep.subr.bf16.mxu0 0
        %514 = vmatpush1.bf16.msra.mxu0 0
        %515 = vmatprep.subr.bf16.mxu0 0
        %516 = vmatpush1.bf16.msra.mxu0 0
        %517 = vmatprep.subr.bf16.mxu0 0
        %518 = vmatpush1.bf16.msra.mxu0 0
        %519 = vmatprep.mubr.bf16.mxu0 0
        %520 = vmatmul.mubr.bf16.gmra.mrb[0].mxu0 %v485
        %v521 = vpop.f32.mrb[0].mxu0
        %v522 = vadd.f32 0.0, %v521
        %v523 = vpop.f32.mrb[0].mxu0
        %v524 = vpop.f32.mrb[0].mxu0
        %v525 = vadd.f32 0.0, %v524
        %v526 = vpop.f32.mrb[0].mxu0
        %527 = vdwg.mxu0
        %v528 = vadd.f32 %v457, %v522
        %v529 = vadd.f32 %v460, %v525
        %s530 = scalar_lea.vmem [#allocation3], 48
        %v531 = vld [vmem:[%s530] sm:$0xf]
        %v532 = vld [vmem:[%s530 + $0x4] sm:$0xf]
        %v533 = vld [vmem:[%s530 + $0x8] sm:$0xf]
        %v534 = vld [vmem:[%s530 + $0xc] sm:$0xf]
        %vm535 = vsmask.f32 6400
        %v536 = vrot.slane %v340, 1
        %v537 = vrot.slane %v342, 2
        %v538 = vor.u32 %v536, %v537
        %v539 = vshrl.u32 %v337, 16
        %v541 = vrot.slane %v539, 1
        %v542 = vrot.slane %v347, 2
        %v543 = vor.u32 %v541, %v542
        %v544 = vsel %vm535, %v538, %v543
        %v549 = vunpack.c.l.b16 %v531
        %v550 = vunpack.c.l.b16 %v532
        %v551 = vunpack.c.l.b16 %v533
        %v552 = vunpack.c.l.b16 %v534
        %v553 = vpack.c.b16 %v550, %v549
        %v554 = vpack.c.b16 %v552, %v551
        %v558 = vsel %vm363, %v544, 0
        %560 = vmatprep.subr.bf16.mxu0 0
        %561 = vmatpush1.bf16.msra.mxu0 %v553
        %562 = vmatprep.subr.bf16.mxu0 0
        %563 = vmatpush1.bf16.msra.mxu0 %v554
        %564 = vmatprep.subr.bf16.mxu0 0
        %565 = vmatpush1.bf16.msra.mxu0 0
        %566 = vmatprep.subr.bf16.mxu0 0
        %567 = vmatpush1.bf16.msra.mxu0 0
        %568 = vmatprep.subr.bf16.mxu0 0
        %569 = vmatpush1.bf16.msra.mxu0 0
        %570 = vmatprep.subr.bf16.mxu0 0
        %571 = vmatpush1.bf16.msra.mxu0 0
        %572 = vmatprep.subr.bf16.mxu0 0
        %573 = vmatpush1.bf16.msra.mxu0 0
        %574 = vmatprep.subr.bf16.mxu0 0
        %575 = vmatpush1.bf16.msra.mxu0 0
        %576 = vmatprep.subr.bf16.mxu0 0
        %577 = vmatpush1.bf16.msra.mxu0 0
        %578 = vmatprep.subr.bf16.mxu0 0
        %579 = vmatpush1.bf16.msra.mxu0 0
        %580 = vmatprep.subr.bf16.mxu0 0
        %581 = vmatpush1.bf16.msra.mxu0 0
        %582 = vmatprep.subr.bf16.mxu0 0
        %583 = vmatpush1.bf16.msra.mxu0 0
        %584 = vmatprep.subr.bf16.mxu0 0
        %585 = vmatpush1.bf16.msra.mxu0 0
        %586 = vmatprep.subr.bf16.mxu0 0
        %587 = vmatpush1.bf16.msra.mxu0 0
        %588 = vmatprep.subr.bf16.mxu0 0
        %589 = vmatpush1.bf16.msra.mxu0 0
        %590 = vmatprep.subr.bf16.mxu0 0
        %591 = vmatpush1.bf16.msra.mxu0 0
        %592 = vmatprep.mubr.bf16.mxu0 0
        %593 = vmatmul.mubr.bf16.gmra.mrb[0].mxu0 %v558
        %v594 = vpop.f32.mrb[0].mxu0
        %v595 = vadd.f32 0.0, %v594
        %v596 = vpop.f32.mrb[0].mxu0
        %v597 = vpop.f32.mrb[0].mxu0
        %v598 = vadd.f32 0.0, %v597
        %v599 = vpop.f32.mrb[0].mxu0
        %600 = vdwg.mxu0
        %v601 = vadd.f32 %v528, %v595
        %v602 = vadd.f32 %v529, %v598
        %s603 = scalar_lea.vmem [#allocation3], 64
        %v604 = vld [vmem:[%s603] sm:$0xf]
        %v605 = vld [vmem:[%s603 + $0x4] sm:$0xf]
        %v606 = vld [vmem:[%s603 + $0x8] sm:$0xf]
        %v607 = vld [vmem:[%s603 + $0xc] sm:$0xf]
        %vm608 = vcmask 1045504
        %v609 = vrot.slane %v336, 2
        %v610 = vrot.slane %v337, 2
        %v611 = vsel %vm608, %v609, %v610
        %v616 = vunpack.c.l.b16 %v604
        %v617 = vunpack.c.l.b16 %v605
        %v618 = vunpack.c.l.b16 %v606
        %v619 = vunpack.c.l.b16 %v607
        %v620 = vpack.c.b16 %v617, %v616
        %v621 = vpack.c.b16 %v619, %v618
        %v625 = vsel %vm363, %v611, 0
        %627 = vmatprep.subr.bf16.mxu0 0
        %628 = vmatpush1.bf16.msra.mxu0 %v620
        %629 = vmatprep.subr.bf16.mxu0 0
        %630 = vmatpush1.bf16.msra.mxu0 %v621
        %631 = vmatprep.subr.bf16.mxu0 0
        %632 = vmatpush1.bf16.msra.mxu0 0
        %633 = vmatprep.subr.bf16.mxu0 0
        %634 = vmatpush1.bf16.msra.mxu0 0
        %635 = vmatprep.subr.bf16.mxu0 0
        %636 = vmatpush1.bf16.msra.mxu0 0
        %637 = vmatprep.subr.bf16.mxu0 0
        %638 = vmatpush1.bf16.msra.mxu0 0
        %639 = vmatprep.subr.bf16.mxu0 0
        %640 = vmatpush1.bf16.msra.mxu0 0
        %641 = vmatprep.subr.bf16.mxu0 0
        %642 = vmatpush1.bf16.msra.mxu0 0
        %643 = vmatprep.subr.bf16.mxu0 0
        %644 = vmatpush1.bf16.msra.mxu0 0
        %645 = vmatprep.subr.bf16.mxu0 0
        %646 = vmatpush1.bf16.msra.mxu0 0
        %647 = vmatprep.subr.bf16.mxu0 0
        %648 = vmatpush1.bf16.msra.mxu0 0
        %649 = vmatprep.subr.bf16.mxu0 0
        %650 = vmatpush1.bf16.msra.mxu0 0
        %651 = vmatprep.subr.bf16.mxu0 0
        %652 = vmatpush1.bf16.msra.mxu0 0
        %653 = vmatprep.subr.bf16.mxu0 0
        %654 = vmatpush1.bf16.msra.mxu0 0
        %655 = vmatprep.subr.bf16.mxu0 0
        %656 = vmatpush1.bf16.msra.mxu0 0
        %657 = vmatprep.subr.bf16.mxu0 0
        %658 = vmatpush1.bf16.msra.mxu0 0
        %659 = vmatprep.mubr.bf16.mxu0 0
        %660 = vmatmul.mubr.bf16.gmra.mrb[0].mxu0 %v625
        %v661 = vpop.f32.mrb[0].mxu0
        %v662 = vadd.f32 0.0, %v661
        %v663 = vpop.f32.mrb[0].mxu0
        %v664 = vpop.f32.mrb[0].mxu0
        %v665 = vadd.f32 0.0, %v664
        %v666 = vpop.f32.mrb[0].mxu0
        %667 = vdwg.mxu0
        %v668 = vadd.f32 %v601, %v662
        %v669 = vadd.f32 %v602, %v665
        %v670 = vld [vmem:[%s2] sm:$0x1]
        %v672 = vlaneseq
        %v673 = vshrl.u32 %v672, 7
        %v674 = vsub.s32 0, %v673
        %v675 = vrot.slane %v670, %v674
        %v677 = vadd.f32 %v668, %v675
        %v678 = vadd.f32 %v669, %v675
        %v679 = vsel %vm363, %v677, 0.0
        %680 = vadd.xlane.f32.xlu0 %v679
        %v681 = vpop.xlane.xlu0 %680
        %v682 = vsel %vm363, %v678, 0.0
        %683 = vadd.xlane.f32.xlu0 %v682
        %v684 = vpop.xlane.xlu0 %683
        %v685 = vrcp.pop 32.0
        %v686 = vmul.f32 %v681, %v685
        %v687 = vmul.f32 %v684, %v685
        %v688 = vsub.f32 %v677, %v686
        %v689 = vsub.f32 %v678, %v687
        %v690 = vmul.f32 %v688, %v688
        %v691 = vmul.f32 %v689, %v689
        %v692 = vsel %vm363, %v690, 0.0
        %693 = vadd.xlane.f32.xlu0 %v692
        %v694 = vpop.xlane.xlu0 %693
        %v695 = vsel %vm363, %v691, 0.0
        %696 = vadd.xlane.f32.xlu0 %v695
        %v697 = vpop.xlane.xlu0 %696
        %v698 = vmul.f32 %v694, %v685
        %v699 = vmul.f32 %v697, %v685
        %v700 = vadd.f32 %v698, 1e-05
        %v701 = vadd.f32 %v699, 1e-05
        %v702 = vrsqrt.pop %v700
        %v703 = vrsqrt.pop %v701
        %v704 = vmul.f32 %v688, %v702
        %v705 = vmul.f32 %v689, %v703
        %v706 = vld [vmem:[%s3] sm:$0x1]
        %v708 = vlaneseq
        %v709 = vshrl.u32 %v708, 7
        %v710 = vsub.s32 0, %v709
        %v711 = vrot.slane %v706, %v710
        %v713 = vmul.f32 %v704, %v711
        %v714 = vmul.f32 %v705, %v711
        %v715 = vld [vmem:[%s4] sm:$0x1]
        %v717 = vlaneseq
        %v718 = vshrl.u32 %v717, 7
        %v719 = vsub.s32 0, %v718
        %v720 = vrot.slane %v715, %v719
        %v722 = vadd.f32 %v713, %v720
        %v723 = vadd.f32 %v714, %v720
        %vm724 = vcmp.gt.f32.partialorder %v722, 0.0
        %vm725 = vcmp.gt.f32.partialorder %v723, 0.0
        %v726 = vmul.f32 %v722, 0.2
        %v727 = vmul.f32 %v723, 0.2
        %v728 = vsel %vm724, %v722, %v726
        %v729 = vsel %vm725, %v723, %v727
        %731 = vset.pattern.permute.xlu0 0
        %732 = vperm.xlu0 %731, %v292
        %v733 = vpop.permute.xlu0 %732
        %736 = vset.pattern.permute.xlu0 0
        %737 = vperm.xlu0 %736, %v293
        %v738 = vpop.permute.xlu0 %737
        %v740 = vmul.f32 %v728, %v733
        %v741 = vmul.f32 %v729, %v738
        %v742 = vpack.c.bf16 %v741, %v740
        %v744 = vunpack.c.l.b16 %v742
        %v745 = vunpack.c.h.b16 %v742
        %v746 = vpack.c.b16 %v744, %v744
        %v747 = vpack.c.b16 %v745, %v745
        %v748 = vrot.slane %v746, 7
        %v749 = vrot.slane %v748, 4
        %v750 = vrot.slane %v747, 7
        %v751 = vsel %vm304, %v749, %v750
        %v752 = vrot.slane %v750, 4
        %756 = vst.msk [vmem:[#allocation2] sm:$0xe] %vm313, %v748
        %757 = vst.msk [vmem:[#allocation2 + $0x4] sm:$0xf] %vm315, %v751
        %758 = vst.msk [vmem:[#allocation2 + $0x8] sm:$0x1] %vm286, %v752
        %v759 = vld [vmem:[#allocation2] sm:$0xf]
        %v760 = vld [vmem:[#allocation2 + $0x4] sm:$0xf]
        %v761 = vld [vmem:[#allocation2 + $0x8] sm:$0x3]
        %s762 = scalar_lea.vmem [#allocation3], 80
        %v763 = vld [vmem:[%s762] sm:$0xf]
        %v764 = vld [vmem:[%s762 + $0x4] sm:$0xf]
        %v765 = vld [vmem:[%s762 + $0x8] sm:$0xf]
        %v766 = vld [vmem:[%s762 + $0xc] sm:$0xf]
        %s767 = scalar_lea.vmem [#allocation3], 96
        %v768 = vld [vmem:[%s767] sm:$0xf]
        %v769 = vld [vmem:[%s767 + $0x4] sm:$0xf]
        %v770 = vld [vmem:[%s767 + $0x8] sm:$0xf]
        %v771 = vld [vmem:[%s767 + $0xc] sm:$0xf]
        %v775 = vunpack.c.l.b16 %v759
        %v776 = vunpack.c.l.b16 %v760
        %v777 = vunpack.c.l.b16 %v761
        %v778 = vpack.c.b16 %v776, %v775
        %v779 = vpack.c.b16 %v777, %v777
        %v781 = vshrl.u32 %v778, 16
        %v783 = vshll.u32 %v778, 16
        %v785 = vrot.slane %v783, 1
        %v786 = vor.u32 %v781, %v785
        %v788 = vshll.u32 %v779, 16
        %v790 = vrot.slane %v788, 1
        %v791 = vsel %vm338, %v786, %v790
        %v796 = vunpack.c.l.b16 %v768
        %v797 = vunpack.c.l.b16 %v769
        %v798 = vunpack.c.l.b16 %v770
        %v799 = vunpack.c.l.b16 %v771
        %v800 = vpack.c.b16 %v797, %v796
        %v801 = vpack.c.b16 %v799, %v798
        %v805 = vsel %vm363, %v791, 0
        %807 = vmatprep.subr.bf16.mxu0 0
        %808 = vmatpush1.bf16.msra.mxu0 %v800
        %809 = vmatprep.subr.bf16.mxu0 0
        %810 = vmatpush1.bf16.msra.mxu0 %v801
        %811 = vmatprep.subr.bf16.mxu0 0
        %812 = vmatpush1.bf16.msra.mxu0 0
        %813 = vmatprep.subr.bf16.mxu0 0
        %814 = vmatpush1.bf16.msra.mxu0 0
        %815 = vmatprep.subr.bf16.mxu0 0
        %816 = vmatpush1.bf16.msra.mxu0 0
        %817 = vmatprep.subr.bf16.mxu0 0
        %818 = vmatpush1.bf16.msra.mxu0 0
        %819 = vmatprep.subr.bf16.mxu0 0
        %820 = vmatpush1.bf16.msra.mxu0 0
        %821 = vmatprep.subr.bf16.mxu0 0
        %822 = vmatpush1.bf16.msra.mxu0 0
        %823 = vmatprep.subr.bf16.mxu0 0
        %824 = vmatpush1.bf16.msra.mxu0 0
        %825 = vmatprep.subr.bf16.mxu0 0
        %826 = vmatpush1.bf16.msra.mxu0 0
        %827 = vmatprep.subr.bf16.mxu0 0
        %828 = vmatpush1.bf16.msra.mxu0 0
        %829 = vmatprep.subr.bf16.mxu0 0
        %830 = vmatpush1.bf16.msra.mxu0 0
        %831 = vmatprep.subr.bf16.mxu0 0
        %832 = vmatpush1.bf16.msra.mxu0 0
        %833 = vmatprep.subr.bf16.mxu0 0
        %834 = vmatpush1.bf16.msra.mxu0 0
        %835 = vmatprep.subr.bf16.mxu0 0
        %836 = vmatpush1.bf16.msra.mxu0 0
        %837 = vmatprep.subr.bf16.mxu0 0
        %838 = vmatpush1.bf16.msra.mxu0 0
        %839 = vmatprep.mubr.bf16.mxu0 0
        %840 = vmatmul.mubr.bf16.gmra.mrb[0].mxu0 %v805
        %v841 = vpop.f32.mrb[0].mxu0
        %v842 = vadd.f32 0.0, %v841
        %v843 = vpop.f32.mrb[0].mxu0
        %v844 = vpop.f32.mrb[0].mxu0
        %v845 = vadd.f32 0.0, %v844
        %v846 = vpop.f32.mrb[0].mxu0
        %847 = vdwg.mxu0
        %v852 = vunpack.c.l.b16 %v763
        %v853 = vunpack.c.l.b16 %v764
        %v854 = vunpack.c.l.b16 %v765
        %v855 = vunpack.c.l.b16 %v766
        %v856 = vpack.c.b16 %v853, %v852
        %v857 = vpack.c.b16 %v855, %v854
        %v860 = vsel %vm363, %v778, 0
        %862 = vmatprep.subr.bf16.mxu0 0
        %863 = vmatpush1.bf16.msra.mxu0 %v856
        %864 = vmatprep.subr.bf16.mxu0 0
        %865 = vmatpush1.bf16.msra.mxu0 %v857
        %866 = vmatprep.subr.bf16.mxu0 0
        %867 = vmatpush1.bf16.msra.mxu0 0
        %868 = vmatprep.subr.bf16.mxu0 0
        %869 = vmatpush1.bf16.msra.mxu0 0
        %870 = vmatprep.subr.bf16.mxu0 0
        %871 = vmatpush1.bf16.msra.mxu0 0
        %872 = vmatprep.subr.bf16.mxu0 0
        %873 = vmatpush1.bf16.msra.mxu0 0
        %874 = vmatprep.subr.bf16.mxu0 0
        %875 = vmatpush1.bf16.msra.mxu0 0
        %876 = vmatprep.subr.bf16.mxu0 0
        %877 = vmatpush1.bf16.msra.mxu0 0
        %878 = vmatprep.subr.bf16.mxu0 0
        %879 = vmatpush1.bf16.msra.mxu0 0
        %880 = vmatprep.subr.bf16.mxu0 0
        %881 = vmatpush1.bf16.msra.mxu0 0
        %882 = vmatprep.subr.bf16.mxu0 0
        %883 = vmatpush1.bf16.msra.mxu0 0
        %884 = vmatprep.subr.bf16.mxu0 0
        %885 = vmatpush1.bf16.msra.mxu0 0
        %886 = vmatprep.subr.bf16.mxu0 0
        %887 = vmatpush1.bf16.msra.mxu0 0
        %888 = vmatprep.subr.bf16.mxu0 0
        %889 = vmatpush1.bf16.msra.mxu0 0
        %890 = vmatprep.subr.bf16.mxu0 0
        %891 = vmatpush1.bf16.msra.mxu0 0
        %892 = vmatprep.subr.bf16.mxu0 0
        %893 = vmatpush1.bf16.msra.mxu0 0
        %894 = vmatprep.mubr.bf16.mxu0 0
        %895 = vmatmul.mubr.bf16.gmra.mrb[0].mxu0 %v860
        %v896 = vpop.f32.mrb[0].mxu0
        %v897 = vadd.f32 %v842, %v896
        %v898 = vpop.f32.mrb[0].mxu0
        %v899 = vpop.f32.mrb[0].mxu0
        %v900 = vadd.f32 %v845, %v899
        %v901 = vpop.f32.mrb[0].mxu0
        %902 = vdwg.mxu0
        %s903 = scalar_lea.vmem [#allocation3], 112
        %v904 = vld [vmem:[%s903] sm:$0xf]
        %v905 = vld [vmem:[%s903 + $0x4] sm:$0xf]
        %v906 = vld [vmem:[%s903 + $0x8] sm:$0xf]
        %v907 = vld [vmem:[%s903 + $0xc] sm:$0xf]
        %v908 = vrot.slane %v778, 1
        %v909 = vrot.slane %v779, 1
        %v910 = vsel %vm468, %v908, %v909
        %v915 = vunpack.c.l.b16 %v904
        %v916 = vunpack.c.l.b16 %v905
        %v917 = vunpack.c.l.b16 %v906
        %v918 = vunpack.c.l.b16 %v907
        %v919 = vpack.c.b16 %v916, %v915
        %v920 = vpack.c.b16 %v918, %v917
        %v924 = vsel %vm363, %v910, 0
        %926 = vmatprep.subr.bf16.mxu0 0
        %927 = vmatpush1.bf16.msra.mxu0 %v919
        %928 = vmatprep.subr.bf16.mxu0 0
        %929 = vmatpush1.bf16.msra.mxu0 %v920
        %930 = vmatprep.subr.bf16.mxu0 0
        %931 = vmatpush1.bf16.msra.mxu0 0
        %932 = vmatprep.subr.bf16.mxu0 0
        %933 = vmatpush1.bf16.msra.mxu0 0
        %934 = vmatprep.subr.bf16.mxu0 0
        %935 = vmatpush1.bf16.msra.mxu0 0
        %936 = vmatprep.subr.bf16.mxu0 0
        %937 = vmatpush1.bf16.msra.mxu0 0
        %938 = vmatprep.subr.bf16.mxu0 0
        %939 = vmatpush1.bf16.msra.mxu0 0
        %940 = vmatprep.subr.bf16.mxu0 0
        %941 = vmatpush1.bf16.msra.mxu0 0
        %942 = vmatprep.subr.bf16.mxu0 0
        %943 = vmatpush1.bf16.msra.mxu0 0
        %944 = vmatprep.subr.bf16.mxu0 0
        %945 = vmatpush1.bf16.msra.mxu0 0
        %946 = vmatprep.subr.bf16.mxu0 0
        %947 = vmatpush1.bf16.msra.mxu0 0
        %948 = vmatprep.subr.bf16.mxu0 0
        %949 = vmatpush1.bf16.msra.mxu0 0
        %950 = vmatprep.subr.bf16.mxu0 0
        %951 = vmatpush1.bf16.msra.mxu0 0
        %952 = vmatprep.subr.bf16.mxu0 0
        %953 = vmatpush1.bf16.msra.mxu0 0
        %954 = vmatprep.subr.bf16.mxu0 0
        %955 = vmatpush1.bf16.msra.mxu0 0
        %956 = vmatprep.subr.bf16.mxu0 0
        %957 = vmatpush1.bf16.msra.mxu0 0
        %958 = vmatprep.mubr.bf16.mxu0 0
        %959 = vmatmul.mubr.bf16.gmra.mrb[0].mxu0 %v924
        %v960 = vpop.f32.mrb[0].mxu0
        %v961 = vadd.f32 0.0, %v960
        %v962 = vpop.f32.mrb[0].mxu0
        %v963 = vpop.f32.mrb[0].mxu0
        %v964 = vadd.f32 0.0, %v963
        %v965 = vpop.f32.mrb[0].mxu0
        %966 = vdwg.mxu0
        %v967 = vadd.f32 %v897, %v961
        %v968 = vadd.f32 %v900, %v964
        %s969 = scalar_lea.vmem [#allocation3], 128
        %v970 = vld [vmem:[%s969] sm:$0xf]
        %v971 = vld [vmem:[%s969 + $0x4] sm:$0xf]
        %v972 = vld [vmem:[%s969 + $0x8] sm:$0xf]
        %v973 = vld [vmem:[%s969 + $0xc] sm:$0xf]
        %v974 = vrot.slane %v781, 1
        %v975 = vrot.slane %v783, 2
        %v976 = vor.u32 %v974, %v975
        %v977 = vshrl.u32 %v779, 16
        %v979 = vrot.slane %v977, 1
        %v980 = vrot.slane %v788, 2
        %v981 = vor.u32 %v979, %v980
        %v982 = vsel %vm535, %v976, %v981
        %v987 = vunpack.c.l.b16 %v970
        %v988 = vunpack.c.l.b16 %v971
        %v989 = vunpack.c.l.b16 %v972
        %v990 = vunpack.c.l.b16 %v973
        %v991 = vpack.c.b16 %v988, %v987
        %v992 = vpack.c.b16 %v990, %v989
        %v996 = vsel %vm363, %v982, 0
        %998 = vmatprep.subr.bf16.mxu0 0
        %999 = vmatpush1.bf16.msra.mxu0 %v991
        %1000 = vmatprep.subr.bf16.mxu0 0
        %1001 = vmatpush1.bf16.msra.mxu0 %v992
        %1002 = vmatprep.subr.bf16.mxu0 0
        %1003 = vmatpush1.bf16.msra.mxu0 0
        %1004 = vmatprep.subr.bf16.mxu0 0
        %1005 = vmatpush1.bf16.msra.mxu0 0
        %1006 = vmatprep.subr.bf16.mxu0 0
        %1007 = vmatpush1.bf16.msra.mxu0 0
        %1008 = vmatprep.subr.bf16.mxu0 0
        %1009 = vmatpush1.bf16.msra.mxu0 0
        %1010 = vmatprep.subr.bf16.mxu0 0
        %1011 = vmatpush1.bf16.msra.mxu0 0
        %1012 = vmatprep.subr.bf16.mxu0 0
        %1013 = vmatpush1.bf16.msra.mxu0 0
        %1014 = vmatprep.subr.bf16.mxu0 0
        %1015 = vmatpush1.bf16.msra.mxu0 0
        %1016 = vmatprep.subr.bf16.mxu0 0
        %1017 = vmatpush1.bf16.msra.mxu0 0
        %1018 = vmatprep.subr.bf16.mxu0 0
        %1019 = vmatpush1.bf16.msra.mxu0 0
        %1020 = vmatprep.subr.bf16.mxu0 0
        %1021 = vmatpush1.bf16.msra.mxu0 0
        %1022 = vmatprep.subr.bf16.mxu0 0
        %1023 = vmatpush1.bf16.msra.mxu0 0
        %1024 = vmatprep.subr.bf16.mxu0 0
        %1025 = vmatpush1.bf16.msra.mxu0 0
        %1026 = vmatprep.subr.bf16.mxu0 0
        %1027 = vmatpush1.bf16.msra.mxu0 0
        %1028 = vmatprep.subr.bf16.mxu0 0
        %1029 = vmatpush1.bf16.msra.mxu0 0
        %1030 = vmatprep.mubr.bf16.mxu0 0
        %1031 = vmatmul.mubr.bf16.gmra.mrb[0].mxu0 %v996
        %v1032 = vpop.f32.mrb[0].mxu0
        %v1033 = vadd.f32 0.0, %v1032
        %v1034 = vpop.f32.mrb[0].mxu0
        %v1035 = vpop.f32.mrb[0].mxu0
        %v1036 = vadd.f32 0.0, %v1035
        %v1037 = vpop.f32.mrb[0].mxu0
        %1038 = vdwg.mxu0
        %v1039 = vadd.f32 %v967, %v1033
        %v1040 = vadd.f32 %v968, %v1036
        %s1041 = scalar_lea.vmem [#allocation3], 144
        %v1042 = vld [vmem:[%s1041] sm:$0xf]
        %v1043 = vld [vmem:[%s1041 + $0x4] sm:$0xf]
        %v1044 = vld [vmem:[%s1041 + $0x8] sm:$0xf]
        %v1045 = vld [vmem:[%s1041 + $0xc] sm:$0xf]
        %v1046 = vrot.slane %v778, 2
        %v1047 = vrot.slane %v779, 2
        %v1048 = vsel %vm608, %v1046, %v1047
        %v1053 = vunpack.c.l.b16 %v1042
        %v1054 = vunpack.c.l.b16 %v1043
        %v1055 = vunpack.c.l.b16 %v1044
        %v1056 = vunpack.c.l.b16 %v1045
        %v1057 = vpack.c.b16 %v1054, %v1053
        %v1058 = vpack.c.b16 %v1056, %v1055
        %v1062 = vsel %vm363, %v1048, 0
        %1064 = vmatprep.subr.bf16.mxu0 0
        %1065 = vmatpush1.bf16.msra.mxu0 %v1057
        %1066 = vmatprep.subr.bf16.mxu0 0
        %1067 = vmatpush1.bf16.msra.mxu0 %v1058
        %1068 = vmatprep.subr.bf16.mxu0 0
        %1069 = vmatpush1.bf16.msra.mxu0 0
        %1070 = vmatprep.subr.bf16.mxu0 0
        %1071 = vmatpush1.bf16.msra.mxu0 0
        %1072 = vmatprep.subr.bf16.mxu0 0
        %1073 = vmatpush1.bf16.msra.mxu0 0
        %1074 = vmatprep.subr.bf16.mxu0 0
        %1075 = vmatpush1.bf16.msra.mxu0 0
        %1076 = vmatprep.subr.bf16.mxu0 0
        %1077 = vmatpush1.bf16.msra.mxu0 0
        %1078 = vmatprep.subr.bf16.mxu0 0
        %1079 = vmatpush1.bf16.msra.mxu0 0
        %1080 = vmatprep.subr.bf16.mxu0 0
        %1081 = vmatpush1.bf16.msra.mxu0 0
        %1082 = vmatprep.subr.bf16.mxu0 0
        %1083 = vmatpush1.bf16.msra.mxu0 0
        %1084 = vmatprep.subr.bf16.mxu0 0
        %1085 = vmatpush1.bf16.msra.mxu0 0
        %1086 = vmatprep.subr.bf16.mxu0 0
        %1087 = vmatpush1.bf16.msra.mxu0 0
        %1088 = vmatprep.subr.bf16.mxu0 0
        %1089 = vmatpush1.bf16.msra.mxu0 0
        %1090 = vmatprep.subr.bf16.mxu0 0
        %1091 = vmatpush1.bf16.msra.mxu0 0
        %1092 = vmatprep.subr.bf16.mxu0 0
        %1093 = vmatpush1.bf16.msra.mxu0 0
        %1094 = vmatprep.subr.bf16.mxu0 0
        %1095 = vmatpush1.bf16.msra.mxu0 0
        %1096 = vmatprep.mubr.bf16.mxu0 0
        %1097 = vmatmul.mubr.bf16.gmra.mrb[0].mxu0 %v1062
        %v1098 = vpop.f32.mrb[0].mxu0
        %v1099 = vadd.f32 0.0, %v1098
        %v1100 = vpop.f32.mrb[0].mxu0
        %v1101 = vpop.f32.mrb[0].mxu0
        %v1102 = vadd.f32 0.0, %v1101
        %v1103 = vpop.f32.mrb[0].mxu0
        %1104 = vdwg.mxu0
        %v1105 = vadd.f32 %v1039, %v1099
        %v1106 = vadd.f32 %v1040, %v1102
        %s1107 = scalar_lea.vmem %s2, 1
        %v1108 = vld [vmem:[%s1107] sm:$0x1]
        %v1110 = vlaneseq
        %v1111 = vshrl.u32 %v1110, 7
        %v1112 = vsub.s32 0, %v1111
        %v1113 = vrot.slane %v1108, %v1112
        %v1115 = vadd.f32 %v1105, %v1113
        %v1116 = vadd.f32 %v1106, %v1113
        %v1117 = vsel %vm363, %v1115, 0.0
        %1118 = vadd.xlane.f32.xlu0 %v1117
        %v1119 = vpop.xlane.xlu0 %1118
        %v1120 = vsel %vm363, %v1116, 0.0
        %1121 = vadd.xlane.f32.xlu0 %v1120
        %v1122 = vpop.xlane.xlu0 %1121
        %v1123 = vmul.f32 %v1119, %v685
        %v1124 = vmul.f32 %v1122, %v685
        %v1125 = vsub.f32 %v1115, %v1123
        %v1126 = vsub.f32 %v1116, %v1124
        %v1127 = vmul.f32 %v1125, %v1125
        %v1128 = vmul.f32 %v1126, %v1126
        %v1129 = vsel %vm363, %v1127, 0.0
        %1130 = vadd.xlane.f32.xlu0 %v1129
        %v1131 = vpop.xlane.xlu0 %1130
        %v1132 = vsel %vm363, %v1128, 0.0
        %1133 = vadd.xlane.f32.xlu0 %v1132
        %v1134 = vpop.xlane.xlu0 %1133
        %v1135 = vmul.f32 %v1131, %v685
        %v1136 = vmul.f32 %v1134, %v685
        %v1137 = vadd.f32 %v1135, 1e-05
        %v1138 = vadd.f32 %v1136, 1e-05
        %v1139 = vrsqrt.pop %v1137
        %v1140 = vrsqrt.pop %v1138
        %v1141 = vmul.f32 %v1125, %v1139
        %v1142 = vmul.f32 %v1126, %v1140
        %s1143 = scalar_lea.vmem %s3, 1
        %v1144 = vld [vmem:[%s1143] sm:$0x1]
        %v1146 = vlaneseq
        %v1147 = vshrl.u32 %v1146, 7
        %v1148 = vsub.s32 0, %v1147
        %v1149 = vrot.slane %v1144, %v1148
        %v1151 = vmul.f32 %v1141, %v1149
        %v1152 = vmul.f32 %v1142, %v1149
        %s1153 = scalar_lea.vmem %s4, 1
        %v1154 = vld [vmem:[%s1153] sm:$0x1]
        %v1156 = vlaneseq
        %v1157 = vshrl.u32 %v1156, 7
        %v1158 = vsub.s32 0, %v1157
        %v1159 = vrot.slane %v1154, %v1158
        %v1161 = vadd.f32 %v1151, %v1159
        %v1162 = vadd.f32 %v1152, %v1159
        %vm1163 = vcmp.gt.f32.partialorder %v1161, 0.0
        %vm1164 = vcmp.gt.f32.partialorder %v1162, 0.0
        %v1165 = vmul.f32 %v1161, 0.2
        %v1166 = vmul.f32 %v1162, 0.2
        %v1167 = vsel %vm1163, %v1161, %v1165
        %v1168 = vsel %vm1164, %v1162, %v1166
        %v1169 = vmul.f32 %v1167, %v733
        %v1170 = vmul.f32 %v1168, %v738
        %v1171 = vpack.c.bf16 %v1170, %v1169
        %v1173 = vunpack.c.l.b16 %v1171
        %v1174 = vunpack.c.h.b16 %v1171
        %v1175 = vpack.c.b16 %v1173, %v1173
        %v1176 = vpack.c.b16 %v1174, %v1174
        %v1177 = vrot.slane %v1175, 7
        %v1178 = vrot.slane %v1177, 4
        %v1179 = vrot.slane %v1176, 7
        %v1180 = vsel %vm304, %v1178, %v1179
        %v1181 = vrot.slane %v1179, 4
        %1185 = vst.msk [vmem:[#allocation2] sm:$0xe] %vm313, %v1177
        %1186 = vst.msk [vmem:[#allocation2 + $0x4] sm:$0xf] %vm315, %v1180
        %1187 = vst.msk [vmem:[#allocation2 + $0x8] sm:$0x1] %vm286, %v1181
        %v1188 = vld [vmem:[#allocation2] sm:$0xf]
        %v1189 = vld [vmem:[#allocation2 + $0x4] sm:$0xf]
        %v1190 = vld [vmem:[#allocation2 + $0x8] sm:$0x3]
        %s1191 = scalar_lea.vmem [#allocation3], 160
        %v1192 = vld [vmem:[%s1191] sm:$0xf]
        %v1193 = vld [vmem:[%s1191 + $0x4] sm:$0xf]
        %v1194 = vld [vmem:[%s1191 + $0x8] sm:$0xf]
        %v1195 = vld [vmem:[%s1191 + $0xc] sm:$0xf]
        %s1196 = scalar_lea.vmem [#allocation3], 176
        %v1197 = vld [vmem:[%s1196] sm:$0xf]
        %v1198 = vld [vmem:[%s1196 + $0x4] sm:$0xf]
        %v1199 = vld [vmem:[%s1196 + $0x8] sm:$0xf]
        %v1200 = vld [vmem:[%s1196 + $0xc] sm:$0xf]
        %v1204 = vunpack.c.l.b16 %v1188
        %v1205 = vunpack.c.l.b16 %v1189
        %v1206 = vunpack.c.l.b16 %v1190
        %v1207 = vpack.c.b16 %v1205, %v1204
        %v1208 = vpack.c.b16 %v1206, %v1206
        %v1210 = vshrl.u32 %v1207, 16
        %v1212 = vshll.u32 %v1207, 16
        %v1214 = vrot.slane %v1212, 1
        %v1215 = vor.u32 %v1210, %v1214
        %v1217 = vshll.u32 %v1208, 16
        %v1219 = vrot.slane %v1217, 1
        %v1220 = vsel %vm338, %v1215, %v1219
        %v1225 = vunpack.c.l.b16 %v1197
        %v1226 = vunpack.c.l.b16 %v1198
        %v1227 = vunpack.c.l.b16 %v1199
        %v1228 = vunpack.c.l.b16 %v1200
        %v1229 = vpack.c.b16 %v1226, %v1225
        %v1230 = vpack.c.b16 %v1228, %v1227
        %v1234 = vsel %vm363, %v1220, 0
        %1236 = vmatprep.subr.bf16.mxu0 0
        %1237 = vmatpush1.bf16.msra.mxu0 %v1229
        %1238 = vmatprep.subr.bf16.mxu0 0
        %1239 = vmatpush1.bf16.msra.mxu0 %v1230
        %1240 = vmatprep.subr.bf16.mxu0 0
        %1241 = vmatpush1.bf16.msra.mxu0 0
        %1242 = vmatprep.subr.bf16.mxu0 0
        %1243 = vmatpush1.bf16.msra.mxu0 0
        %1244 = vmatprep.subr.bf16.mxu0 0
        %1245 = vmatpush1.bf16.msra.mxu0 0
        %1246 = vmatprep.subr.bf16.mxu0 0
        %1247 = vmatpush1.bf16.msra.mxu0 0
        %1248 = vmatprep.subr.bf16.mxu0 0
        %1249 = vmatpush1.bf16.msra.mxu0 0
        %1250 = vmatprep.subr.bf16.mxu0 0
        %1251 = vmatpush1.bf16.msra.mxu0 0
        %1252 = vmatprep.subr.bf16.mxu0 0
        %1253 = vmatpush1.bf16.msra.mxu0 0
        %1254 = vmatprep.subr.bf16.mxu0 0
        %1255 = vmatpush1.bf16.msra.mxu0 0
        %1256 = vmatprep.subr.bf16.mxu0 0
        %1257 = vmatpush1.bf16.msra.mxu0 0
        %1258 = vmatprep.subr.bf16.mxu0 0
        %1259 = vmatpush1.bf16.msra.mxu0 0
        %1260 = vmatprep.subr.bf16.mxu0 0
        %1261 = vmatpush1.bf16.msra.mxu0 0
        %1262 = vmatprep.subr.bf16.mxu0 0
        %1263 = vmatpush1.bf16.msra.mxu0 0
        %1264 = vmatprep.subr.bf16.mxu0 0
        %1265 = vmatpush1.bf16.msra.mxu0 0
        %1266 = vmatprep.subr.bf16.mxu0 0
        %1267 = vmatpush1.bf16.msra.mxu0 0
        %1268 = vmatprep.mubr.bf16.mxu0 0
        %1269 = vmatmul.mubr.bf16.gmra.mrb[0].mxu0 %v1234
        %v1270 = vpop.f32.mrb[0].mxu0
        %v1271 = vadd.f32 0.0, %v1270
        %v1272 = vpop.f32.mrb[0].mxu0
        %v1273 = vpop.f32.mrb[0].mxu0
        %v1274 = vadd.f32 0.0, %v1273
        %v1275 = vpop.f32.mrb[0].mxu0
        %1276 = vdwg.mxu0
        %v1281 = vunpack.c.l.b16 %v1192
        %v1282 = vunpack.c.l.b16 %v1193
        %v1283 = vunpack.c.l.b16 %v1194
        %v1284 = vunpack.c.l.b16 %v1195
        %v1285 = vpack.c.b16 %v1282, %v1281
        %v1286 = vpack.c.b16 %v1284, %v1283
        %v1289 = vsel %vm363, %v1207, 0
        %1291 = vmatprep.subr.bf16.mxu0 0
        %1292 = vmatpush1.bf16.msra.mxu0 %v1285
        %1293 = vmatprep.subr.bf16.mxu0 0
        %1294 = vmatpush1.bf16.msra.mxu0 %v1286
        %1295 = vmatprep.subr.bf16.mxu0 0
        %1296 = vmatpush1.bf16.msra.mxu0 0
        %1297 = vmatprep.subr.bf16.mxu0 0
        %1298 = vmatpush1.bf16.msra.mxu0 0
        %1299 = vmatprep.subr.bf16.mxu0 0
        %1300 = vmatpush1.bf16.msra.mxu0 0
        %1301 = vmatprep.subr.bf16.mxu0 0
        %1302 = vmatpush1.bf16.msra.mxu0 0
        %1303 = vmatprep.subr.bf16.mxu0 0
        %1304 = vmatpush1.bf16.msra.mxu0 0
        %1305 = vmatprep.subr.bf16.mxu0 0
        %1306 = vmatpush1.bf16.msra.mxu0 0
        %1307 = vmatprep.subr.bf16.mxu0 0
        %1308 = vmatpush1.bf16.msra.mxu0 0
        %1309 = vmatprep.subr.bf16.mxu0 0
        %1310 = vmatpush1.bf16.msra.mxu0 0
        %1311 = vmatprep.subr.bf16.mxu0 0
        %1312 = vmatpush1.bf16.msra.mxu0 0
        %1313 = vmatprep.subr.bf16.mxu0 0
        %1314 = vmatpush1.bf16.msra.mxu0 0
        %1315 = vmatprep.subr.bf16.mxu0 0
        %1316 = vmatpush1.bf16.msra.mxu0 0
        %1317 = vmatprep.subr.bf16.mxu0 0
        %1318 = vmatpush1.bf16.msra.mxu0 0
        %1319 = vmatprep.subr.bf16.mxu0 0
        %1320 = vmatpush1.bf16.msra.mxu0 0
        %1321 = vmatprep.subr.bf16.mxu0 0
        %1322 = vmatpush1.bf16.msra.mxu0 0
        %1323 = vmatprep.mubr.bf16.mxu0 0
        %1324 = vmatmul.mubr.bf16.gmra.mrb[0].mxu0 %v1289
        %v1325 = vpop.f32.mrb[0].mxu0
        %v1326 = vadd.f32 %v1271, %v1325
        %v1327 = vpop.f32.mrb[0].mxu0
        %v1328 = vpop.f32.mrb[0].mxu0
        %v1329 = vadd.f32 %v1274, %v1328
        %v1330 = vpop.f32.mrb[0].mxu0
        %1331 = vdwg.mxu0
        %s1332 = scalar_lea.vmem [#allocation3], 192
        %v1333 = vld [vmem:[%s1332] sm:$0xf]
        %v1334 = vld [vmem:[%s1332 + $0x4] sm:$0xf]
        %v1335 = vld [vmem:[%s1332 + $0x8] sm:$0xf]
        %v1336 = vld [vmem:[%s1332 + $0xc] sm:$0xf]
        %v1337 = vrot.slane %v1207, 1
        %v1338 = vrot.slane %v1208, 1
        %v1339 = vsel %vm468, %v1337, %v1338
        %v1344 = vunpack.c.l.b16 %v1333
        %v1345 = vunpack.c.l.b16 %v1334
        %v1346 = vunpack.c.l.b16 %v1335
        %v1347 = vunpack.c.l.b16 %v1336
        %v1348 = vpack.c.b16 %v1345, %v1344
        %v1349 = vpack.c.b16 %v1347, %v1346
        %v1353 = vsel %vm363, %v1339, 0
        %1355 = vmatprep.subr.bf16.mxu0 0
        %1356 = vmatpush1.bf16.msra.mxu0 %v1348
        %1357 = vmatprep.subr.bf16.mxu0 0
        %1358 = vmatpush1.bf16.msra.mxu0 %v1349
        %1359 = vmatprep.subr.bf16.mxu0 0
        %1360 = vmatpush1.bf16.msra.mxu0 0
        %1361 = vmatprep.subr.bf16.mxu0 0
        %1362 = vmatpush1.bf16.msra.mxu0 0
        %1363 = vmatprep.subr.bf16.mxu0 0
        %1364 = vmatpush1.bf16.msra.mxu0 0
        %1365 = vmatprep.subr.bf16.mxu0 0
        %1366 = vmatpush1.bf16.msra.mxu0 0
        %1367 = vmatprep.subr.bf16.mxu0 0
        %1368 = vmatpush1.bf16.msra.mxu0 0
        %1369 = vmatprep.subr.bf16.mxu0 0
        %1370 = vmatpush1.bf16.msra.mxu0 0
        %1371 = vmatprep.subr.bf16.mxu0 0
        %1372 = vmatpush1.bf16.msra.mxu0 0
        %1373 = vmatprep.subr.bf16.mxu0 0
        %1374 = vmatpush1.bf16.msra.mxu0 0
        %1375 = vmatprep.subr.bf16.mxu0 0
        %1376 = vmatpush1.bf16.msra.mxu0 0
        %1377 = vmatprep.subr.bf16.mxu0 0
        %1378 = vmatpush1.bf16.msra.mxu0 0
        %1379 = vmatprep.subr.bf16.mxu0 0
        %1380 = vmatpush1.bf16.msra.mxu0 0
        %1381 = vmatprep.subr.bf16.mxu0 0
        %1382 = vmatpush1.bf16.msra.mxu0 0
        %1383 = vmatprep.subr.bf16.mxu0 0
        %1384 = vmatpush1.bf16.msra.mxu0 0
        %1385 = vmatprep.subr.bf16.mxu0 0
        %1386 = vmatpush1.bf16.msra.mxu0 0
        %1387 = vmatprep.mubr.bf16.mxu0 0
        %1388 = vmatmul.mubr.bf16.gmra.mrb[0].mxu0 %v1353
        %v1389 = vpop.f32.mrb[0].mxu0
        %v1390 = vadd.f32 0.0, %v1389
        %v1391 = vpop.f32.mrb[0].mxu0
        %v1392 = vpop.f32.mrb[0].mxu0
        %v1393 = vadd.f32 0.0, %v1392
        %v1394 = vpop.f32.mrb[0].mxu0
        %1395 = vdwg.mxu0
        %v1396 = vadd.f32 %v1326, %v1390
        %v1397 = vadd.f32 %v1329, %v1393
        %s1398 = scalar_lea.vmem [#allocation3], 208
        %v1399 = vld [vmem:[%s1398] sm:$0xf]
        %v1400 = vld [vmem:[%s1398 + $0x4] sm:$0xf]
        %v1401 = vld [vmem:[%s1398 + $0x8] sm:$0xf]
        %v1402 = vld [vmem:[%s1398 + $0xc] sm:$0xf]
        %v1403 = vrot.slane %v1210, 1
        %v1404 = vrot.slane %v1212, 2
        %v1405 = vor.u32 %v1403, %v1404
        %v1406 = vshrl.u32 %v1208, 16
        %v1408 = vrot.slane %v1406, 1
        %v1409 = vrot.slane %v1217, 2
        %v1410 = vor.u32 %v1408, %v1409
        %v1411 = vsel %vm535, %v1405, %v1410
        %v1416 = vunpack.c.l.b16 %v1399
        %v1417 = vunpack.c.l.b16 %v1400
        %v1418 = vunpack.c.l.b16 %v1401
        %v1419 = vunpack.c.l.b16 %v1402
        %v1420 = vpack.c.b16 %v1417, %v1416
        %v1421 = vpack.c.b16 %v1419, %v1418
        %v1425 = vsel %vm363, %v1411, 0
        %1427 = vmatprep.subr.bf16.mxu0 0
        %1428 = vmatpush1.bf16.msra.mxu0 %v1420
        %1429 = vmatprep.subr.bf16.mxu0 0
        %1430 = vmatpush1.bf16.msra.mxu0 %v1421
        %1431 = vmatprep.subr.bf16.mxu0 0
        %1432 = vmatpush1.bf16.msra.mxu0 0
        %1433 = vmatprep.subr.bf16.mxu0 0
        %1434 = vmatpush1.bf16.msra.mxu0 0
        %1435 = vmatprep.subr.bf16.mxu0 0
        %1436 = vmatpush1.bf16.msra.mxu0 0
        %1437 = vmatprep.subr.bf16.mxu0 0
        %1438 = vmatpush1.bf16.msra.mxu0 0
        %1439 = vmatprep.subr.bf16.mxu0 0
        %1440 = vmatpush1.bf16.msra.mxu0 0
        %1441 = vmatprep.subr.bf16.mxu0 0
        %1442 = vmatpush1.bf16.msra.mxu0 0
        %1443 = vmatprep.subr.bf16.mxu0 0
        %1444 = vmatpush1.bf16.msra.mxu0 0
        %1445 = vmatprep.subr.bf16.mxu0 0
        %1446 = vmatpush1.bf16.msra.mxu0 0
        %1447 = vmatprep.subr.bf16.mxu0 0
        %1448 = vmatpush1.bf16.msra.mxu0 0
        %1449 = vmatprep.subr.bf16.mxu0 0
        %1450 = vmatpush1.bf16.msra.mxu0 0
        %1451 = vmatprep.subr.bf16.mxu0 0
        %1452 = vmatpush1.bf16.msra.mxu0 0
        %1453 = vmatprep.subr.bf16.mxu0 0
        %1454 = vmatpush1.bf16.msra.mxu0 0
        %1455 = vmatprep.subr.bf16.mxu0 0
        %1456 = vmatpush1.bf16.msra.mxu0 0
        %1457 = vmatprep.subr.bf16.mxu0 0
        %1458 = vmatpush1.bf16.msra.mxu0 0
        %1459 = vmatprep.mubr.bf16.mxu0 0
        %1460 = vmatmul.mubr.bf16.gmra.mrb[0].mxu0 %v1425
        %v1461 = vpop.f32.mrb[0].mxu0
        %v1462 = vadd.f32 0.0, %v1461
        %v1463 = vpop.f32.mrb[0].mxu0
        %v1464 = vpop.f32.mrb[0].mxu0
        %v1465 = vadd.f32 0.0, %v1464
        %v1466 = vpop.f32.mrb[0].mxu0
        %1467 = vdwg.mxu0
        %v1468 = vadd.f32 %v1396, %v1462
        %v1469 = vadd.f32 %v1397, %v1465
        %s1470 = scalar_lea.vmem [#allocation3], 224
        %v1471 = vld [vmem:[%s1470] sm:$0xf]
        %v1472 = vld [vmem:[%s1470 + $0x4] sm:$0xf]
        %v1473 = vld [vmem:[%s1470 + $0x8] sm:$0xf]
        %v1474 = vld [vmem:[%s1470 + $0xc] sm:$0xf]
        %v1475 = vrot.slane %v1207, 2
        %v1476 = vrot.slane %v1208, 2
        %v1477 = vsel %vm608, %v1475, %v1476
        %v1482 = vunpack.c.l.b16 %v1471
        %v1483 = vunpack.c.l.b16 %v1472
        %v1484 = vunpack.c.l.b16 %v1473
        %v1485 = vunpack.c.l.b16 %v1474
        %v1486 = vpack.c.b16 %v1483, %v1482
        %v1487 = vpack.c.b16 %v1485, %v1484
        %v1491 = vsel %vm363, %v1477, 0
        %1493 = vmatprep.subr.bf16.mxu0 0
        %1494 = vmatpush1.bf16.msra.mxu0 %v1486
        %1495 = vmatprep.subr.bf16.mxu0 0
        %1496 = vmatpush1.bf16.msra.mxu0 %v1487
        %1497 = vmatprep.subr.bf16.mxu0 0
        %1498 = vmatpush1.bf16.msra.mxu0 0
        %1499 = vmatprep.subr.bf16.mxu0 0
        %1500 = vmatpush1.bf16.msra.mxu0 0
        %1501 = vmatprep.subr.bf16.mxu0 0
        %1502 = vmatpush1.bf16.msra.mxu0 0
        %1503 = vmatprep.subr.bf16.mxu0 0
        %1504 = vmatpush1.bf16.msra.mxu0 0
        %1505 = vmatprep.subr.bf16.mxu0 0
        %1506 = vmatpush1.bf16.msra.mxu0 0
        %1507 = vmatprep.subr.bf16.mxu0 0
        %1508 = vmatpush1.bf16.msra.mxu0 0
        %1509 = vmatprep.subr.bf16.mxu0 0
        %1510 = vmatpush1.bf16.msra.mxu0 0
        %1511 = vmatprep.subr.bf16.mxu0 0
        %1512 = vmatpush1.bf16.msra.mxu0 0
        %1513 = vmatprep.subr.bf16.mxu0 0
        %1514 = vmatpush1.bf16.msra.mxu0 0
        %1515 = vmatprep.subr.bf16.mxu0 0
        %1516 = vmatpush1.bf16.msra.mxu0 0
        %1517 = vmatprep.subr.bf16.mxu0 0
        %1518 = vmatpush1.bf16.msra.mxu0 0
        %1519 = vmatprep.subr.bf16.mxu0 0
        %1520 = vmatpush1.bf16.msra.mxu0 0
        %1521 = vmatprep.subr.bf16.mxu0 0
        %1522 = vmatpush1.bf16.msra.mxu0 0
        %1523 = vmatprep.subr.bf16.mxu0 0
        %1524 = vmatpush1.bf16.msra.mxu0 0
        %1525 = vmatprep.mubr.bf16.mxu0 0
        %1526 = vmatmul.mubr.bf16.gmra.mrb[0].mxu0 %v1491
        %v1527 = vpop.f32.mrb[0].mxu0
        %v1528 = vadd.f32 0.0, %v1527
        %v1529 = vpop.f32.mrb[0].mxu0
        %v1530 = vpop.f32.mrb[0].mxu0
        %v1531 = vadd.f32 0.0, %v1530
        %v1532 = vpop.f32.mrb[0].mxu0
        %1533 = vdwg.mxu0
        %v1534 = vadd.f32 %v1468, %v1528
        %v1535 = vadd.f32 %v1469, %v1531
        %s1536 = scalar_lea.vmem %s2, 2
        %v1537 = vld [vmem:[%s1536] sm:$0x1]
        %v1539 = vlaneseq
        %v1540 = vshrl.u32 %v1539, 7
        %v1541 = vsub.s32 0, %v1540
        %v1542 = vrot.slane %v1537, %v1541
        %v1544 = vadd.f32 %v1534, %v1542
        %v1545 = vadd.f32 %v1535, %v1542
        %v1546 = vsel %vm363, %v1544, 0.0
        %1547 = vadd.xlane.f32.xlu0 %v1546
        %v1548 = vpop.xlane.xlu0 %1547
        %v1549 = vsel %vm363, %v1545, 0.0
        %1550 = vadd.xlane.f32.xlu0 %v1549
        %v1551 = vpop.xlane.xlu0 %1550
        %v1552 = vmul.f32 %v1548, %v685
        %v1553 = vmul.f32 %v1551, %v685
        %v1554 = vsub.f32 %v1544, %v1552
        %v1555 = vsub.f32 %v1545, %v1553
        %v1556 = vmul.f32 %v1554, %v1554
        %v1557 = vmul.f32 %v1555, %v1555
        %v1558 = vsel %vm363, %v1556, 0.0
        %1559 = vadd.xlane.f32.xlu0 %v1558
        %v1560 = vpop.xlane.xlu0 %1559
        %v1561 = vsel %vm363, %v1557, 0.0
        %1562 = vadd.xlane.f32.xlu0 %v1561
        %v1563 = vpop.xlane.xlu0 %1562
        %v1564 = vmul.f32 %v1560, %v685
        %v1565 = vmul.f32 %v1563, %v685
        %v1566 = vadd.f32 %v1564, 1e-05
        %v1567 = vadd.f32 %v1565, 1e-05
        %v1568 = vrsqrt.pop %v1566
        %v1569 = vrsqrt.pop %v1567
        %v1570 = vmul.f32 %v1554, %v1568
        %v1571 = vmul.f32 %v1555, %v1569
        %s1572 = scalar_lea.vmem %s3, 2
        %v1573 = vld [vmem:[%s1572] sm:$0x1]
        %v1575 = vlaneseq
        %v1576 = vshrl.u32 %v1575, 7
        %v1577 = vsub.s32 0, %v1576
        %v1578 = vrot.slane %v1573, %v1577
        %v1580 = vmul.f32 %v1570, %v1578
        %v1581 = vmul.f32 %v1571, %v1578
        %s1582 = scalar_lea.vmem %s4, 2
        %v1583 = vld [vmem:[%s1582] sm:$0x1]
        %v1585 = vlaneseq
        %v1586 = vshrl.u32 %v1585, 7
        %v1587 = vsub.s32 0, %v1586
        %v1588 = vrot.slane %v1583, %v1587
        %v1590 = vadd.f32 %v1580, %v1588
        %v1591 = vadd.f32 %v1581, %v1588
        %vm1592 = vcmp.gt.f32.partialorder %v1590, 0.0
        %vm1593 = vcmp.gt.f32.partialorder %v1591, 0.0
        %v1594 = vmul.f32 %v1590, 0.2
        %v1595 = vmul.f32 %v1591, 0.2
        %v1596 = vsel %vm1592, %v1590, %v1594
        %v1597 = vsel %vm1593, %v1591, %v1595
        %v1598 = vmul.f32 %v1596, %v733
        %v1599 = vmul.f32 %v1597, %v738
        %v1600 = vpack.c.bf16 %v1599, %v1598
        %v1602 = vunpack.c.l.b16 %v1600
        %v1603 = vunpack.c.h.b16 %v1600
        %v1604 = vpack.c.b16 %v1602, %v1602
        %v1605 = vpack.c.b16 %v1603, %v1603
        %1608 = vst.msk [vmem:[%s274] sm:$0xf] %vm315, %v1604
        %1609 = vst.msk [vmem:[%s274 + $0x4] sm:$0xf] %vm315, %v1605
        %s1610 = sand.u32 %s165, 1
        %s1611 = scalar_lea.sflag [#allocation5], %s1610
        %s1612 = sand.u32 %s165, 1
        %s1613 = smul.addr %s1612, 8
        %s1614 = scalar_lea.vmem [#allocation6], %s1613
        // Predicated region
        $region49: #{tpu_custom_call.1} parent=43 // pred_check
          %p1615 = pneg %p175
        $region50: #{tpu_custom_call.1} parent=43 // pred_check_branch
          %1617 = sbr.rel (%p1615) target = $region52
        $region51: #{tpu_custom_call.1} parent=43 // pred_region
          %s1619 = ssub.s32 128, 128
          %1620 = vsyncadd %s1611, %s1619
          %s1621 = smul.addr %s21, 2
          %s1622 = smul.addr %s1621, 64
          %s1623 = scalar_lea.hbm %s6, %s1622
          %s1624 = sshll.u32 %s1614, 4
          %s1625 = int_to_ptr.vmem [resolvable:$true] %s1624
          %1630 = dma.vmem_to_hbm [thread:$0]  %s1625, 128, %s1623, %s1611, 64, 64, 4
        $region52: #{tpu_custom_call.1} parent=43 // pred_fallthru
          _
      $region44: #{tpu_custom_call.1} parent=5 // pred_fallthru
        _
      %p1631 = scmp.le.s32.totalorder 2, %s16
      // Predicated region
      $region53: #{tpu_custom_call.1} parent=5 // pred_check
        %p1632 = pneg %p1631
      $region54: #{tpu_custom_call.1} parent=5 // pred_check_branch
        %1634 = sbr.rel (%p1632) target = $region56
      $region55: #{tpu_custom_call.1} parent=5 // pred_region
        %s1635 = ssub.s32 %s16, 2
        // Predicated region
        $region57: #{tpu_custom_call.1} parent=55 // pred_check
          %p1636 = pneg %p181
        $region58: #{tpu_custom_call.1} parent=55 // pred_check_branch
          %1638 = sbr.rel (%p1636) target = $region60
        $region59: #{tpu_custom_call.1} parent=55 // pred_region
          %s1639 = sand.u32 %s166, 1
          %s1640 = scalar_lea.sflag [#allocation5], %s1639
          %s1641 = sand.u32 %s166, 1
          %s1642 = smul.addr %s1641, 8
          %s1643 = scalar_lea.vmem [#allocation6], %s1642
          %1644 = dma.done %s1640, 128
        $region60: #{tpu_custom_call.1} parent=55 // pred_fallthru
          _
      $region56: #{tpu_custom_call.1} parent=5 // pred_fallthru
        _
    $region6: #{tpu_custom_call.1} parent=1 // loop_footer
      %s20 = sadd.s32 1, %s16
    $region7: #{tpu_custom_call.1} parent=1 // loop_footer_branch
      %15 = sbr.rel target = $region3
    $region8: #{tpu_custom_call.1} parent=1 // loop_exit
      _
    %1645 = vsyncpa [#allocation4], 1
    %s1646 = scalar_lea.sflag [#allocation4], 1
    %1647 = vsyncpa %s1646, 1
    %1648 = vsyncpa [#allocation5], 1
    %s1649 = scalar_lea.sflag [#allocation5], 1
    %1650 = vsyncpa %s1649, 1

</llo_original>
